<compile_context>
chip_gen: v6e
topology: v6e:2x2x1
jax: 0.10.0
libtpu: 0.0.40
codegen_flags: <defaults>
</compile_context>

<pallas_src>
import math
from functools import partial

import jax
import jax.numpy as jnp
from jax.experimental import pallas as pl
from jax.experimental.pallas import tpu as pltpu


# ----------------------------- in-kernel helpers -----------------------------

def _layer_norm(x, g, b, eps):
    """LayerNorm over the last dim, f32 math."""
    mean = jnp.mean(x, axis=-1, keepdims=True)
    var = jnp.mean((x - mean) ** 2, axis=-1, keepdims=True)
    return (x - mean) * jax.lax.rsqrt(var + eps) * g + b


def _mha_heads(q, k, v, mask, head, scale, scr):
    """Multi-head attention for one batch element, lane-dense (L, D) layout.

    q: (Lq, D) f32, k/v: (Lk, D) f32, mask: (Lq, Lk) bool.
    Per-head results are written into the VMEM scratch `scr` slice-by-slice
    (avoids a lane-crossing jnp.concatenate); returns the (Lq, D) f32 result.
    """
    Lq, D = q.shape
    Dh = D // head
    qb = q.astype(jnp.bfloat16)
    kb = k.astype(jnp.bfloat16)
    vb = v.astype(jnp.bfloat16)
    for h in range(head):
        lo = h * Dh
        s = jax.lax.dot_general(
            qb[:, lo:lo + Dh], kb[:, lo:lo + Dh],
            (((1,), (1,)), ((), ())),
            preferred_element_type=jnp.float32) * scale
        s = jnp.where(mask, s, -1e9)
        s = s - jnp.max(s, axis=-1, keepdims=True)
        p = jnp.exp(s)
        p = p * pl.reciprocal(jnp.sum(p, axis=-1, keepdims=True), approx=True)
        scr[:, lo:lo + Dh] = jnp.dot(p.astype(jnp.bfloat16), vb[:, lo:lo + Dh],
                                     preferred_element_type=jnp.float32)
    return scr[...]


# ----------------------------- fused layer kernels -----------------------------

def _encoder_layer_kernel(qv_ref, kv_ref, x_ref,
                          wqkv_ref, bqkv_ref, wo_ref, bo_ref,
                          ln1g_ref, ln1b_ref,
                          ff1w_ref, ff1b_ref, ff2w_ref, ff2b_ref,
                          ln2g_ref, ln2b_ref,
                          o_ref, attn_scr, *, head, eps):
    """One full encoder layer (self-attn + FFN, post-LN) for one batch element."""
    L, D = x_ref.shape
    scale = 1.0 / math.sqrt(D // head)

    x_bf = x_ref[...]                          # (L, D) bf16
    x = x_bf.astype(jnp.float32)

    # pad mask built in-kernel from tiny validity vectors
    mask = (qv_ref[...] > 0.5) & (kv_ref[...] > 0.5)          # (L, L)

    # --- self attention (fused QKV matmul) ---
    qkv = jnp.dot(x_bf, wqkv_ref[...], preferred_element_type=jnp.float32)
    qkv = qkv + bqkv_ref[...]                                  # (L, 3D) f32
    q, k, v = qkv[:, :D], qkv[:, D:2 * D], qkv[:, 2 * D:]
    attn = _mha_heads(q, k, v, mask, head, scale, attn_scr)
    proj = jnp.dot(attn.astype(jnp.bfloat16), wo_ref[...],
                   preferred_element_type=jnp.float32) + bo_ref[...]
    x1 = _layer_norm(x + proj, ln1g_ref[...], ln1b_ref[...], eps)

    # --- feed forward ---
    h = jnp.dot(x1.astype(jnp.bfloat16), ff1w_ref[...],
                preferred_element_type=jnp.float32) + ff1b_ref[...]
    h = jnp.maximum(h, 0.0)
    f = jnp.dot(h.astype(jnp.bfloat16), ff2w_ref[...],
                preferred_element_type=jnp.float32) + ff2b_ref[...]
    x2 = _layer_norm(x1 + f, ln2g_ref[...], ln2b_ref[...], eps)

    o_ref[...] = x2.astype(o_ref.dtype)


def _decoder_layer_kernel(tqv_ref, tkv_ref, skv_ref, x_ref, enc_ref,
                          s_wqkv_ref, s_bqkv_ref, s_wo_ref, s_bo_ref,
                          ln1g_ref, ln1b_ref,
                          c_wqkv_ref, c_bqkv_ref, c_wo_ref, c_bo_ref,
                          ln2g_ref, ln2b_ref,
                          ff1w_ref, ff1b_ref, ff2w_ref, ff2b_ref,
                          ln3g_ref, ln3b_ref,
                          o_ref, attn_scr, *, head, eps):
    """One full decoder layer (masked self-attn + cross-attn + FFN, post-LN)."""
    Lt, D = x_ref.shape
    Ls = enc_ref.shape[0]
    scale = 1.0 / math.sqrt(D // head)

    x_bf = x_ref[...]                          # (Lt, D) bf16
    x = x_bf.astype(jnp.float32)
    enc_bf = enc_ref[...]                      # (Ls, D) bf16

    # --- masked self attention (pad + causal mask built in-kernel) ---
    ri = jax.lax.broadcasted_iota(jnp.int32, (Lt, Lt), 0)
    ci = jax.lax.broadcasted_iota(jnp.int32, (Lt, Lt), 1)
    self_mask = (tqv_ref[...] > 0.5) & (tkv_ref[...] > 0.5) & (ci <= ri)

    qkv = jnp.dot(x_bf, s_wqkv_ref[...], preferred_element_type=jnp.float32)
    qkv = qkv + s_bqkv_ref[...]
    q, k, v = qkv[:, :D], qkv[:, D:2 * D], qkv[:, 2 * D:]
    attn = _mha_heads(q, k, v, self_mask, head, scale, attn_scr)
    proj = jnp.dot(attn.astype(jnp.bfloat16), s_wo_ref[...],
                   preferred_element_type=jnp.float32) + s_bo_ref[...]
    x1 = _layer_norm(x + proj, ln1g_ref[...], ln1b_ref[...], eps)

    # --- cross attention (decoder queries, encoder keys/values, pad mask) ---
    cross_mask = (tqv_ref[...] > 0.5) & (skv_ref[...] > 0.5)   # (Lt, Ls)
    wc = c_wqkv_ref[...]                                        # (D, 3D) bf16
    bc = c_bqkv_ref[...]                                        # (1, 3D) f32
    qc = jnp.dot(x1.astype(jnp.bfloat16), wc[:, :D],
                 preferred_element_type=jnp.float32) + bc[:, :D]
    kvc = jnp.dot(enc_bf, wc[:, D:],
                  preferred_element_type=jnp.float32) + bc[:, D:]
    kc, vc = kvc[:, :D], kvc[:, D:]
    attn2 = _mha_heads(qc, kc, vc, cross_mask, head, scale, attn_scr)
    proj2 = jnp.dot(attn2.astype(jnp.bfloat16), c_wo_ref[...],
                    preferred_element_type=jnp.float32) + c_bo_ref[...]
    x2 = _layer_norm(x1 + proj2, ln2g_ref[...], ln2b_ref[...], eps)

    # --- feed forward ---
    h = jnp.dot(x2.astype(jnp.bfloat16), ff1w_ref[...],
                preferred_element_type=jnp.float32) + ff1b_ref[...]
    h = jnp.maximum(h, 0.0)
    f = jnp.dot(h.astype(jnp.bfloat16), ff2w_ref[...],
                preferred_element_type=jnp.float32) + ff2b_ref[...]
    x3 = _layer_norm(x2 + f, ln3g_ref[...], ln3b_ref[...], eps)

    o_ref[...] = x3.astype(o_ref.dtype)


def _logits_kernel(x_ref, w_ref, b_ref, o_ref):
    o_ref[...] = (jnp.dot(x_ref[...], w_ref[...],
                          preferred_element_type=jnp.float32)
                  + b_ref[...]).astype(o_ref.dtype)


# ----------------------------- pallas_call wrappers -----------------------------

_VMEM_LIMIT = 32 * 1024 * 1024


def pallas_encoder_layer(x, src_vq, src_vk, lp, head, eps=1e-5):
    """x: (B, Ls, D) bf16 -> (B, Ls, D) bf16, one fused pallas_call per layer."""
    B, L, D = x.shape
    Dff = lp["ff1w"].shape[1]
    w = lambda s: pl.BlockSpec(s, lambda b: (0, 0))
    return pl.pallas_call(
        partial(_encoder_layer_kernel, head=head, eps=eps),
        grid=(B,),
        in_specs=[
            pl.BlockSpec((None, L, 1), lambda b: (b, 0, 0)),
            pl.BlockSpec((None, 1, L), lambda b: (b, 0, 0)),
            pl.BlockSpec((None, L, D), lambda b: (b, 0, 0)),
            w((D, 3 * D)), w((1, 3 * D)), w((D, D)), w((1, D)),
            w((1, D)), w((1, D)),
            w((D, Dff)), w((1, Dff)), w((Dff, D)), w((1, D)),
            w((1, D)), w((1, D)),
        ],
        out_specs=pl.BlockSpec((None, L, D), lambda b: (b, 0, 0)),
        out_shape=jax.ShapeDtypeStruct((B, L, D), jnp.bfloat16),
        scratch_shapes=[pltpu.VMEM((L, D), jnp.float32)],
        compiler_params=pltpu.CompilerParams(
            dimension_semantics=("parallel",),
            vmem_limit_bytes=_VMEM_LIMIT),
    )(src_vq, src_vk, x,
      lp["wqkv"], lp["bqkv"], lp["wo"], lp["bo"],
      lp["ln1g"], lp["ln1b"],
      lp["ff1w"], lp["ff1b"], lp["ff2w"], lp["ff2b"],
      lp["ln2g"], lp["ln2b"])


def pallas_decoder_layer(x, enc_out, trg_vq, trg_vk, src_vk, lp, head, eps=1e-5):
    """x: (B, Lt, D) bf16, enc_out: (B, Ls, D) bf16 -> (B, Lt, D) bf16."""
    B, Lt, D = x.shape
    Ls = enc_out.shape[1]
    Dff = lp["ff1w"].shape[1]
    w = lambda s: pl.BlockSpec(s, lambda b: (0, 0))
    return pl.pallas_call(
        partial(_decoder_layer_kernel, head=head, eps=eps),
        grid=(B,),
        in_specs=[
            pl.BlockSpec((None, Lt, 1), lambda b: (b, 0, 0)),
            pl.BlockSpec((None, 1, Lt), lambda b: (b, 0, 0)),
            pl.BlockSpec((None, 1, Ls), lambda b: (b, 0, 0)),
            pl.BlockSpec((None, Lt, D), lambda b: (b, 0, 0)),
            pl.BlockSpec((None, Ls, D), lambda b: (b, 0, 0)),
            w((D, 3 * D)), w((1, 3 * D)), w((D, D)), w((1, D)),
            w((1, D)), w((1, D)),
            w((D, 3 * D)), w((1, 3 * D)), w((D, D)), w((1, D)),
            w((1, D)), w((1, D)),
            w((D, Dff)), w((1, Dff)), w((Dff, D)), w((1, D)),
            w((1, D)), w((1, D)),
        ],
        out_specs=pl.BlockSpec((None, Lt, D), lambda b: (b, 0, 0)),
        out_shape=jax.ShapeDtypeStruct((B, Lt, D), jnp.bfloat16),
        scratch_shapes=[pltpu.VMEM((Lt, D), jnp.float32)],
        compiler_params=pltpu.CompilerParams(
            dimension_semantics=("parallel",),
            vmem_limit_bytes=_VMEM_LIMIT),
    )(trg_vq, trg_vk, src_vk, x, enc_out,
      lp["self_wqkv"], lp["self_bqkv"], lp["self_wo"], lp["self_bo"],
      lp["ln1g"], lp["ln1b"],
      lp["cross_wqkv"], lp["cross_bqkv"], lp["cross_wo"], lp["cross_bo"],
      lp["ln2g"], lp["ln2b"],
      lp["ff1w"], lp["ff1b"], lp["ff2w"], lp["ff2b"],
      lp["ln3g"], lp["ln3b"])


def pallas_logits(x, w, b):
    """x: (B, Lt, D) bf16, w: (D, Vpad) bf16, b: (1, Vpad) f32 -> (B, Lt, Vpad) f32.

    Vocab dim is pre-padded to a multiple of 128 so the HBM store is lane-dense.
    """
    B, Lt, D = x.shape
    Vp = w.shape[1]
    return pl.pallas_call(
        _logits_kernel,
        grid=(B,),
        in_specs=[
            pl.BlockSpec((None, Lt, D), lambda b: (b, 0, 0)),
            pl.BlockSpec((D, Vp), lambda b: (0, 0)),
            pl.BlockSpec((1, Vp), lambda b: (0, 0)),
        ],
        out_specs=pl.BlockSpec((None, Lt, Vp), lambda b: (b, 0, 0)),
        out_shape=jax.ShapeDtypeStruct((B, Lt, Vp), jnp.float32),
        compiler_params=pltpu.CompilerParams(
            dimension_semantics=("parallel",),
            vmem_limit_bytes=_VMEM_LIMIT),
    )(x, w, b)


# ------------------------------ model glue ------------------------------

def sinusoidal_pos_encoding(max_len, d_model):
    pos = jnp.arange(max_len, dtype=jnp.float32)[:, None]
    i = jnp.arange(0, d_model, 2, dtype=jnp.float32)
    angle = pos / jnp.power(10000.0, i / d_model)
    pe = jnp.zeros((max_len, d_model), jnp.float32)
    pe = pe.at[:, 0::2].set(jnp.sin(angle))
    pe = pe.at[:, 1::2].set(jnp.cos(angle))
    return pe


def transformer_forward(params, src_seq, trg_seq, *, src_pad_idx, trg_pad_idx,
                        head, trg_vocab):
    B, Ls = src_seq.shape
    Lt = trg_seq.shape[1]

    # Tiny per-sequence validity vectors; full pad/causal masks are built in-kernel.
    src_valid = (src_seq != src_pad_idx).astype(jnp.float32)
    trg_valid = (trg_seq != trg_pad_idx).astype(jnp.float32)
    src_vq = src_valid[:, :, None]     # (B, Ls, 1)
    src_vk = src_valid[:, None, :]     # (B, 1, Ls)
    trg_vq = trg_valid[:, :, None]     # (B, Lt, 1)
    trg_vk = trg_valid[:, None, :]     # (B, 1, Lt)

    src_x = (jnp.take(params["src_emb"], src_seq, axis=0)
             + params["pos_enc"][None, :Ls]).astype(jnp.bfloat16)
    for lp in params["enc"]:
        src_x = pallas_encoder_layer(src_x, src_vq, src_vk, lp, head)

    trg_x = (jnp.take(params["trg_emb"], trg_seq, axis=0)
             + params["pos_enc"][None, :Lt]).astype(jnp.bfloat16)
    for lp in params["dec"]:
        trg_x = pallas_decoder_layer(trg_x, src_x, trg_vq, trg_vk, src_vk, lp, head)

    logits = pallas_logits(trg_x, params["out_w"], params["out_b"])
    return logits[:, :, :trg_vocab]


# ------------------------------ parameters ------------------------------

def init_params(key, src_vocab, trg_vocab, d_model, d_ff, head, N, max_len):
    keys = iter(jax.random.split(key, 512))

    def w_bf16(fan_in, fan_out):
        return (jax.random.normal(next(keys), (fan_in, fan_out), jnp.float32)
                * 0.02).astype(jnp.bfloat16)

    def b_f32(n):
        return jnp.zeros((1, n), jnp.float32)

    def ln_pair():
        return jnp.ones((1, d_model), jnp.float32), jnp.zeros((1, d_model), jnp.float32)

    def attn_block(prefix):
        # Fused [Wq | Wk | Wv] so QKV (and cross K/V) is a single matmul.
        return {
            prefix + "wqkv": w_bf16(d_model, 3 * d_model),
            prefix + "bqkv": b_f32(3 * d_model),
            prefix + "wo": w_bf16(d_model, d_model),
            prefix + "bo": b_f32(d_model),
        }

    def enc_layer():
        g1, b1 = ln_pair()
        g2, b2 = ln_pair()
        lp = attn_block("")
        lp.update({
            "ln1g": g1, "ln1b": b1,
            "ff1w": w_bf16(d_model, d_ff), "ff1b": b_f32(d_ff),
            "ff2w": w_bf16(d_ff, d_model), "ff2b": b_f32(d_model),
            "ln2g": g2, "ln2b": b2,
        })
        return lp

    def dec_layer():
        g1, b1 = ln_pair()
        g2, b2 = ln_pair()
        g3, b3 = ln_pair()
        lp = {}
        lp.update(attn_block("self_"))
        lp.update(attn_block("cross_"))
        lp.update({
            "ln1g": g1, "ln1b": b1,
            "ln2g": g2, "ln2b": b2,
            "ff1w": w_bf16(d_model, d_ff), "ff1b": b_f32(d_ff),
            "ff2w": w_bf16(d_ff, d_model), "ff2b": b_f32(d_model),
            "ln3g": g3, "ln3b": b3,
        })
        return lp

    # pad vocab dim of the output projection to a multiple of 128 (lane-dense store)
    v_pad = ((trg_vocab + 127) // 128) * 128
    out_w = jnp.zeros((d_model, v_pad), jnp.float32)
    out_w = out_w.at[:, :trg_vocab].set(
        jax.random.normal(next(keys), (d_model, trg_vocab), jnp.float32) * 0.02)

    return {
        "src_emb": jax.random.normal(next(keys), (src_vocab, d_model), jnp.float32) * 0.02,
        "trg_emb": jax.random.normal(next(keys), (trg_vocab, d_model), jnp.float32) * 0.02,
        "pos_enc": sinusoidal_pos_encoding(max_len, d_model),
        "enc": [enc_layer() for _ in range(N)],
        "dec": [dec_layer() for _ in range(N)],
        "out_w": out_w.astype(jnp.bfloat16),
        "out_b": jnp.zeros((1, v_pad), jnp.float32),
    }


# --------------------------------- main ---------------------------------

if __name__ == "__main__":
    SRC_PAD_IDX, TRG_PAD_IDX = 0, 0
    D_MODEL, D_FF, HEAD, N_LAYERS = 32, 64, 4, 2
    SRC_VOCAB, TRG_VOCAB, MAX_SEQ_LEN = 16, 18, 16
    B, SRC_LEN, TRG_LEN = 2, 8, 8

    key = jax.random.PRNGKey(0)
    k_par, k_src, k_trg = jax.random.split(key, 3)

    params = init_params(k_par, SRC_VOCAB, TRG_VOCAB, D_MODEL, D_FF, HEAD,
                         N_LAYERS, MAX_SEQ_LEN)

    src_seq = jax.random.randint(k_src, (B, SRC_LEN), 1, SRC_VOCAB, dtype=jnp.int32)
    trg_seq = jax.random.randint(k_trg, (B, TRG_LEN), 1, TRG_VOCAB, dtype=jnp.int32)
    # introduce some padding tokens to exercise the pad masks
    src_seq = src_seq.at[1, -2:].set(SRC_PAD_IDX)
    trg_seq = trg_seq.at[0, -1:].set(TRG_PAD_IDX)

    fwd = jax.jit(partial(transformer_forward,
                          src_pad_idx=SRC_PAD_IDX, trg_pad_idx=TRG_PAD_IDX,
                          head=HEAD, trg_vocab=TRG_VOCAB))
    out = fwd(params, src_seq, trg_seq)
    jax.block_until_ready(out)

    assert out.shape == (B, TRG_LEN, TRG_VOCAB), out.shape
    assert bool(jnp.all(jnp.isfinite(out)))
    print("KERNEL_OK")
</pallas_src>

<mosaic_0001>
module attributes {stable_mosaic.version = 11 : i64} {
  func.func @_logits_kernel(%arg0: i32, %arg1: memref<1x8x32xbf16, #tpu.memory_space<vmem>>, %arg2: memref<32x128xbf16, #tpu.memory_space<vmem>>, %arg3: memref<1x128xf32, #tpu.memory_space<vmem>>, %arg4: memref<1x8x128xf32, #tpu.memory_space<vmem>>) attributes {dimension_semantics = [#tpu.dimension_semantics<parallel>], iteration_bounds = array<i64: 2>, scalar_prefetch = 0 : i64, scratch_operands = 0 : i64, tpu.core_type = #tpu.core_type<tc>, window_params = [{transform_indices = @transform_0, window_bounds = array<i64: 1, 8, 32>}, {pipeline_mode = #tpu.pipeline_mode<synchronous>, transform_indices = @transform_1, window_bounds = array<i64: 32, 128>}, {pipeline_mode = #tpu.pipeline_mode<synchronous>, transform_indices = @transform_2, window_bounds = array<i64: 1, 128>}, {transform_indices = @transform_3, window_bounds = array<i64: 1, 8, 128>}]} {
    %c0 = arith.constant 0 : index
    %c0_0 = arith.constant 0 : index
    %c0_1 = arith.constant 0 : index
    %0 = vector.load %arg1[%c0, %c0_0, %c0_1] : memref<1x8x32xbf16, #tpu.memory_space<vmem>>, vector<1x8x32xbf16>
    %1 = vector.shape_cast %0 : vector<1x8x32xbf16> to vector<8x32xbf16>
    %c0_2 = arith.constant 0 : index
    %c0_3 = arith.constant 0 : index
    %2 = vector.load %arg2[%c0_2, %c0_3] : memref<32x128xbf16, #tpu.memory_space<vmem>>, vector<32x128xbf16>
    %cst = arith.constant dense<0.000000e+00> : vector<8x128xf32>
    %3 = tpu.matmul %1, %2, %cst {dimension_numbers = #tpu.dot_dimension_numbers<[1], [0], [0], [1], [0, 0, 1, 1], [], []>} : vector<8x32xbf16>, vector<32x128xbf16>, vector<8x128xf32> -> vector<8x128xf32>
    %c0_4 = arith.constant 0 : index
    %c0_5 = arith.constant 0 : index
    %4 = vector.load %arg3[%c0_4, %c0_5] : memref<1x128xf32, #tpu.memory_space<vmem>>, vector<1x128xf32>
    %5 = vector.broadcast %4 : vector<1x128xf32> to vector<8x128xf32>
    %6 = arith.addf %3, %5 : vector<8x128xf32>
    %c0_6 = arith.constant 0 : index
    %c0_7 = arith.constant 0 : index
    %c0_8 = arith.constant 0 : index
    %7 = vector.load %arg4[%c0_6, %c0_7, %c0_8] : memref<1x8x128xf32, #tpu.memory_space<vmem>>, vector<1x8x128xf32>
    %8 = vector.shape_cast %7 : vector<1x8x128xf32> to vector<8x128xf32>
    %9 = vector.shape_cast %6 : vector<8x128xf32> to vector<1x8x128xf32>
    tpu.vector_store %arg4[%c0_6, %c0_7, %c0_8], %9 {strides = array<i32>} : memref<1x8x128xf32, #tpu.memory_space<vmem>>, vector<1x8x128xf32>,
    return
  }
  func.func @transform_0(%arg0: i32) -> (i32, i32, i32) {
    %c0_i32 = arith.constant 0 : i32
    %c0_i32_0 = arith.constant 0 : i32
    %c0_i32_1 = arith.constant 0 : i32
    return %arg0, %c0_i32, %c0_i32_0 : i32, i32, i32
  }
  func.func @transform_1(%arg0: i32) -> (i32, i32) {
    %c0_i32 = arith.constant 0 : i32
    %c0_i32_0 = arith.constant 0 : i32
    %c0_i32_1 = arith.constant 0 : i32
    return %c0_i32, %c0_i32_0 : i32, i32
  }
  func.func @transform_2(%arg0: i32) -> (i32, i32) {
    %c0_i32 = arith.constant 0 : i32
    %c0_i32_0 = arith.constant 0 : i32
    %c0_i32_1 = arith.constant 0 : i32
    return %c0_i32, %c0_i32_0 : i32, i32
  }
  func.func @transform_3(%arg0: i32) -> (i32, i32, i32) {
    %c0_i32 = arith.constant 0 : i32
    %c0_i32_0 = arith.constant 0 : i32
    %c0_i32_1 = arith.constant 0 : i32
    return %arg0, %c0_i32, %c0_i32_0 : i32, i32, i32
  }
}

module attributes {stable_mosaic.version = 11 : i64} {
  func.func @_encoder_layer_kernel(%arg0: i32, %arg1: memref<1x8x1xf32, #tpu.memory_space<vmem>>, %arg2: memref<1x1x8xf32, #tpu.memory_space<vmem>>, %arg3: memref<1x8x32xbf16, #tpu.memory_space<vmem>>, %arg4: memref<32x96xbf16, #tpu.memory_space<vmem>>, %arg5: memref<1x96xf32, #tpu.memory_space<vmem>>, %arg6: memref<32x32xbf16, #tpu.memory_space<vmem>>, %arg7: memref<1x32xf32, #tpu.memory_space<vmem>>, %arg8: memref<1x32xf32, #tpu.memory_space<vmem>>, %arg9: memref<1x32xf32, #tpu.memory_space<vmem>>, %arg10: memref<32x64xbf16, #tpu.memory_space<vmem>>, %arg11: memref<1x64xf32, #tpu.memory_space<vmem>>, %arg12: memref<64x32xbf16, #tpu.memory_space<vmem>>, %arg13: memref<1x32xf32, #tpu.memory_space<vmem>>, %arg14: memref<1x32xf32, #tpu.memory_space<vmem>>, %arg15: memref<1x32xf32, #tpu.memory_space<vmem>>, %arg16: memref<1x8x32xbf16, #tpu.memory_space<vmem>>, %arg17: memref<8x32xf32, #tpu.memory_space<vmem>>) attributes {dimension_semantics = [#tpu.dimension_semantics<parallel>], iteration_bounds = array<i64: 2>, scalar_prefetch = 0 : i64, scratch_operands = 1 : i64, tpu.core_type = #tpu.core_type<tc>, window_params = [{transform_indices = @transform_0, window_bounds = array<i64: 1, 8, 1>}, {transform_indices = @transform_1, window_bounds = array<i64: 1, 1, 8>}, {transform_indices = @transform_2, window_bounds = array<i64: 1, 8, 32>}, {pipeline_mode = #tpu.pipeline_mode<synchronous>, transform_indices = @transform_3, window_bounds = array<i64: 32, 96>}, {pipeline_mode = #tpu.pipeline_mode<synchronous>, transform_indices = @transform_4, window_bounds = array<i64: 1, 96>}, {pipeline_mode = #tpu.pipeline_mode<synchronous>, transform_indices = @transform_5, window_bounds = array<i64: 32, 32>}, {pipeline_mode = #tpu.pipeline_mode<synchronous>, transform_indices = @transform_6, window_bounds = array<i64: 1, 32>}, {pipeline_mode = #tpu.pipeline_mode<synchronous>, transform_indices = @transform_7, window_bounds = array<i64: 1, 32>}, {pipeline_mode = #tpu.pipeline_mode<synchronous>, transform_indices = @transform_8, window_bounds = array<i64: 1, 32>}, {pipeline_mode = #tpu.pipeline_mode<synchronous>, transform_indices = @transform_9, window_bounds = array<i64: 32, 64>}, {pipeline_mode = #tpu.pipeline_mode<synchronous>, transform_indices = @transform_10, window_bounds = array<i64: 1, 64>}, {pipeline_mode = #tpu.pipeline_mode<synchronous>, transform_indices = @transform_11, window_bounds = array<i64: 64, 32>}, {pipeline_mode = #tpu.pipeline_mode<synchronous>, transform_indices = @transform_12, window_bounds = array<i64: 1, 32>}, {pipeline_mode = #tpu.pipeline_mode<synchronous>, transform_indices = @transform_13, window_bounds = array<i64: 1, 32>}, {pipeline_mode = #tpu.pipeline_mode<synchronous>, transform_indices = @transform_14, window_bounds = array<i64: 1, 32>}, {transform_indices = @transform_15, window_bounds = array<i64: 1, 8, 32>}]} {
    %c0 = arith.constant 0 : index
    %c0_0 = arith.constant 0 : index
    %c0_1 = arith.constant 0 : index
    %0 = vector.load %arg3[%c0, %c0_0, %c0_1] : memref<1x8x32xbf16, #tpu.memory_space<vmem>>, vector<1x8x32xbf16>
    %1 = vector.shape_cast %0 : vector<1x8x32xbf16> to vector<8x32xbf16>
    %2 = arith.extf %1 : vector<8x32xbf16> to vector<8x32xf32>
    %c0_2 = arith.constant 0 : index
    %c0_3 = arith.constant 0 : index
    %c0_4 = arith.constant 0 : index
    %3 = vector.load %arg1[%c0_2, %c0_3, %c0_4] : memref<1x8x1xf32, #tpu.memory_space<vmem>>, vector<1x8x1xf32>
    %4 = vector.shape_cast %3 : vector<1x8x1xf32> to vector<8x1xf32>
    %cst = arith.constant 5.000000e-01 : f32
    %5 = vector.broadcast %cst : f32 to vector<8x1xf32>
    %6 = arith.cmpf ogt, %4, %5 : vector<8x1xf32>
    %c0_5 = arith.constant 0 : index
    %c0_6 = arith.constant 0 : index
    %c0_7 = arith.constant 0 : index
    %7 = vector.load %arg2[%c0_5, %c0_6, %c0_7] : memref<1x1x8xf32, #tpu.memory_space<vmem>>, vector<1x1x8xf32>
    %8 = vector.shape_cast %7 : vector<1x1x8xf32> to vector<1x8xf32>
    %cst_8 = arith.constant 5.000000e-01 : f32
    %9 = vector.broadcast %cst_8 : f32 to vector<1x8xf32>
    %10 = arith.cmpf ogt, %8, %9 : vector<1x8xf32>
    %11 = vector.broadcast %6 : vector<8x1xi1> to vector<8x8xi1>
    %12 = vector.broadcast %10 : vector<1x8xi1> to vector<8x8xi1>
    %13 = arith.andi %11, %12 : vector<8x8xi1>
    %c0_9 = arith.constant 0 : index
    %c0_10 = arith.constant 0 : index
    %14 = vector.load %arg4[%c0_9, %c0_10] : memref<32x96xbf16, #tpu.memory_space<vmem>>, vector<32x96xbf16>
    %cst_11 = arith.constant dense<0.000000e+00> : vector<8x96xf32>
    %15 = tpu.matmul %1, %14, %cst_11 {dimension_numbers = #tpu.dot_dimension_numbers<[1], [0], [0], [1], [0, 0, 1, 1], [], []>} : vector<8x32xbf16>, vector<32x96xbf16>, vector<8x96xf32> -> vector<8x96xf32>
    %c0_12 = arith.constant 0 : index
    %c0_13 = arith.constant 0 : index
    %16 = vector.load %arg5[%c0_12, %c0_13] : memref<1x96xf32, #tpu.memory_space<vmem>>, vector<1x96xf32>
    %17 = vector.broadcast %16 : vector<1x96xf32> to vector<8x96xf32>
    %18 = arith.addf %15, %17 : vector<8x96xf32>
    %19 = vector.extract_strided_slice %18 {offsets = [0, 0], sizes = [8, 32], strides = [1, 1]} : vector<8x96xf32> to vector<8x32xf32>
    %20 = vector.extract_strided_slice %18 {offsets = [0, 32], sizes = [8, 32], strides = [1, 1]} : vector<8x96xf32> to vector<8x32xf32>
    %21 = vector.extract_strided_slice %18 {offsets = [0, 64], sizes = [8, 32], strides = [1, 1]} : vector<8x96xf32> to vector<8x32xf32>
    %22 = arith.truncf %19 : vector<8x32xf32> to vector<8x32xbf16>
    %23 = arith.truncf %20 : vector<8x32xf32> to vector<8x32xbf16>
    %24 = arith.truncf %21 : vector<8x32xf32> to vector<8x32xbf16>
    %25 = vector.extract_strided_slice %22 {offsets = [0, 0], sizes = [8, 8], strides = [1, 1]} : vector<8x32xbf16> to vector<8x8xbf16>
    %26 = vector.extract_strided_slice %23 {offsets = [0, 0], sizes = [8, 8], strides = [1, 1]} : vector<8x32xbf16> to vector<8x8xbf16>
    %cst_14 = arith.constant dense<0.000000e+00> : vector<8x8xf32>
    %27 = tpu.matmul %25, %26, %cst_14 {dimension_numbers = #tpu.dot_dimension_numbers<[1], [1], [0], [0], [0, 0, 1, 0], [], []>} : vector<8x8xbf16>, vector<8x8xbf16>, vector<8x8xf32> -> vector<8x8xf32>
    %cst_15 = arith.constant 0.353553385 : f32
    %28 = vector.broadcast %cst_15 : f32 to vector<8x8xf32>
    %29 = arith.mulf %27, %28 : vector<8x8xf32>
    %cst_16 = arith.constant -1.000000e+09 : f32
    %30 = vector.broadcast %cst_16 : f32 to vector<8x8xf32>
    %31 = arith.select %13, %29, %30 : vector<8x8xi1>, vector<8x8xf32>
    %cst_17 = arith.constant dense<0xFF800000> : vector<8xf32>
    %32 = vector.multi_reduction <maximumf>, %31, %cst_17 [1] : vector<8x8xf32> to vector<8xf32>
    %33 = vector.shape_cast %32 : vector<8xf32> to vector<8x1xf32>
    %34 = vector.broadcast %33 : vector<8x1xf32> to vector<8x8xf32>
    %35 = arith.subf %31, %34 : vector<8x8xf32>
    %36 = math.exp %35 : vector<8x8xf32>
    %cst_18 = arith.constant dense<0.000000e+00> : vector<8xf32>
    %37 = vector.multi_reduction <add>, %36, %cst_18 [1] : vector<8x8xf32> to vector<8xf32>
    %38 = vector.shape_cast %37 : vector<8xf32> to vector<8x1xf32>
    %39 = tpu.reciprocal %38 {approx = true} : vector<8x1xf32> -> vector<8x1xf32>
    %40 = vector.broadcast %39 : vector<8x1xf32> to vector<8x8xf32>
    %41 = arith.mulf %36, %40 : vector<8x8xf32>
    %42 = arith.truncf %41 : vector<8x8xf32> to vector<8x8xbf16>
    %43 = vector.extract_strided_slice %24 {offsets = [0, 0], sizes = [8, 8], strides = [1, 1]} : vector<8x32xbf16> to vector<8x8xbf16>
    %cst_19 = arith.constant dense<0.000000e+00> : vector<8x8xf32>
    %44 = tpu.matmul %42, %43, %cst_19 {dimension_numbers = #tpu.dot_dimension_numbers<[1], [0], [0], [1], [0, 0, 1, 1], [], []>} : vector<8x8xbf16>, vector<8x8xbf16>, vector<8x8xf32> -> vector<8x8xf32>
    %c0_20 = arith.constant 0 : index
    %c0_21 = arith.constant 0 : index
    %45 = vector.load %arg17[%c0_20, %c0_21] : memref<8x32xf32, #tpu.memory_space<vmem>>, vector<8x8xf32>
    tpu.vector_store %arg17[%c0_20, %c0_21], %44 {strides = array<i32>} : memref<8x32xf32, #tpu.memory_space<vmem>>, vector<8x8xf32>,
    %46 = vector.extract_strided_slice %22 {offsets = [0, 8], sizes = [8, 8], strides = [1, 1]} : vector<8x32xbf16> to vector<8x8xbf16>
    %47 = vector.extract_strided_slice %23 {offsets = [0, 8], sizes = [8, 8], strides = [1, 1]} : vector<8x32xbf16> to vector<8x8xbf16>
    %cst_22 = arith.constant dense<0.000000e+00> : vector<8x8xf32>
    %48 = tpu.matmul %46, %47, %cst_22 {dimension_numbers = #tpu.dot_dimension_numbers<[1], [1], [0], [0], [0, 0, 1, 0], [], []>} : vector<8x8xbf16>, vector<8x8xbf16>, vector<8x8xf32> -> vector<8x8xf32>
    %cst_23 = arith.constant 0.353553385 : f32
    %49 = vector.broadcast %cst_23 : f32 to vector<8x8xf32>
    %50 = arith.mulf %48, %49 : vector<8x8xf32>
    %cst_24 = arith.constant -1.000000e+09 : f32
    %51 = vector.broadcast %cst_24 : f32 to vector<8x8xf32>
    %52 = arith.select %13, %50, %51 : vector<8x8xi1>, vector<8x8xf32>
    %cst_25 = arith.constant dense<0xFF800000> : vector<8xf32>
    %53 = vector.multi_reduction <maximumf>, %52, %cst_25 [1] : vector<8x8xf32> to vector<8xf32>
    %54 = vector.shape_cast %53 : vector<8xf32> to vector<8x1xf32>
    %55 = vector.broadcast %54 : vector<8x1xf32> to vector<8x8xf32>
    %56 = arith.subf %52, %55 : vector<8x8xf32>
    %57 = math.exp %56 : vector<8x8xf32>
    %cst_26 = arith.constant dense<0.000000e+00> : vector<8xf32>
    %58 = vector.multi_reduction <add>, %57, %cst_26 [1] : vector<8x8xf32> to vector<8xf32>
    %59 = vector.shape_cast %58 : vector<8xf32> to vector<8x1xf32>
    %60 = tpu.reciprocal %59 {approx = true} : vector<8x1xf32> -> vector<8x1xf32>
    %61 = vector.broadcast %60 : vector<8x1xf32> to vector<8x8xf32>
    %62 = arith.mulf %57, %61 : vector<8x8xf32>
    %63 = arith.truncf %62 : vector<8x8xf32> to vector<8x8xbf16>
    %64 = vector.extract_strided_slice %24 {offsets = [0, 8], sizes = [8, 8], strides = [1, 1]} : vector<8x32xbf16> to vector<8x8xbf16>
    %cst_27 = arith.constant dense<0.000000e+00> : vector<8x8xf32>
    %65 = tpu.matmul %63, %64, %cst_27 {dimension_numbers = #tpu.dot_dimension_numbers<[1], [0], [0], [1], [0, 0, 1, 1], [], []>} : vector<8x8xbf16>, vector<8x8xbf16>, vector<8x8xf32> -> vector<8x8xf32>
    %c0_28 = arith.constant 0 : index
    %c8 = arith.constant 8 : index
    %66 = vector.load %arg17[%c0_28, %c8] : memref<8x32xf32, #tpu.memory_space<vmem>>, vector<8x8xf32>
    tpu.vector_store %arg17[%c0_28, %c8], %65 {strides = array<i32>} : memref<8x32xf32, #tpu.memory_space<vmem>>, vector<8x8xf32>,
    %67 = vector.extract_strided_slice %22 {offsets = [0, 16], sizes = [8, 8], strides = [1, 1]} : vector<8x32xbf16> to vector<8x8xbf16>
    %68 = vector.extract_strided_slice %23 {offsets = [0, 16], sizes = [8, 8], strides = [1, 1]} : vector<8x32xbf16> to vector<8x8xbf16>
    %cst_29 = arith.constant dense<0.000000e+00> : vector<8x8xf32>
    %69 = tpu.matmul %67, %68, %cst_29 {dimension_numbers = #tpu.dot_dimension_numbers<[1], [1], [0], [0], [0, 0, 1, 0], [], []>} : vector<8x8xbf16>, vector<8x8xbf16>, vector<8x8xf32> -> vector<8x8xf32>
    %cst_30 = arith.constant 0.353553385 : f32
    %70 = vector.broadcast %cst_30 : f32 to vector<8x8xf32>
    %71 = arith.mulf %69, %70 : vector<8x8xf32>
    %cst_31 = arith.constant -1.000000e+09 : f32
    %72 = vector.broadcast %cst_31 : f32 to vector<8x8xf32>
    %73 = arith.select %13, %71, %72 : vector<8x8xi1>, vector<8x8xf32>
    %cst_32 = arith.constant dense<0xFF800000> : vector<8xf32>
    %74 = vector.multi_reduction <maximumf>, %73, %cst_32 [1] : vector<8x8xf32> to vector<8xf32>
    %75 = vector.shape_cast %74 : vector<8xf32> to vector<8x1xf32>
    %76 = vector.broadcast %75 : vector<8x1xf32> to vector<8x8xf32>
    %77 = arith.subf %73, %76 : vector<8x8xf32>
    %78 = math.exp %77 : vector<8x8xf32>
    %cst_33 = arith.constant dense<0.000000e+00> : vector<8xf32>
    %79 = vector.multi_reduction <add>, %78, %cst_33 [1] : vector<8x8xf32> to vector<8xf32>
    %80 = vector.shape_cast %79 : vector<8xf32> to vector<8x1xf32>
    %81 = tpu.reciprocal %80 {approx = true} : vector<8x1xf32> -> vector<8x1xf32>
    %82 = vector.broadcast %81 : vector<8x1xf32> to vector<8x8xf32>
    %83 = arith.mulf %78, %82 : vector<8x8xf32>
    %84 = arith.truncf %83 : vector<8x8xf32> to vector<8x8xbf16>
    %85 = vector.extract_strided_slice %24 {offsets = [0, 16], sizes = [8, 8], strides = [1, 1]} : vector<8x32xbf16> to vector<8x8xbf16>
    %cst_34 = arith.constant dense<0.000000e+00> : vector<8x8xf32>
    %86 = tpu.matmul %84, %85, %cst_34 {dimension_numbers = #tpu.dot_dimension_numbers<[1], [0], [0], [1], [0, 0, 1, 1], [], []>} : vector<8x8xbf16>, vector<8x8xbf16>, vector<8x8xf32> -> vector<8x8xf32>
    %c0_35 = arith.constant 0 : index
    %c16 = arith.constant 16 : index
    %87 = vector.load %arg17[%c0_35, %c16] : memref<8x32xf32, #tpu.memory_space<vmem>>, vector<8x8xf32>
    tpu.vector_store %arg17[%c0_35, %c16], %86 {strides = array<i32>} : memref<8x32xf32, #tpu.memory_space<vmem>>, vector<8x8xf32>,
    %88 = vector.extract_strided_slice %22 {offsets = [0, 24], sizes = [8, 8], strides = [1, 1]} : vector<8x32xbf16> to vector<8x8xbf16>
    %89 = vector.extract_strided_slice %23 {offsets = [0, 24], sizes = [8, 8], strides = [1, 1]} : vector<8x32xbf16> to vector<8x8xbf16>
    %cst_36 = arith.constant dense<0.000000e+00> : vector<8x8xf32>
    %90 = tpu.matmul %88, %89, %cst_36 {dimension_numbers = #tpu.dot_dimension_numbers<[1], [1], [0], [0], [0, 0, 1, 0], [], []>} : vector<8x8xbf16>, vector<8x8xbf16>, vector<8x8xf32> -> vector<8x8xf32>
    %cst_37 = arith.constant 0.353553385 : f32
    %91 = vector.broadcast %cst_37 : f32 to vector<8x8xf32>
    %92 = arith.mulf %90, %91 : vector<8x8xf32>
    %cst_38 = arith.constant -1.000000e+09 : f32
    %93 = vector.broadcast %cst_38 : f32 to vector<8x8xf32>
    %94 = arith.select %13, %92, %93 : vector<8x8xi1>, vector<8x8xf32>
    %cst_39 = arith.constant dense<0xFF800000> : vector<8xf32>
    %95 = vector.multi_reduction <maximumf>, %94, %cst_39 [1] : vector<8x8xf32> to vector<8xf32>
    %96 = vector.shape_cast %95 : vector<8xf32> to vector<8x1xf32>
    %97 = vector.broadcast %96 : vector<8x1xf32> to vector<8x8xf32>
    %98 = arith.subf %94, %97 : vector<8x8xf32>
    %99 = math.exp %98 : vector<8x8xf32>
    %cst_40 = arith.constant dense<0.000000e+00> : vector<8xf32>
    %100 = vector.multi_reduction <add>, %99, %cst_40 [1] : vector<8x8xf32> to vector<8xf32>
    %101 = vector.shape_cast %100 : vector<8xf32> to vector<8x1xf32>
    %102 = tpu.reciprocal %101 {approx = true} : vector<8x1xf32> -> vector<8x1xf32>
    %103 = vector.broadcast %102 : vector<8x1xf32> to vector<8x8xf32>
    %104 = arith.mulf %99, %103 : vector<8x8xf32>
    %105 = arith.truncf %104 : vector<8x8xf32> to vector<8x8xbf16>
    %106 = vector.extract_strided_slice %24 {offsets = [0, 24], sizes = [8, 8], strides = [1, 1]} : vector<8x32xbf16> to vector<8x8xbf16>
    %cst_41 = arith.constant dense<0.000000e+00> : vector<8x8xf32>
    %107 = tpu.matmul %105, %106, %cst_41 {dimension_numbers = #tpu.dot_dimension_numbers<[1], [0], [0], [1], [0, 0, 1, 1], [], []>} : vector<8x8xbf16>, vector<8x8xbf16>, vector<8x8xf32> -> vector<8x8xf32>
    %c0_42 = arith.constant 0 : index
    %c24 = arith.constant 24 : index
    %108 = vector.load %arg17[%c0_42, %c24] : memref<8x32xf32, #tpu.memory_space<vmem>>, vector<8x8xf32>
    tpu.vector_store %arg17[%c0_42, %c24], %107 {strides = array<i32>} : memref<8x32xf32, #tpu.memory_space<vmem>>, vector<8x8xf32>,
    %c0_43 = arith.constant 0 : index
    %c0_44 = arith.constant 0 : index
    %109 = vector.load %arg17[%c0_43, %c0_44] : memref<8x32xf32, #tpu.memory_space<vmem>>, vector<8x32xf32>
    %110 = arith.truncf %109 : vector<8x32xf32> to vector<8x32xbf16>
    %c0_45 = arith.constant 0 : index
    %c0_46 = arith.constant 0 : index
    %111 = vector.load %arg6[%c0_45, %c0_46] : memref<32x32xbf16, #tpu.memory_space<vmem>>, vector<32x32xbf16>
    %cst_47 = arith.constant dense<0.000000e+00> : vector<8x32xf32>
    %112 = tpu.matmul %110, %111, %cst_47 {dimension_numbers = #tpu.dot_dimension_numbers<[1], [0], [0], [1], [0, 0, 1, 1], [], []>} : vector<8x32xbf16>, vector<32x32xbf16>, vector<8x32xf32> -> vector<8x32xf32>
    %c0_48 = arith.constant 0 : index
    %c0_49 = arith.constant 0 : index
    %113 = vector.load %arg7[%c0_48, %c0_49] : memref<1x32xf32, #tpu.memory_space<vmem>>, vector<1x32xf32>
    %114 = vector.broadcast %113 : vector<1x32xf32> to vector<8x32xf32>
    %115 = arith.addf %112, %114 : vector<8x32xf32>
    %116 = arith.addf %2, %115 : vector<8x32xf32>
    %c0_50 = arith.constant 0 : index
    %c0_51 = arith.constant 0 : index
    %117 = vector.load %arg8[%c0_50, %c0_51] : memref<1x32xf32, #tpu.memory_space<vmem>>, vector<1x32xf32>
    %c0_52 = arith.constant 0 : index
    %c0_53 = arith.constant 0 : index
    %118 = vector.load %arg9[%c0_52, %c0_53] : memref<1x32xf32, #tpu.memory_space<vmem>>, vector<1x32xf32>
    %cst_54 = arith.constant dense<0.000000e+00> : vector<8xf32>
    %119 = vector.multi_reduction <add>, %116, %cst_54 [1] : vector<8x32xf32> to vector<8xf32>
    %120 = vector.shape_cast %119 : vector<8xf32> to vector<8x1xf32>
    %cst_55 = arith.constant 3.200000e+01 : f32
    %121 = vector.broadcast %cst_55 : f32 to vector<8x1xf32>
    %122 = arith.divf %120, %121 : vector<8x1xf32>
    %123 = vector.broadcast %122 : vector<8x1xf32> to vector<8x32xf32>
    %124 = arith.subf %116, %123 : vector<8x32xf32>
    %125 = arith.mulf %124, %124 : vector<8x32xf32>
    %cst_56 = arith.constant dense<0.000000e+00> : vector<8xf32>
    %126 = vector.multi_reduction <add>, %125, %cst_56 [1] : vector<8x32xf32> to vector<8xf32>
    %127 = vector.shape_cast %126 : vector<8xf32> to vector<8x1xf32>
    %cst_57 = arith.constant 3.200000e+01 : f32
    %128 = vector.broadcast %cst_57 : f32 to vector<8x1xf32>
    %129 = arith.divf %127, %128 : vector<8x1xf32>
    %130 = vector.broadcast %122 : vector<8x1xf32> to vector<8x32xf32>
    %131 = arith.subf %116, %130 : vector<8x32xf32>
    %cst_58 = arith.constant 9.99999974E-6 : f32
    %132 = vector.broadcast %cst_58 : f32 to vector<8x1xf32>
    %133 = arith.addf %129, %132 : vector<8x1xf32>
    %134 = math.rsqrt %133 : vector<8x1xf32>
    %135 = vector.broadcast %134 : vector<8x1xf32> to vector<8x32xf32>
    %136 = arith.mulf %131, %135 : vector<8x32xf32>
    %137 = vector.broadcast %117 : vector<1x32xf32> to vector<8x32xf32>
    %138 = arith.mulf %136, %137 : vector<8x32xf32>
    %139 = vector.broadcast %118 : vector<1x32xf32> to vector<8x32xf32>
    %140 = arith.addf %138, %139 : vector<8x32xf32>
    %141 = arith.truncf %140 : vector<8x32xf32> to vector<8x32xbf16>
    %c0_59 = arith.constant 0 : index
    %c0_60 = arith.constant 0 : index
    %142 = vector.load %arg10[%c0_59, %c0_60] : memref<32x64xbf16, #tpu.memory_space<vmem>>, vector<32x64xbf16>
    %cst_61 = arith.constant dense<0.000000e+00> : vector<8x64xf32>
    %143 = tpu.matmul %141, %142, %cst_61 {dimension_numbers = #tpu.dot_dimension_numbers<[1], [0], [0], [1], [0, 0, 1, 1], [], []>} : vector<8x32xbf16>, vector<32x64xbf16>, vector<8x64xf32> -> vector<8x64xf32>
    %c0_62 = arith.constant 0 : index
    %c0_63 = arith.constant 0 : index
    %144 = vector.load %arg11[%c0_62, %c0_63] : memref<1x64xf32, #tpu.memory_space<vmem>>, vector<1x64xf32>
    %145 = vector.broadcast %144 : vector<1x64xf32> to vector<8x64xf32>
    %146 = arith.addf %143, %145 : vector<8x64xf32>
    %cst_64 = arith.constant 0.000000e+00 : f32
    %147 = vector.broadcast %cst_64 : f32 to vector<8x64xf32>
    %148 = arith.maximumf %146, %147 : vector<8x64xf32>
    %149 = arith.truncf %148 : vector<8x64xf32> to vector<8x64xbf16>
    %c0_65 = arith.constant 0 : index
    %c0_66 = arith.constant 0 : index
    %150 = vector.load %arg12[%c0_65, %c0_66] : memref<64x32xbf16, #tpu.memory_space<vmem>>, vector<64x32xbf16>
    %cst_67 = arith.constant dense<0.000000e+00> : vector<8x32xf32>
    %151 = tpu.matmul %149, %150, %cst_67 {dimension_numbers = #tpu.dot_dimension_numbers<[1], [0], [0], [1], [0, 0, 1, 1], [], []>} : vector<8x64xbf16>, vector<64x32xbf16>, vector<8x32xf32> -> vector<8x32xf32>
    %c0_68 = arith.constant 0 : index
    %c0_69 = arith.constant 0 : index
    %152 = vector.load %arg13[%c0_68, %c0_69] : memref<1x32xf32, #tpu.memory_space<vmem>>, vector<1x32xf32>
    %153 = vector.broadcast %152 : vector<1x32xf32> to vector<8x32xf32>
    %154 = arith.addf %151, %153 : vector<8x32xf32>
    %155 = arith.addf %140, %154 : vector<8x32xf32>
    %c0_70 = arith.constant 0 : index
    %c0_71 = arith.constant 0 : index
    %156 = vector.load %arg14[%c0_70, %c0_71] : memref<1x32xf32, #tpu.memory_space<vmem>>, vector<1x32xf32>
    %c0_72 = arith.constant 0 : index
    %c0_73 = arith.constant 0 : index
    %157 = vector.load %arg15[%c0_72, %c0_73] : memref<1x32xf32, #tpu.memory_space<vmem>>, vector<1x32xf32>
    %cst_74 = arith.constant dense<0.000000e+00> : vector<8xf32>
    %158 = vector.multi_reduction <add>, %155, %cst_74 [1] : vector<8x32xf32> to vector<8xf32>
    %159 = vector.shape_cast %158 : vector<8xf32> to vector<8x1xf32>
    %cst_75 = arith.constant 3.200000e+01 : f32
    %160 = vector.broadcast %cst_75 : f32 to vector<8x1xf32>
    %161 = arith.divf %159, %160 : vector<8x1xf32>
    %162 = vector.broadcast %161 : vector<8x1xf32> to vector<8x32xf32>
    %163 = arith.subf %155, %162 : vector<8x32xf32>
    %164 = arith.mulf %163, %163 : vector<8x32xf32>
    %cst_76 = arith.constant dense<0.000000e+00> : vector<8xf32>
    %165 = vector.multi_reduction <add>, %164, %cst_76 [1] : vector<8x32xf32> to vector<8xf32>
    %166 = vector.shape_cast %165 : vector<8xf32> to vector<8x1xf32>
    %cst_77 = arith.constant 3.200000e+01 : f32
    %167 = vector.broadcast %cst_77 : f32 to vector<8x1xf32>
    %168 = arith.divf %166, %167 : vector<8x1xf32>
    %169 = vector.broadcast %161 : vector<8x1xf32> to vector<8x32xf32>
    %170 = arith.subf %155, %169 : vector<8x32xf32>
    %cst_78 = arith.constant 9.99999974E-6 : f32
    %171 = vector.broadcast %cst_78 : f32 to vector<8x1xf32>
    %172 = arith.addf %168, %171 : vector<8x1xf32>
    %173 = math.rsqrt %172 : vector<8x1xf32>
    %174 = vector.broadcast %173 : vector<8x1xf32> to vector<8x32xf32>
    %175 = arith.mulf %170, %174 : vector<8x32xf32>
    %176 = vector.broadcast %156 : vector<1x32xf32> to vector<8x32xf32>
    %177 = arith.mulf %175, %176 : vector<8x32xf32>
    %178 = vector.broadcast %157 : vector<1x32xf32> to vector<8x32xf32>
    %179 = arith.addf %177, %178 : vector<8x32xf32>
    %180 = arith.truncf %179 : vector<8x32xf32> to vector<8x32xbf16>
    %c0_79 = arith.constant 0 : index
    %c0_80 = arith.constant 0 : index
    %c0_81 = arith.constant 0 : index
    %181 = vector.load %arg16[%c0_79, %c0_80, %c0_81] : memref<1x8x32xbf16, #tpu.memory_space<vmem>>, vector<1x8x32xbf16>
    %182 = vector.shape_cast %181 : vector<1x8x32xbf16> to vector<8x32xbf16>
    %183 = vector.shape_cast %180 : vector<8x32xbf16> to vector<1x8x32xbf16>
    tpu.vector_store %arg16[%c0_79, %c0_80, %c0_81], %183 {strides = array<i32>} : memref<1x8x32xbf16, #tpu.memory_space<vmem>>, vector<1x8x32xbf16>,
    return
  }
  func.func @transform_0(%arg0: i32) -> (i32, i32, i32) {
    %c0_i32 = arith.constant 0 : i32
    %c0_i32_0 = arith.constant 0 : i32
    %c0_i32_1 = arith.constant 0 : i32
    return %arg0, %c0_i32, %c0_i32_0 : i32, i32, i32
  }
  func.func @transform_1(%arg0: i32) -> (i32, i32, i32) {
    %c0_i32 = arith.constant 0 : i32
    %c0_i32_0 = arith.constant 0 : i32
    %c0_i32_1 = arith.constant 0 : i32
    return %arg0, %c0_i32, %c0_i32_0 : i32, i32, i32
  }
  func.func @transform_2(%arg0: i32) -> (i32, i32, i32) {
    %c0_i32 = arith.constant 0 : i32
    %c0_i32_0 = arith.constant 0 : i32
    %c0_i32_1 = arith.constant 0 : i32
    return %arg0, %c0_i32, %c0_i32_0 : i32, i32, i32
  }
  func.func @transform_3(%arg0: i32) -> (i32, i32) {
    %c0_i32 = arith.constant 0 : i32
    %c0_i32_0 = arith.constant 0 : i32
    %c0_i32_1 = arith.constant 0 : i32
    return %c0_i32, %c0_i32_0 : i32, i32
  }
  func.func @transform_4(%arg0: i32) -> (i32, i32) {
    %c0_i32 = arith.constant 0 : i32
    %c0_i32_0 = arith.constant 0 : i32
    %c0_i32_1 = arith.constant 0 : i32
    return %c0_i32, %c0_i32_0 : i32, i32
  }
  func.func @transform_5(%arg0: i32) -> (i32, i32) {
    %c0_i32 = arith.constant 0 : i32
    %c0_i32_0 = arith.constant 0 : i32
    %c0_i32_1 = arith.constant 0 : i32
    return %c0_i32, %c0_i32_0 : i32, i32
  }
  func.func @transform_6(%arg0: i32) -> (i32, i32) {
    %c0_i32 = arith.constant 0 : i32
    %c0_i32_0 = arith.constant 0 : i32
    %c0_i32_1 = arith.constant 0 : i32
    return %c0_i32, %c0_i32_0 : i32, i32
  }
  func.func @transform_7(%arg0: i32) -> (i32, i32) {
    %c0_i32 = arith.constant 0 : i32
    %c0_i32_0 = arith.constant 0 : i32
    %c0_i32_1 = arith.constant 0 : i32
    return %c0_i32, %c0_i32_0 : i32, i32
  }
  func.func @transform_8(%arg0: i32) -> (i32, i32) {
    %c0_i32 = arith.constant 0 : i32
    %c0_i32_0 = arith.constant 0 : i32
    %c0_i32_1 = arith.constant 0 : i32
    return %c0_i32, %c0_i32_0 : i32, i32
  }
  func.func @transform_9(%arg0: i32) -> (i32, i32) {
    %c0_i32 = arith.constant 0 : i32
    %c0_i32_0 = arith.constant 0 : i32
    %c0_i32_1 = arith.constant 0 : i32
    return %c0_i32, %c0_i32_0 : i32, i32
  }
  func.func @transform_10(%arg0: i32) -> (i32, i32) {
    %c0_i32 = arith.constant 0 : i32
    %c0_i32_0 = arith.constant 0 : i32
    %c0_i32_1 = arith.constant 0 : i32
    return %c0_i32, %c0_i32_0 : i32, i32
  }
  func.func @transform_11(%arg0: i32) -> (i32, i32) {
    %c0_i32 = arith.constant 0 : i32
    %c0_i32_0 = arith.constant 0 : i32
    %c0_i32_1 = arith.constant 0 : i32
    return %c0_i32, %c0_i32_0 : i32, i32
  }
  func.func @transform_12(%arg0: i32) -> (i32, i32) {
    %c0_i32 = arith.constant 0 : i32
    %c0_i32_0 = arith.constant 0 : i32
    %c0_i32_1 = arith.constant 0 : i32
    return %c0_i32, %c0_i32_0 : i32, i32
  }
  func.func @transform_13(%arg0: i32) -> (i32, i32) {
    %c0_i32 = arith.constant 0 : i32
    %c0_i32_0 = arith.constant 0 : i32
    %c0_i32_1 = arith.constant 0 : i32
    return %c0_i32, %c0_i32_0 : i32, i32
  }
  func.func @transform_14(%arg0: i32) -> (i32, i32) {
    %c0_i32 = arith.constant 0 : i32
    %c0_i32_0 = arith.constant 0 : i32
    %c0_i32_1 = arith.constant 0 : i32
    return %c0_i32, %c0_i32_0 : i32, i32
  }
  func.func @transform_15(%arg0: i32) -> (i32, i32, i32) {
    %c0_i32 = arith.constant 0 : i32
    %c0_i32_0 = arith.constant 0 : i32
    %c0_i32_1 = arith.constant 0 : i32
    return %arg0, %c0_i32, %c0_i32_0 : i32, i32, i32
  }
}

module attributes {stable_mosaic.version = 11 : i64} {
  func.func @_decoder_layer_kernel(%arg0: i32, %arg1: memref<1x8x1xf32, #tpu.memory_space<vmem>>, %arg2: memref<1x1x8xf32, #tpu.memory_space<vmem>>, %arg3: memref<1x1x8xf32, #tpu.memory_space<vmem>>, %arg4: memref<1x8x32xbf16, #tpu.memory_space<vmem>>, %arg5: memref<1x8x32xbf16, #tpu.memory_space<vmem>>, %arg6: memref<32x96xbf16, #tpu.memory_space<vmem>>, %arg7: memref<1x96xf32, #tpu.memory_space<vmem>>, %arg8: memref<32x32xbf16, #tpu.memory_space<vmem>>, %arg9: memref<1x32xf32, #tpu.memory_space<vmem>>, %arg10: memref<1x32xf32, #tpu.memory_space<vmem>>, %arg11: memref<1x32xf32, #tpu.memory_space<vmem>>, %arg12: memref<32x96xbf16, #tpu.memory_space<vmem>>, %arg13: memref<1x96xf32, #tpu.memory_space<vmem>>, %arg14: memref<32x32xbf16, #tpu.memory_space<vmem>>, %arg15: memref<1x32xf32, #tpu.memory_space<vmem>>, %arg16: memref<1x32xf32, #tpu.memory_space<vmem>>, %arg17: memref<1x32xf32, #tpu.memory_space<vmem>>, %arg18: memref<32x64xbf16, #tpu.memory_space<vmem>>, %arg19: memref<1x64xf32, #tpu.memory_space<vmem>>, %arg20: memref<64x32xbf16, #tpu.memory_space<vmem>>, %arg21: memref<1x32xf32, #tpu.memory_space<vmem>>, %arg22: memref<1x32xf32, #tpu.memory_space<vmem>>, %arg23: memref<1x32xf32, #tpu.memory_space<vmem>>, %arg24: memref<1x8x32xbf16, #tpu.memory_space<vmem>>, %arg25: memref<8x32xf32, #tpu.memory_space<vmem>>) attributes {dimension_semantics = [#tpu.dimension_semantics<parallel>], iteration_bounds = array<i64: 2>, scalar_prefetch = 0 : i64, scratch_operands = 1 : i64, tpu.core_type = #tpu.core_type<tc>, window_params = [{transform_indices = @transform_0, window_bounds = array<i64: 1, 8, 1>}, {transform_indices = @transform_1, window_bounds = array<i64: 1, 1, 8>}, {transform_indices = @transform_2, window_bounds = array<i64: 1, 1, 8>}, {transform_indices = @transform_3, window_bounds = array<i64: 1, 8, 32>}, {transform_indices = @transform_4, window_bounds = array<i64: 1, 8, 32>}, {pipeline_mode = #tpu.pipeline_mode<synchronous>, transform_indices = @transform_5, window_bounds = array<i64: 32, 96>}, {pipeline_mode = #tpu.pipeline_mode<synchronous>, transform_indices = @transform_6, window_bounds = array<i64: 1, 96>}, {pipeline_mode = #tpu.pipeline_mode<synchronous>, transform_indices = @transform_7, window_bounds = array<i64: 32, 32>}, {pipeline_mode = #tpu.pipeline_mode<synchronous>, transform_indices = @transform_8, window_bounds = array<i64: 1, 32>}, {pipeline_mode = #tpu.pipeline_mode<synchronous>, transform_indices = @transform_9, window_bounds = array<i64: 1, 32>}, {pipeline_mode = #tpu.pipeline_mode<synchronous>, transform_indices = @transform_10, window_bounds = array<i64: 1, 32>}, {pipeline_mode = #tpu.pipeline_mode<synchronous>, transform_indices = @transform_11, window_bounds = array<i64: 32, 96>}, {pipeline_mode = #tpu.pipeline_mode<synchronous>, transform_indices = @transform_12, window_bounds = array<i64: 1, 96>}, {pipeline_mode = #tpu.pipeline_mode<synchronous>, transform_indices = @transform_13, window_bounds = array<i64: 32, 32>}, {pipeline_mode = #tpu.pipeline_mode<synchronous>, transform_indices = @transform_14, window_bounds = array<i64: 1, 32>}, {pipeline_mode = #tpu.pipeline_mode<synchronous>, transform_indices = @transform_15, window_bounds = array<i64: 1, 32>}, {pipeline_mode = #tpu.pipeline_mode<synchronous>, transform_indices = @transform_16, window_bounds = array<i64: 1, 32>}, {pipeline_mode = #tpu.pipeline_mode<synchronous>, transform_indices = @transform_17, window_bounds = array<i64: 32, 64>}, {pipeline_mode = #tpu.pipeline_mode<synchronous>, transform_indices = @transform_18, window_bounds = array<i64: 1, 64>}, {pipeline_mode = #tpu.pipeline_mode<synchronous>, transform_indices = @transform_19, window_bounds = array<i64: 64, 32>}, {pipeline_mode = #tpu.pipeline_mode<synchronous>, transform_indices = @transform_20, window_bounds = array<i64: 1, 32>}, {pipeline_mode = #tpu.pipeline_mode<synchronous>, transform_indices = @transform_21, window_bounds = array<i64: 1, 32>}, {pipeline_mode = #tpu.pipeline_mode<synchronous>, transform_indices = @transform_22, window_bounds = array<i64: 1, 32>}, {transform_indices = @transform_23, window_bounds = array<i64: 1, 8, 32>}]} {
    %c0 = arith.constant 0 : index
    %c0_0 = arith.constant 0 : index
    %c0_1 = arith.constant 0 : index
    %0 = vector.load %arg4[%c0, %c0_0, %c0_1] : memref<1x8x32xbf16, #tpu.memory_space<vmem>>, vector<1x8x32xbf16>
    %1 = vector.shape_cast %0 : vector<1x8x32xbf16> to vector<8x32xbf16>
    %2 = arith.extf %1 : vector<8x32xbf16> to vector<8x32xf32>
    %c0_2 = arith.constant 0 : index
    %c0_3 = arith.constant 0 : index
    %c0_4 = arith.constant 0 : index
    %3 = vector.load %arg5[%c0_2, %c0_3, %c0_4] : memref<1x8x32xbf16, #tpu.memory_space<vmem>>, vector<1x8x32xbf16>
    %4 = vector.shape_cast %3 : vector<1x8x32xbf16> to vector<8x32xbf16>
    %5 = tpu.iota {dimensions = array<i32: 0>} : vector<8x8xi32>
    %6 = tpu.iota {dimensions = array<i32: 1>} : vector<8x8xi32>
    %c0_5 = arith.constant 0 : index
    %c0_6 = arith.constant 0 : index
    %c0_7 = arith.constant 0 : index
    %7 = vector.load %arg1[%c0_5, %c0_6, %c0_7] : memref<1x8x1xf32, #tpu.memory_space<vmem>>, vector<1x8x1xf32>
    %8 = vector.shape_cast %7 : vector<1x8x1xf32> to vector<8x1xf32>
    %cst = arith.constant 5.000000e-01 : f32
    %9 = vector.broadcast %cst : f32 to vector<8x1xf32>
    %10 = arith.cmpf ogt, %8, %9 : vector<8x1xf32>
    %c0_8 = arith.constant 0 : index
    %c0_9 = arith.constant 0 : index
    %c0_10 = arith.constant 0 : index
    %11 = vector.load %arg2[%c0_8, %c0_9, %c0_10] : memref<1x1x8xf32, #tpu.memory_space<vmem>>, vector<1x1x8xf32>
    %12 = vector.shape_cast %11 : vector<1x1x8xf32> to vector<1x8xf32>
    %cst_11 = arith.constant 5.000000e-01 : f32
    %13 = vector.broadcast %cst_11 : f32 to vector<1x8xf32>
    %14 = arith.cmpf ogt, %12, %13 : vector<1x8xf32>
    %15 = vector.broadcast %10 : vector<8x1xi1> to vector<8x8xi1>
    %16 = vector.broadcast %14 : vector<1x8xi1> to vector<8x8xi1>
    %17 = arith.andi %15, %16 : vector<8x8xi1>
    %18 = arith.cmpi sle, %6, %5 : vector<8x8xi32>
    %19 = arith.andi %17, %18 : vector<8x8xi1>
    %c0_12 = arith.constant 0 : index
    %c0_13 = arith.constant 0 : index
    %20 = vector.load %arg6[%c0_12, %c0_13] : memref<32x96xbf16, #tpu.memory_space<vmem>>, vector<32x96xbf16>
    %cst_14 = arith.constant dense<0.000000e+00> : vector<8x96xf32>
    %21 = tpu.matmul %1, %20, %cst_14 {dimension_numbers = #tpu.dot_dimension_numbers<[1], [0], [0], [1], [0, 0, 1, 1], [], []>} : vector<8x32xbf16>, vector<32x96xbf16>, vector<8x96xf32> -> vector<8x96xf32>
    %c0_15 = arith.constant 0 : index
    %c0_16 = arith.constant 0 : index
    %22 = vector.load %arg7[%c0_15, %c0_16] : memref<1x96xf32, #tpu.memory_space<vmem>>, vector<1x96xf32>
    %23 = vector.broadcast %22 : vector<1x96xf32> to vector<8x96xf32>
    %24 = arith.addf %21, %23 : vector<8x96xf32>
    %25 = vector.extract_strided_slice %24 {offsets = [0, 0], sizes = [8, 32], strides = [1, 1]} : vector<8x96xf32> to vector<8x32xf32>
    %26 = vector.extract_strided_slice %24 {offsets = [0, 32], sizes = [8, 32], strides = [1, 1]} : vector<8x96xf32> to vector<8x32xf32>
    %27 = vector.extract_strided_slice %24 {offsets = [0, 64], sizes = [8, 32], strides = [1, 1]} : vector<8x96xf32> to vector<8x32xf32>
    %28 = arith.truncf %25 : vector<8x32xf32> to vector<8x32xbf16>
    %29 = arith.truncf %26 : vector<8x32xf32> to vector<8x32xbf16>
    %30 = arith.truncf %27 : vector<8x32xf32> to vector<8x32xbf16>
    %31 = vector.extract_strided_slice %28 {offsets = [0, 0], sizes = [8, 8], strides = [1, 1]} : vector<8x32xbf16> to vector<8x8xbf16>
    %32 = vector.extract_strided_slice %29 {offsets = [0, 0], sizes = [8, 8], strides = [1, 1]} : vector<8x32xbf16> to vector<8x8xbf16>
    %cst_17 = arith.constant dense<0.000000e+00> : vector<8x8xf32>
    %33 = tpu.matmul %31, %32, %cst_17 {dimension_numbers = #tpu.dot_dimension_numbers<[1], [1], [0], [0], [0, 0, 1, 0], [], []>} : vector<8x8xbf16>, vector<8x8xbf16>, vector<8x8xf32> -> vector<8x8xf32>
    %cst_18 = arith.constant 0.353553385 : f32
    %34 = vector.broadcast %cst_18 : f32 to vector<8x8xf32>
    %35 = arith.mulf %33, %34 : vector<8x8xf32>
    %cst_19 = arith.constant -1.000000e+09 : f32
    %36 = vector.broadcast %cst_19 : f32 to vector<8x8xf32>
    %37 = arith.select %19, %35, %36 : vector<8x8xi1>, vector<8x8xf32>
    %cst_20 = arith.constant dense<0xFF800000> : vector<8xf32>
    %38 = vector.multi_reduction <maximumf>, %37, %cst_20 [1] : vector<8x8xf32> to vector<8xf32>
    %39 = vector.shape_cast %38 : vector<8xf32> to vector<8x1xf32>
    %40 = vector.broadcast %39 : vector<8x1xf32> to vector<8x8xf32>
    %41 = arith.subf %37, %40 : vector<8x8xf32>
    %42 = math.exp %41 : vector<8x8xf32>
    %cst_21 = arith.constant dense<0.000000e+00> : vector<8xf32>
    %43 = vector.multi_reduction <add>, %42, %cst_21 [1] : vector<8x8xf32> to vector<8xf32>
    %44 = vector.shape_cast %43 : vector<8xf32> to vector<8x1xf32>
    %45 = tpu.reciprocal %44 {approx = true} : vector<8x1xf32> -> vector<8x1xf32>
    %46 = vector.broadcast %45 : vector<8x1xf32> to vector<8x8xf32>
    %47 = arith.mulf %42, %46 : vector<8x8xf32>
    %48 = arith.truncf %47 : vector<8x8xf32> to vector<8x8xbf16>
    %49 = vector.extract_strided_slice %30 {offsets = [0, 0], sizes = [8, 8], strides = [1, 1]} : vector<8x32xbf16> to vector<8x8xbf16>
    %cst_22 = arith.constant dense<0.000000e+00> : vector<8x8xf32>
    %50 = tpu.matmul %48, %49, %cst_22 {dimension_numbers = #tpu.dot_dimension_numbers<[1], [0], [0], [1], [0, 0, 1, 1], [], []>} : vector<8x8xbf16>, vector<8x8xbf16>, vector<8x8xf32> -> vector<8x8xf32>
    %c0_23 = arith.constant 0 : index
    %c0_24 = arith.constant 0 : index
    %51 = vector.load %arg25[%c0_23, %c0_24] : memref<8x32xf32, #tpu.memory_space<vmem>>, vector<8x8xf32>
    tpu.vector_store %arg25[%c0_23, %c0_24], %50 {strides = array<i32>} : memref<8x32xf32, #tpu.memory_space<vmem>>, vector<8x8xf32>,
    %52 = vector.extract_strided_slice %28 {offsets = [0, 8], sizes = [8, 8], strides = [1, 1]} : vector<8x32xbf16> to vector<8x8xbf16>
    %53 = vector.extract_strided_slice %29 {offsets = [0, 8], sizes = [8, 8], strides = [1, 1]} : vector<8x32xbf16> to vector<8x8xbf16>
    %cst_25 = arith.constant dense<0.000000e+00> : vector<8x8xf32>
    %54 = tpu.matmul %52, %53, %cst_25 {dimension_numbers = #tpu.dot_dimension_numbers<[1], [1], [0], [0], [0, 0, 1, 0], [], []>} : vector<8x8xbf16>, vector<8x8xbf16>, vector<8x8xf32> -> vector<8x8xf32>
    %cst_26 = arith.constant 0.353553385 : f32
    %55 = vector.broadcast %cst_26 : f32 to vector<8x8xf32>
    %56 = arith.mulf %54, %55 : vector<8x8xf32>
    %cst_27 = arith.constant -1.000000e+09 : f32
    %57 = vector.broadcast %cst_27 : f32 to vector<8x8xf32>
    %58 = arith.select %19, %56, %57 : vector<8x8xi1>, vector<8x8xf32>
    %cst_28 = arith.constant dense<0xFF800000> : vector<8xf32>
    %59 = vector.multi_reduction <maximumf>, %58, %cst_28 [1] : vector<8x8xf32> to vector<8xf32>
    %60 = vector.shape_cast %59 : vector<8xf32> to vector<8x1xf32>
    %61 = vector.broadcast %60 : vector<8x1xf32> to vector<8x8xf32>
    %62 = arith.subf %58, %61 : vector<8x8xf32>
    %63 = math.exp %62 : vector<8x8xf32>
    %cst_29 = arith.constant dense<0.000000e+00> : vector<8xf32>
    %64 = vector.multi_reduction <add>, %63, %cst_29 [1] : vector<8x8xf32> to vector<8xf32>
    %65 = vector.shape_cast %64 : vector<8xf32> to vector<8x1xf32>
    %66 = tpu.reciprocal %65 {approx = true} : vector<8x1xf32> -> vector<8x1xf32>
    %67 = vector.broadcast %66 : vector<8x1xf32> to vector<8x8xf32>
    %68 = arith.mulf %63, %67 : vector<8x8xf32>
    %69 = arith.truncf %68 : vector<8x8xf32> to vector<8x8xbf16>
    %70 = vector.extract_strided_slice %30 {offsets = [0, 8], sizes = [8, 8], strides = [1, 1]} : vector<8x32xbf16> to vector<8x8xbf16>
    %cst_30 = arith.constant dense<0.000000e+00> : vector<8x8xf32>
    %71 = tpu.matmul %69, %70, %cst_30 {dimension_numbers = #tpu.dot_dimension_numbers<[1], [0], [0], [1], [0, 0, 1, 1], [], []>} : vector<8x8xbf16>, vector<8x8xbf16>, vector<8x8xf32> -> vector<8x8xf32>
    %c0_31 = arith.constant 0 : index
    %c8 = arith.constant 8 : index
    %72 = vector.load %arg25[%c0_31, %c8] : memref<8x32xf32, #tpu.memory_space<vmem>>, vector<8x8xf32>
    tpu.vector_store %arg25[%c0_31, %c8], %71 {strides = array<i32>} : memref<8x32xf32, #tpu.memory_space<vmem>>, vector<8x8xf32>,
    %73 = vector.extract_strided_slice %28 {offsets = [0, 16], sizes = [8, 8], strides = [1, 1]} : vector<8x32xbf16> to vector<8x8xbf16>
    %74 = vector.extract_strided_slice %29 {offsets = [0, 16], sizes = [8, 8], strides = [1, 1]} : vector<8x32xbf16> to vector<8x8xbf16>
    %cst_32 = arith.constant dense<0.000000e+00> : vector<8x8xf32>
    %75 = tpu.matmul %73, %74, %cst_32 {dimension_numbers = #tpu.dot_dimension_numbers<[1], [1], [0], [0], [0, 0, 1, 0], [], []>} : vector<8x8xbf16>, vector<8x8xbf16>, vector<8x8xf32> -> vector<8x8xf32>
    %cst_33 = arith.constant 0.353553385 : f32
    %76 = vector.broadcast %cst_33 : f32 to vector<8x8xf32>
    %77 = arith.mulf %75, %76 : vector<8x8xf32>
    %cst_34 = arith.constant -1.000000e+09 : f32
    %78 = vector.broadcast %cst_34 : f32 to vector<8x8xf32>
    %79 = arith.select %19, %77, %78 : vector<8x8xi1>, vector<8x8xf32>
    %cst_35 = arith.constant dense<0xFF800000> : vector<8xf32>
    %80 = vector.multi_reduction <maximumf>, %79, %cst_35 [1] : vector<8x8xf32> to vector<8xf32>
    %81 = vector.shape_cast %80 : vector<8xf32> to vector<8x1xf32>
    %82 = vector.broadcast %81 : vector<8x1xf32> to vector<8x8xf32>
    %83 = arith.subf %79, %82 : vector<8x8xf32>
    %84 = math.exp %83 : vector<8x8xf32>
    %cst_36 = arith.constant dense<0.000000e+00> : vector<8xf32>
    %85 = vector.multi_reduction <add>, %84, %cst_36 [1] : vector<8x8xf32> to vector<8xf32>
    %86 = vector.shape_cast %85 : vector<8xf32> to vector<8x1xf32>
    %87 = tpu.reciprocal %86 {approx = true} : vector<8x1xf32> -> vector<8x1xf32>
    %88 = vector.broadcast %87 : vector<8x1xf32> to vector<8x8xf32>
    %89 = arith.mulf %84, %88 : vector<8x8xf32>
    %90 = arith.truncf %89 : vector<8x8xf32> to vector<8x8xbf16>
    %91 = vector.extract_strided_slice %30 {offsets = [0, 16], sizes = [8, 8], strides = [1, 1]} : vector<8x32xbf16> to vector<8x8xbf16>
    %cst_37 = arith.constant dense<0.000000e+00> : vector<8x8xf32>
    %92 = tpu.matmul %90, %91, %cst_37 {dimension_numbers = #tpu.dot_dimension_numbers<[1], [0], [0], [1], [0, 0, 1, 1], [], []>} : vector<8x8xbf16>, vector<8x8xbf16>, vector<8x8xf32> -> vector<8x8xf32>
    %c0_38 = arith.constant 0 : index
    %c16 = arith.constant 16 : index
    %93 = vector.load %arg25[%c0_38, %c16] : memref<8x32xf32, #tpu.memory_space<vmem>>, vector<8x8xf32>
    tpu.vector_store %arg25[%c0_38, %c16], %92 {strides = array<i32>} : memref<8x32xf32, #tpu.memory_space<vmem>>, vector<8x8xf32>,
    %94 = vector.extract_strided_slice %28 {offsets = [0, 24], sizes = [8, 8], strides = [1, 1]} : vector<8x32xbf16> to vector<8x8xbf16>
    %95 = vector.extract_strided_slice %29 {offsets = [0, 24], sizes = [8, 8], strides = [1, 1]} : vector<8x32xbf16> to vector<8x8xbf16>
    %cst_39 = arith.constant dense<0.000000e+00> : vector<8x8xf32>
    %96 = tpu.matmul %94, %95, %cst_39 {dimension_numbers = #tpu.dot_dimension_numbers<[1], [1], [0], [0], [0, 0, 1, 0], [], []>} : vector<8x8xbf16>, vector<8x8xbf16>, vector<8x8xf32> -> vector<8x8xf32>
    %cst_40 = arith.constant 0.353553385 : f32
    %97 = vector.broadcast %cst_40 : f32 to vector<8x8xf32>
    %98 = arith.mulf %96, %97 : vector<8x8xf32>
    %cst_41 = arith.constant -1.000000e+09 : f32
    %99 = vector.broadcast %cst_41 : f32 to vector<8x8xf32>
    %100 = arith.select %19, %98, %99 : vector<8x8xi1>, vector<8x8xf32>
    %cst_42 = arith.constant dense<0xFF800000> : vector<8xf32>
    %101 = vector.multi_reduction <maximumf>, %100, %cst_42 [1] : vector<8x8xf32> to vector<8xf32>
    %102 = vector.shape_cast %101 : vector<8xf32> to vector<8x1xf32>
    %103 = vector.broadcast %102 : vector<8x1xf32> to vector<8x8xf32>
    %104 = arith.subf %100, %103 : vector<8x8xf32>
    %105 = math.exp %104 : vector<8x8xf32>
    %cst_43 = arith.constant dense<0.000000e+00> : vector<8xf32>
    %106 = vector.multi_reduction <add>, %105, %cst_43 [1] : vector<8x8xf32> to vector<8xf32>
    %107 = vector.shape_cast %106 : vector<8xf32> to vector<8x1xf32>
    %108 = tpu.reciprocal %107 {approx = true} : vector<8x1xf32> -> vector<8x1xf32>
    %109 = vector.broadcast %108 : vector<8x1xf32> to vector<8x8xf32>
    %110 = arith.mulf %105, %109 : vector<8x8xf32>
    %111 = arith.truncf %110 : vector<8x8xf32> to vector<8x8xbf16>
    %112 = vector.extract_strided_slice %30 {offsets = [0, 24], sizes = [8, 8], strides = [1, 1]} : vector<8x32xbf16> to vector<8x8xbf16>
    %cst_44 = arith.constant dense<0.000000e+00> : vector<8x8xf32>
    %113 = tpu.matmul %111, %112, %cst_44 {dimension_numbers = #tpu.dot_dimension_numbers<[1], [0], [0], [1], [0, 0, 1, 1], [], []>} : vector<8x8xbf16>, vector<8x8xbf16>, vector<8x8xf32> -> vector<8x8xf32>
    %c0_45 = arith.constant 0 : index
    %c24 = arith.constant 24 : index
    %114 = vector.load %arg25[%c0_45, %c24] : memref<8x32xf32, #tpu.memory_space<vmem>>, vector<8x8xf32>
    tpu.vector_store %arg25[%c0_45, %c24], %113 {strides = array<i32>} : memref<8x32xf32, #tpu.memory_space<vmem>>, vector<8x8xf32>,
    %c0_46 = arith.constant 0 : index
    %c0_47 = arith.constant 0 : index
    %115 = vector.load %arg25[%c0_46, %c0_47] : memref<8x32xf32, #tpu.memory_space<vmem>>, vector<8x32xf32>
    %116 = arith.truncf %115 : vector<8x32xf32> to vector<8x32xbf16>
    %c0_48 = arith.constant 0 : index
    %c0_49 = arith.constant 0 : index
    %117 = vector.load %arg8[%c0_48, %c0_49] : memref<32x32xbf16, #tpu.memory_space<vmem>>, vector<32x32xbf16>
    %cst_50 = arith.constant dense<0.000000e+00> : vector<8x32xf32>
    %118 = tpu.matmul %116, %117, %cst_50 {dimension_numbers = #tpu.dot_dimension_numbers<[1], [0], [0], [1], [0, 0, 1, 1], [], []>} : vector<8x32xbf16>, vector<32x32xbf16>, vector<8x32xf32> -> vector<8x32xf32>
    %c0_51 = arith.constant 0 : index
    %c0_52 = arith.constant 0 : index
    %119 = vector.load %arg9[%c0_51, %c0_52] : memref<1x32xf32, #tpu.memory_space<vmem>>, vector<1x32xf32>
    %120 = vector.broadcast %119 : vector<1x32xf32> to vector<8x32xf32>
    %121 = arith.addf %118, %120 : vector<8x32xf32>
    %122 = arith.addf %2, %121 : vector<8x32xf32>
    %c0_53 = arith.constant 0 : index
    %c0_54 = arith.constant 0 : index
    %123 = vector.load %arg10[%c0_53, %c0_54] : memref<1x32xf32, #tpu.memory_space<vmem>>, vector<1x32xf32>
    %c0_55 = arith.constant 0 : index
    %c0_56 = arith.constant 0 : index
    %124 = vector.load %arg11[%c0_55, %c0_56] : memref<1x32xf32, #tpu.memory_space<vmem>>, vector<1x32xf32>
    %cst_57 = arith.constant dense<0.000000e+00> : vector<8xf32>
    %125 = vector.multi_reduction <add>, %122, %cst_57 [1] : vector<8x32xf32> to vector<8xf32>
    %126 = vector.shape_cast %125 : vector<8xf32> to vector<8x1xf32>
    %cst_58 = arith.constant 3.200000e+01 : f32
    %127 = vector.broadcast %cst_58 : f32 to vector<8x1xf32>
    %128 = arith.divf %126, %127 : vector<8x1xf32>
    %129 = vector.broadcast %128 : vector<8x1xf32> to vector<8x32xf32>
    %130 = arith.subf %122, %129 : vector<8x32xf32>
    %131 = arith.mulf %130, %130 : vector<8x32xf32>
    %cst_59 = arith.constant dense<0.000000e+00> : vector<8xf32>
    %132 = vector.multi_reduction <add>, %131, %cst_59 [1] : vector<8x32xf32> to vector<8xf32>
    %133 = vector.shape_cast %132 : vector<8xf32> to vector<8x1xf32>
    %cst_60 = arith.constant 3.200000e+01 : f32
    %134 = vector.broadcast %cst_60 : f32 to vector<8x1xf32>
    %135 = arith.divf %133, %134 : vector<8x1xf32>
    %136 = vector.broadcast %128 : vector<8x1xf32> to vector<8x32xf32>
    %137 = arith.subf %122, %136 : vector<8x32xf32>
    %cst_61 = arith.constant 9.99999974E-6 : f32
    %138 = vector.broadcast %cst_61 : f32 to vector<8x1xf32>
    %139 = arith.addf %135, %138 : vector<8x1xf32>
    %140 = math.rsqrt %139 : vector<8x1xf32>
    %141 = vector.broadcast %140 : vector<8x1xf32> to vector<8x32xf32>
    %142 = arith.mulf %137, %141 : vector<8x32xf32>
    %143 = vector.broadcast %123 : vector<1x32xf32> to vector<8x32xf32>
    %144 = arith.mulf %142, %143 : vector<8x32xf32>
    %145 = vector.broadcast %124 : vector<1x32xf32> to vector<8x32xf32>
    %146 = arith.addf %144, %145 : vector<8x32xf32>
    %c0_62 = arith.constant 0 : index
    %c0_63 = arith.constant 0 : index
    %c0_64 = arith.constant 0 : index
    %147 = vector.load %arg1[%c0_62, %c0_63, %c0_64] : memref<1x8x1xf32, #tpu.memory_space<vmem>>, vector<1x8x1xf32>
    %148 = vector.shape_cast %147 : vector<1x8x1xf32> to vector<8x1xf32>
    %cst_65 = arith.constant 5.000000e-01 : f32
    %149 = vector.broadcast %cst_65 : f32 to vector<8x1xf32>
    %150 = arith.cmpf ogt, %148, %149 : vector<8x1xf32>
    %c0_66 = arith.constant 0 : index
    %c0_67 = arith.constant 0 : index
    %c0_68 = arith.constant 0 : index
    %151 = vector.load %arg3[%c0_66, %c0_67, %c0_68] : memref<1x1x8xf32, #tpu.memory_space<vmem>>, vector<1x1x8xf32>
    %152 = vector.shape_cast %151 : vector<1x1x8xf32> to vector<1x8xf32>
    %cst_69 = arith.constant 5.000000e-01 : f32
    %153 = vector.broadcast %cst_69 : f32 to vector<1x8xf32>
    %154 = arith.cmpf ogt, %152, %153 : vector<1x8xf32>
    %155 = vector.broadcast %150 : vector<8x1xi1> to vector<8x8xi1>
    %156 = vector.broadcast %154 : vector<1x8xi1> to vector<8x8xi1>
    %157 = arith.andi %155, %156 : vector<8x8xi1>
    %c0_70 = arith.constant 0 : index
    %c0_71 = arith.constant 0 : index
    %158 = vector.load %arg12[%c0_70, %c0_71] : memref<32x96xbf16, #tpu.memory_space<vmem>>, vector<32x96xbf16>
    %c0_72 = arith.constant 0 : index
    %c0_73 = arith.constant 0 : index
    %159 = vector.load %arg13[%c0_72, %c0_73] : memref<1x96xf32, #tpu.memory_space<vmem>>, vector<1x96xf32>
    %160 = arith.truncf %146 : vector<8x32xf32> to vector<8x32xbf16>
    %161 = vector.extract_strided_slice %158 {offsets = [0, 0], sizes = [32, 32], strides = [1, 1]} : vector<32x96xbf16> to vector<32x32xbf16>
    %cst_74 = arith.constant dense<0.000000e+00> : vector<8x32xf32>
    %162 = tpu.matmul %160, %161, %cst_74 {dimension_numbers = #tpu.dot_dimension_numbers<[1], [0], [0], [1], [0, 0, 1, 1], [], []>} : vector<8x32xbf16>, vector<32x32xbf16>, vector<8x32xf32> -> vector<8x32xf32>
    %163 = vector.extract_strided_slice %159 {offsets = [0, 0], sizes = [1, 32], strides = [1, 1]} : vector<1x96xf32> to vector<1x32xf32>
    %164 = vector.broadcast %163 : vector<1x32xf32> to vector<8x32xf32>
    %165 = arith.addf %162, %164 : vector<8x32xf32>
    %166 = vector.extract_strided_slice %158 {offsets = [0, 32], sizes = [32, 64], strides = [1, 1]} : vector<32x96xbf16> to vector<32x64xbf16>
    %cst_75 = arith.constant dense<0.000000e+00> : vector<8x64xf32>
    %167 = tpu.matmul %4, %166, %cst_75 {dimension_numbers = #tpu.dot_dimension_numbers<[1], [0], [0], [1], [0, 0, 1, 1], [], []>} : vector<8x32xbf16>, vector<32x64xbf16>, vector<8x64xf32> -> vector<8x64xf32>
    %168 = vector.extract_strided_slice %159 {offsets = [0, 32], sizes = [1, 64], strides = [1, 1]} : vector<1x96xf32> to vector<1x64xf32>
    %169 = vector.broadcast %168 : vector<1x64xf32> to vector<8x64xf32>
    %170 = arith.addf %167, %169 : vector<8x64xf32>
    %171 = vector.extract_strided_slice %170 {offsets = [0, 0], sizes = [8, 32], strides = [1, 1]} : vector<8x64xf32> to vector<8x32xf32>
    %172 = vector.extract_strided_slice %170 {offsets = [0, 32], sizes = [8, 32], strides = [1, 1]} : vector<8x64xf32> to vector<8x32xf32>
    %173 = arith.truncf %165 : vector<8x32xf32> to vector<8x32xbf16>
    %174 = arith.truncf %171 : vector<8x32xf32> to vector<8x32xbf16>
    %175 = arith.truncf %172 : vector<8x32xf32> to vector<8x32xbf16>
    %176 = vector.extract_strided_slice %173 {offsets = [0, 0], sizes = [8, 8], strides = [1, 1]} : vector<8x32xbf16> to vector<8x8xbf16>
    %177 = vector.extract_strided_slice %174 {offsets = [0, 0], sizes = [8, 8], strides = [1, 1]} : vector<8x32xbf16> to vector<8x8xbf16>
    %cst_76 = arith.constant dense<0.000000e+00> : vector<8x8xf32>
    %178 = tpu.matmul %176, %177, %cst_76 {dimension_numbers = #tpu.dot_dimension_numbers<[1], [1], [0], [0], [0, 0, 1, 0], [], []>} : vector<8x8xbf16>, vector<8x8xbf16>, vector<8x8xf32> -> vector<8x8xf32>
    %cst_77 = arith.constant 0.353553385 : f32
    %179 = vector.broadcast %cst_77 : f32 to vector<8x8xf32>
    %180 = arith.mulf %178, %179 : vector<8x8xf32>
    %cst_78 = arith.constant -1.000000e+09 : f32
    %181 = vector.broadcast %cst_78 : f32 to vector<8x8xf32>
    %182 = arith.select %157, %180, %181 : vector<8x8xi1>, vector<8x8xf32>
    %cst_79 = arith.constant dense<0xFF800000> : vector<8xf32>
    %183 = vector.multi_reduction <maximumf>, %182, %cst_79 [1] : vector<8x8xf32> to vector<8xf32>
    %184 = vector.shape_cast %183 : vector<8xf32> to vector<8x1xf32>
    %185 = vector.broadcast %184 : vector<8x1xf32> to vector<8x8xf32>
    %186 = arith.subf %182, %185 : vector<8x8xf32>
    %187 = math.exp %186 : vector<8x8xf32>
    %cst_80 = arith.constant dense<0.000000e+00> : vector<8xf32>
    %188 = vector.multi_reduction <add>, %187, %cst_80 [1] : vector<8x8xf32> to vector<8xf32>
    %189 = vector.shape_cast %188 : vector<8xf32> to vector<8x1xf32>
    %190 = tpu.reciprocal %189 {approx = true} : vector<8x1xf32> -> vector<8x1xf32>
    %191 = vector.broadcast %190 : vector<8x1xf32> to vector<8x8xf32>
    %192 = arith.mulf %187, %191 : vector<8x8xf32>
    %193 = arith.truncf %192 : vector<8x8xf32> to vector<8x8xbf16>
    %194 = vector.extract_strided_slice %175 {offsets = [0, 0], sizes = [8, 8], strides = [1, 1]} : vector<8x32xbf16> to vector<8x8xbf16>
    %cst_81 = arith.constant dense<0.000000e+00> : vector<8x8xf32>
    %195 = tpu.matmul %193, %194, %cst_81 {dimension_numbers = #tpu.dot_dimension_numbers<[1], [0], [0], [1], [0, 0, 1, 1], [], []>} : vector<8x8xbf16>, vector<8x8xbf16>, vector<8x8xf32> -> vector<8x8xf32>
    %c0_82 = arith.constant 0 : index
    %c0_83 = arith.constant 0 : index
    %196 = vector.load %arg25[%c0_82, %c0_83] : memref<8x32xf32, #tpu.memory_space<vmem>>, vector<8x8xf32>
    tpu.vector_store %arg25[%c0_82, %c0_83], %195 {strides = array<i32>} : memref<8x32xf32, #tpu.memory_space<vmem>>, vector<8x8xf32>,
    %197 = vector.extract_strided_slice %173 {offsets = [0, 8], sizes = [8, 8], strides = [1, 1]} : vector<8x32xbf16> to vector<8x8xbf16>
    %198 = vector.extract_strided_slice %174 {offsets = [0, 8], sizes = [8, 8], strides = [1, 1]} : vector<8x32xbf16> to vector<8x8xbf16>
    %cst_84 = arith.constant dense<0.000000e+00> : vector<8x8xf32>
    %199 = tpu.matmul %197, %198, %cst_84 {dimension_numbers = #tpu.dot_dimension_numbers<[1], [1], [0], [0], [0, 0, 1, 0], [], []>} : vector<8x8xbf16>, vector<8x8xbf16>, vector<8x8xf32> -> vector<8x8xf32>
    %cst_85 = arith.constant 0.353553385 : f32
    %200 = vector.broadcast %cst_85 : f32 to vector<8x8xf32>
    %201 = arith.mulf %199, %200 : vector<8x8xf32>
    %cst_86 = arith.constant -1.000000e+09 : f32
    %202 = vector.broadcast %cst_86 : f32 to vector<8x8xf32>
    %203 = arith.select %157, %201, %202 : vector<8x8xi1>, vector<8x8xf32>
    %cst_87 = arith.constant dense<0xFF800000> : vector<8xf32>
    %204 = vector.multi_reduction <maximumf>, %203, %cst_87 [1] : vector<8x8xf32> to vector<8xf32>
    %205 = vector.shape_cast %204 : vector<8xf32> to vector<8x1xf32>
    %206 = vector.broadcast %205 : vector<8x1xf32> to vector<8x8xf32>
    %207 = arith.subf %203, %206 : vector<8x8xf32>
    %208 = math.exp %207 : vector<8x8xf32>
    %cst_88 = arith.constant dense<0.000000e+00> : vector<8xf32>
    %209 = vector.multi_reduction <add>, %208, %cst_88 [1] : vector<8x8xf32> to vector<8xf32>
    %210 = vector.shape_cast %209 : vector<8xf32> to vector<8x1xf32>
    %211 = tpu.reciprocal %210 {approx = true} : vector<8x1xf32> -> vector<8x1xf32>
    %212 = vector.broadcast %211 : vector<8x1xf32> to vector<8x8xf32>
    %213 = arith.mulf %208, %212 : vector<8x8xf32>
    %214 = arith.truncf %213 : vector<8x8xf32> to vector<8x8xbf16>
    %215 = vector.extract_strided_slice %175 {offsets = [0, 8], sizes = [8, 8], strides = [1, 1]} : vector<8x32xbf16> to vector<8x8xbf16>
    %cst_89 = arith.constant dense<0.000000e+00> : vector<8x8xf32>
    %216 = tpu.matmul %214, %215, %cst_89 {dimension_numbers = #tpu.dot_dimension_numbers<[1], [0], [0], [1], [0, 0, 1, 1], [], []>} : vector<8x8xbf16>, vector<8x8xbf16>, vector<8x8xf32> -> vector<8x8xf32>
    %c0_90 = arith.constant 0 : index
    %c8_91 = arith.constant 8 : index
    %217 = vector.load %arg25[%c0_90, %c8_91] : memref<8x32xf32, #tpu.memory_space<vmem>>, vector<8x8xf32>
    tpu.vector_store %arg25[%c0_90, %c8_91], %216 {strides = array<i32>} : memref<8x32xf32, #tpu.memory_space<vmem>>, vector<8x8xf32>,
    %218 = vector.extract_strided_slice %173 {offsets = [0, 16], sizes = [8, 8], strides = [1, 1]} : vector<8x32xbf16> to vector<8x8xbf16>
    %219 = vector.extract_strided_slice %174 {offsets = [0, 16], sizes = [8, 8], strides = [1, 1]} : vector<8x32xbf16> to vector<8x8xbf16>
    %cst_92 = arith.constant dense<0.000000e+00> : vector<8x8xf32>
    %220 = tpu.matmul %218, %219, %cst_92 {dimension_numbers = #tpu.dot_dimension_numbers<[1], [1], [0], [0], [0, 0, 1, 0], [], []>} : vector<8x8xbf16>, vector<8x8xbf16>, vector<8x8xf32> -> vector<8x8xf32>
    %cst_93 = arith.constant 0.353553385 : f32
    %221 = vector.broadcast %cst_93 : f32 to vector<8x8xf32>
    %222 = arith.mulf %220, %221 : vector<8x8xf32>
    %cst_94 = arith.constant -1.000000e+09 : f32
    %223 = vector.broadcast %cst_94 : f32 to vector<8x8xf32>
    %224 = arith.select %157, %222, %223 : vector<8x8xi1>, vector<8x8xf32>
    %cst_95 = arith.constant dense<0xFF800000> : vector<8xf32>
    %225 = vector.multi_reduction <maximumf>, %224, %cst_95 [1] : vector<8x8xf32> to vector<8xf32>
    %226 = vector.shape_cast %225 : vector<8xf32> to vector<8x1xf32>
    %227 = vector.broadcast %226 : vector<8x1xf32> to vector<8x8xf32>
    %228 = arith.subf %224, %227 : vector<8x8xf32>
    %229 = math.exp %228 : vector<8x8xf32>
    %cst_96 = arith.constant dense<0.000000e+00> : vector<8xf32>
    %230 = vector.multi_reduction <add>, %229, %cst_96 [1] : vector<8x8xf32> to vector<8xf32>
    %231 = vector.shape_cast %230 : vector<8xf32> to vector<8x1xf32>
    %232 = tpu.reciprocal %231 {approx = true} : vector<8x1xf32> -> vector<8x1xf32>
    %233 = vector.broadcast %232 : vector<8x1xf32> to vector<8x8xf32>
    %234 = arith.mulf %229, %233 : vector<8x8xf32>
    %235 = arith.truncf %234 : vector<8x8xf32> to vector<8x8xbf16>
    %236 = vector.extract_strided_slice %175 {offsets = [0, 16], sizes = [8, 8], strides = [1, 1]} : vector<8x32xbf16> to vector<8x8xbf16>
    %cst_97 = arith.constant dense<0.000000e+00> : vector<8x8xf32>
    %237 = tpu.matmul %235, %236, %cst_97 {dimension_numbers = #tpu.dot_dimension_numbers<[1], [0], [0], [1], [0, 0, 1, 1], [], []>} : vector<8x8xbf16>, vector<8x8xbf16>, vector<8x8xf32> -> vector<8x8xf32>
    %c0_98 = arith.constant 0 : index
    %c16_99 = arith.constant 16 : index
    %238 = vector.load %arg25[%c0_98, %c16_99] : memref<8x32xf32, #tpu.memory_space<vmem>>, vector<8x8xf32>
    tpu.vector_store %arg25[%c0_98, %c16_99], %237 {strides = array<i32>} : memref<8x32xf32, #tpu.memory_space<vmem>>, vector<8x8xf32>,
    %239 = vector.extract_strided_slice %173 {offsets = [0, 24], sizes = [8, 8], strides = [1, 1]} : vector<8x32xbf16> to vector<8x8xbf16>
    %240 = vector.extract_strided_slice %174 {offsets = [0, 24], sizes = [8, 8], strides = [1, 1]} : vector<8x32xbf16> to vector<8x8xbf16>
    %cst_100 = arith.constant dense<0.000000e+00> : vector<8x8xf32>
    %241 = tpu.matmul %239, %240, %cst_100 {dimension_numbers = #tpu.dot_dimension_numbers<[1], [1], [0], [0], [0, 0, 1, 0], [], []>} : vector<8x8xbf16>, vector<8x8xbf16>, vector<8x8xf32> -> vector<8x8xf32>
    %cst_101 = arith.constant 0.353553385 : f32
    %242 = vector.broadcast %cst_101 : f32 to vector<8x8xf32>
    %243 = arith.mulf %241, %242 : vector<8x8xf32>
    %cst_102 = arith.constant -1.000000e+09 : f32
    %244 = vector.broadcast %cst_102 : f32 to vector<8x8xf32>
    %245 = arith.select %157, %243, %244 : vector<8x8xi1>, vector<8x8xf32>
    %cst_103 = arith.constant dense<0xFF800000> : vector<8xf32>
    %246 = vector.multi_reduction <maximumf>, %245, %cst_103 [1] : vector<8x8xf32> to vector<8xf32>
    %247 = vector.shape_cast %246 : vector<8xf32> to vector<8x1xf32>
    %248 = vector.broadcast %247 : vector<8x1xf32> to vector<8x8xf32>
    %249 = arith.subf %245, %248 : vector<8x8xf32>
    %250 = math.exp %249 : vector<8x8xf32>
    %cst_104 = arith.constant dense<0.000000e+00> : vector<8xf32>
    %251 = vector.multi_reduction <add>, %250, %cst_104 [1] : vector<8x8xf32> to vector<8xf32>
    %252 = vector.shape_cast %251 : vector<8xf32> to vector<8x1xf32>
    %253 = tpu.reciprocal %252 {approx = true} : vector<8x1xf32> -> vector<8x1xf32>
    %254 = vector.broadcast %253 : vector<8x1xf32> to vector<8x8xf32>
    %255 = arith.mulf %250, %254 : vector<8x8xf32>
    %256 = arith.truncf %255 : vector<8x8xf32> to vector<8x8xbf16>
    %257 = vector.extract_strided_slice %175 {offsets = [0, 24], sizes = [8, 8], strides = [1, 1]} : vector<8x32xbf16> to vector<8x8xbf16>
    %cst_105 = arith.constant dense<0.000000e+00> : vector<8x8xf32>
    %258 = tpu.matmul %256, %257, %cst_105 {dimension_numbers = #tpu.dot_dimension_numbers<[1], [0], [0], [1], [0, 0, 1, 1], [], []>} : vector<8x8xbf16>, vector<8x8xbf16>, vector<8x8xf32> -> vector<8x8xf32>
    %c0_106 = arith.constant 0 : index
    %c24_107 = arith.constant 24 : index
    %259 = vector.load %arg25[%c0_106, %c24_107] : memref<8x32xf32, #tpu.memory_space<vmem>>, vector<8x8xf32>
    tpu.vector_store %arg25[%c0_106, %c24_107], %258 {strides = array<i32>} : memref<8x32xf32, #tpu.memory_space<vmem>>, vector<8x8xf32>,
    %c0_108 = arith.constant 0 : index
    %c0_109 = arith.constant 0 : index
    %260 = vector.load %arg25[%c0_108, %c0_109] : memref<8x32xf32, #tpu.memory_space<vmem>>, vector<8x32xf32>
    %261 = arith.truncf %260 : vector<8x32xf32> to vector<8x32xbf16>
    %c0_110 = arith.constant 0 : index
    %c0_111 = arith.constant 0 : index
    %262 = vector.load %arg14[%c0_110, %c0_111] : memref<32x32xbf16, #tpu.memory_space<vmem>>, vector<32x32xbf16>
    %cst_112 = arith.constant dense<0.000000e+00> : vector<8x32xf32>
    %263 = tpu.matmul %261, %262, %cst_112 {dimension_numbers = #tpu.dot_dimension_numbers<[1], [0], [0], [1], [0, 0, 1, 1], [], []>} : vector<8x32xbf16>, vector<32x32xbf16>, vector<8x32xf32> -> vector<8x32xf32>
    %c0_113 = arith.constant 0 : index
    %c0_114 = arith.constant 0 : index
    %264 = vector.load %arg15[%c0_113, %c0_114] : memref<1x32xf32, #tpu.memory_space<vmem>>, vector<1x32xf32>
    %265 = vector.broadcast %264 : vector<1x32xf32> to vector<8x32xf32>
    %266 = arith.addf %263, %265 : vector<8x32xf32>
    %267 = arith.addf %146, %266 : vector<8x32xf32>
    %c0_115 = arith.constant 0 : index
    %c0_116 = arith.constant 0 : index
    %268 = vector.load %arg16[%c0_115, %c0_116] : memref<1x32xf32, #tpu.memory_space<vmem>>, vector<1x32xf32>
    %c0_117 = arith.constant 0 : index
    %c0_118 = arith.constant 0 : index
    %269 = vector.load %arg17[%c0_117, %c0_118] : memref<1x32xf32, #tpu.memory_space<vmem>>, vector<1x32xf32>
    %cst_119 = arith.constant dense<0.000000e+00> : vector<8xf32>
    %270 = vector.multi_reduction <add>, %267, %cst_119 [1] : vector<8x32xf32> to vector<8xf32>
    %271 = vector.shape_cast %270 : vector<8xf32> to vector<8x1xf32>
    %cst_120 = arith.constant 3.200000e+01 : f32
    %272 = vector.broadcast %cst_120 : f32 to vector<8x1xf32>
    %273 = arith.divf %271, %272 : vector<8x1xf32>
    %274 = vector.broadcast %273 : vector<8x1xf32> to vector<8x32xf32>
    %275 = arith.subf %267, %274 : vector<8x32xf32>
    %276 = arith.mulf %275, %275 : vector<8x32xf32>
    %cst_121 = arith.constant dense<0.000000e+00> : vector<8xf32>
    %277 = vector.multi_reduction <add>, %276, %cst_121 [1] : vector<8x32xf32> to vector<8xf32>
    %278 = vector.shape_cast %277 : vector<8xf32> to vector<8x1xf32>
    %cst_122 = arith.constant 3.200000e+01 : f32
    %279 = vector.broadcast %cst_122 : f32 to vector<8x1xf32>
    %280 = arith.divf %278, %279 : vector<8x1xf32>
    %281 = vector.broadcast %273 : vector<8x1xf32> to vector<8x32xf32>
    %282 = arith.subf %267, %281 : vector<8x32xf32>
    %cst_123 = arith.constant 9.99999974E-6 : f32
    %283 = vector.broadcast %cst_123 : f32 to vector<8x1xf32>
    %284 = arith.addf %280, %283 : vector<8x1xf32>
    %285 = math.rsqrt %284 : vector<8x1xf32>
    %286 = vector.broadcast %285 : vector<8x1xf32> to vector<8x32xf32>
    %287 = arith.mulf %282, %286 : vector<8x32xf32>
    %288 = vector.broadcast %268 : vector<1x32xf32> to vector<8x32xf32>
    %289 = arith.mulf %287, %288 : vector<8x32xf32>
    %290 = vector.broadcast %269 : vector<1x32xf32> to vector<8x32xf32>
    %291 = arith.addf %289, %290 : vector<8x32xf32>
    %292 = arith.truncf %291 : vector<8x32xf32> to vector<8x32xbf16>
    %c0_124 = arith.constant 0 : index
    %c0_125 = arith.constant 0 : index
    %293 = vector.load %arg18[%c0_124, %c0_125] : memref<32x64xbf16, #tpu.memory_space<vmem>>, vector<32x64xbf16>
    %cst_126 = arith.constant dense<0.000000e+00> : vector<8x64xf32>
    %294 = tpu.matmul %292, %293, %cst_126 {dimension_numbers = #tpu.dot_dimension_numbers<[1], [0], [0], [1], [0, 0, 1, 1], [], []>} : vector<8x32xbf16>, vector<32x64xbf16>, vector<8x64xf32> -> vector<8x64xf32>
    %c0_127 = arith.constant 0 : index
    %c0_128 = arith.constant 0 : index
    %295 = vector.load %arg19[%c0_127, %c0_128] : memref<1x64xf32, #tpu.memory_space<vmem>>, vector<1x64xf32>
    %296 = vector.broadcast %295 : vector<1x64xf32> to vector<8x64xf32>
    %297 = arith.addf %294, %296 : vector<8x64xf32>
    %cst_129 = arith.constant 0.000000e+00 : f32
    %298 = vector.broadcast %cst_129 : f32 to vector<8x64xf32>
    %299 = arith.maximumf %297, %298 : vector<8x64xf32>
    %300 = arith.truncf %299 : vector<8x64xf32> to vector<8x64xbf16>
    %c0_130 = arith.constant 0 : index
    %c0_131 = arith.constant 0 : index
    %301 = vector.load %arg20[%c0_130, %c0_131] : memref<64x32xbf16, #tpu.memory_space<vmem>>, vector<64x32xbf16>
    %cst_132 = arith.constant dense<0.000000e+00> : vector<8x32xf32>
    %302 = tpu.matmul %300, %301, %cst_132 {dimension_numbers = #tpu.dot_dimension_numbers<[1], [0], [0], [1], [0, 0, 1, 1], [], []>} : vector<8x64xbf16>, vector<64x32xbf16>, vector<8x32xf32> -> vector<8x32xf32>
    %c0_133 = arith.constant 0 : index
    %c0_134 = arith.constant 0 : index
    %303 = vector.load %arg21[%c0_133, %c0_134] : memref<1x32xf32, #tpu.memory_space<vmem>>, vector<1x32xf32>
    %304 = vector.broadcast %303 : vector<1x32xf32> to vector<8x32xf32>
    %305 = arith.addf %302, %304 : vector<8x32xf32>
    %306 = arith.addf %291, %305 : vector<8x32xf32>
    %c0_135 = arith.constant 0 : index
    %c0_136 = arith.constant 0 : index
    %307 = vector.load %arg22[%c0_135, %c0_136] : memref<1x32xf32, #tpu.memory_space<vmem>>, vector<1x32xf32>
    %c0_137 = arith.constant 0 : index
    %c0_138 = arith.constant 0 : index
    %308 = vector.load %arg23[%c0_137, %c0_138] : memref<1x32xf32, #tpu.memory_space<vmem>>, vector<1x32xf32>
    %cst_139 = arith.constant dense<0.000000e+00> : vector<8xf32>
    %309 = vector.multi_reduction <add>, %306, %cst_139 [1] : vector<8x32xf32> to vector<8xf32>
    %310 = vector.shape_cast %309 : vector<8xf32> to vector<8x1xf32>
    %cst_140 = arith.constant 3.200000e+01 : f32
    %311 = vector.broadcast %cst_140 : f32 to vector<8x1xf32>
    %312 = arith.divf %310, %311 : vector<8x1xf32>
    %313 = vector.broadcast %312 : vector<8x1xf32> to vector<8x32xf32>
    %314 = arith.subf %306, %313 : vector<8x32xf32>
    %315 = arith.mulf %314, %314 : vector<8x32xf32>
    %cst_141 = arith.constant dense<0.000000e+00> : vector<8xf32>
    %316 = vector.multi_reduction <add>, %315, %cst_141 [1] : vector<8x32xf32> to vector<8xf32>
    %317 = vector.shape_cast %316 : vector<8xf32> to vector<8x1xf32>
    %cst_142 = arith.constant 3.200000e+01 : f32
    %318 = vector.broadcast %cst_142 : f32 to vector<8x1xf32>
    %319 = arith.divf %317, %318 : vector<8x1xf32>
    %320 = vector.broadcast %312 : vector<8x1xf32> to vector<8x32xf32>
    %321 = arith.subf %306, %320 : vector<8x32xf32>
    %cst_143 = arith.constant 9.99999974E-6 : f32
    %322 = vector.broadcast %cst_143 : f32 to vector<8x1xf32>
    %323 = arith.addf %319, %322 : vector<8x1xf32>
    %324 = math.rsqrt %323 : vector<8x1xf32>
    %325 = vector.broadcast %324 : vector<8x1xf32> to vector<8x32xf32>
    %326 = arith.mulf %321, %325 : vector<8x32xf32>
    %327 = vector.broadcast %307 : vector<1x32xf32> to vector<8x32xf32>
    %328 = arith.mulf %326, %327 : vector<8x32xf32>
    %329 = vector.broadcast %308 : vector<1x32xf32> to vector<8x32xf32>
    %330 = arith.addf %328, %329 : vector<8x32xf32>
    %331 = arith.truncf %330 : vector<8x32xf32> to vector<8x32xbf16>
    %c0_144 = arith.constant 0 : index
    %c0_145 = arith.constant 0 : index
    %c0_146 = arith.constant 0 : index
    %332 = vector.load %arg24[%c0_144, %c0_145, %c0_146] : memref<1x8x32xbf16, #tpu.memory_space<vmem>>, vector<1x8x32xbf16>
    %333 = vector.shape_cast %332 : vector<1x8x32xbf16> to vector<8x32xbf16>
    %334 = vector.shape_cast %331 : vector<8x32xbf16> to vector<1x8x32xbf16>
    tpu.vector_store %arg24[%c0_144, %c0_145, %c0_146], %334 {strides = array<i32>} : memref<1x8x32xbf16, #tpu.memory_space<vmem>>, vector<1x8x32xbf16>,
    return
  }
  func.func @transform_0(%arg0: i32) -> (i32, i32, i32) {
    %c0_i32 = arith.constant 0 : i32
    %c0_i32_0 = arith.constant 0 : i32
    %c0_i32_1 = arith.constant 0 : i32
    return %arg0, %c0_i32, %c0_i32_0 : i32, i32, i32
  }
  func.func @transform_1(%arg0: i32) -> (i32, i32, i32) {
    %c0_i32 = arith.constant 0 : i32
    %c0_i32_0 = arith.constant 0 : i32
    %c0_i32_1 = arith.constant 0 : i32
    return %arg0, %c0_i32, %c0_i32_0 : i32, i32, i32
  }
  func.func @transform_2(%arg0: i32) -> (i32, i32, i32) {
    %c0_i32 = arith.constant 0 : i32
    %c0_i32_0 = arith.constant 0 : i32
    %c0_i32_1 = arith.constant 0 : i32
    return %arg0, %c0_i32, %c0_i32_0 : i32, i32, i32
  }
  func.func @transform_3(%arg0: i32) -> (i32, i32, i32) {
    %c0_i32 = arith.constant 0 : i32
    %c0_i32_0 = arith.constant 0 : i32
    %c0_i32_1 = arith.constant 0 : i32
    return %arg0, %c0_i32, %c0_i32_0 : i32, i32, i32
  }
  func.func @transform_4(%arg0: i32) -> (i32, i32, i32) {
    %c0_i32 = arith.constant 0 : i32
    %c0_i32_0 = arith.constant 0 : i32
    %c0_i32_1 = arith.constant 0 : i32
    return %arg0, %c0_i32, %c0_i32_0 : i32, i32, i32
  }
  func.func @transform_5(%arg0: i32) -> (i32, i32) {
    %c0_i32 = arith.constant 0 : i32
    %c0_i32_0 = arith.constant 0 : i32
    %c0_i32_1 = arith.constant 0 : i32
    return %c0_i32, %c0_i32_0 : i32, i32
  }
  func.func @transform_6(%arg0: i32) -> (i32, i32) {
    %c0_i32 = arith.constant 0 : i32
    %c0_i32_0 = arith.constant 0 : i32
    %c0_i32_1 = arith.constant 0 : i32
    return %c0_i32, %c0_i32_0 : i32, i32
  }
  func.func @transform_7(%arg0: i32) -> (i32, i32) {
    %c0_i32 = arith.constant 0 : i32
    %c0_i32_0 = arith.constant 0 : i32
    %c0_i32_1 = arith.constant 0 : i32
    return %c0_i32, %c0_i32_0 : i32, i32
  }
  func.func @transform_8(%arg0: i32) -> (i32, i32) {
    %c0_i32 = arith.constant 0 : i32
    %c0_i32_0 = arith.constant 0 : i32
    %c0_i32_1 = arith.constant 0 : i32
    return %c0_i32, %c0_i32_0 : i32, i32
  }
  func.func @transform_9(%arg0: i32) -> (i32, i32) {
    %c0_i32 = arith.constant 0 : i32
    %c0_i32_0 = arith.constant 0 : i32
    %c0_i32_1 = arith.constant 0 : i32
    return %c0_i32, %c0_i32_0 : i32, i32
  }
  func.func @transform_10(%arg0: i32) -> (i32, i32) {
    %c0_i32 = arith.constant 0 : i32
    %c0_i32_0 = arith.constant 0 : i32
    %c0_i32_1 = arith.constant 0 : i32
    return %c0_i32, %c0_i32_0 : i32, i32
  }
  func.func @transform_11(%arg0: i32) -> (i32, i32) {
    %c0_i32 = arith.constant 0 : i32
    %c0_i32_0 = arith.constant 0 : i32
    %c0_i32_1 = arith.constant 0 : i32
    return %c0_i32, %c0_i32_0 : i32, i32
  }
  func.func @transform_12(%arg0: i32) -> (i32, i32) {
    %c0_i32 = arith.constant 0 : i32
    %c0_i32_0 = arith.constant 0 : i32
    %c0_i32_1 = arith.constant 0 : i32
    return %c0_i32, %c0_i32_0 : i32, i32
  }
  func.func @transform_13(%arg0: i32) -> (i32, i32) {
    %c0_i32 = arith.constant 0 : i32
    %c0_i32_0 = arith.constant 0 : i32
    %c0_i32_1 = arith.constant 0 : i32
    return %c0_i32, %c0_i32_0 : i32, i32
  }
  func.func @transform_14(%arg0: i32) -> (i32, i32) {
    %c0_i32 = arith.constant 0 : i32
    %c0_i32_0 = arith.constant 0 : i32
    %c0_i32_1 = arith.constant 0 : i32
    return %c0_i32, %c0_i32_0 : i32, i32
  }
  func.func @transform_15(%arg0: i32) -> (i32, i32) {
    %c0_i32 = arith.constant 0 : i32
    %c0_i32_0 = arith.constant 0 : i32
    %c0_i32_1 = arith.constant 0 : i32
    return %c0_i32, %c0_i32_0 : i32, i32
  }
  func.func @transform_16(%arg0: i32) -> (i32, i32) {
    %c0_i32 = arith.constant 0 : i32
    %c0_i32_0 = arith.constant 0 : i32
    %c0_i32_1 = arith.constant 0 : i32
    return %c0_i32, %c0_i32_0 : i32, i32
  }
  func.func @transform_17(%arg0: i32) -> (i32, i32) {
    %c0_i32 = arith.constant 0 : i32
    %c0_i32_0 = arith.constant 0 : i32
    %c0_i32_1 = arith.constant 0 : i32
    return %c0_i32, %c0_i32_0 : i32, i32
  }
  func.func @transform_18(%arg0: i32) -> (i32, i32) {
    %c0_i32 = arith.constant 0 : i32
    %c0_i32_0 = arith.constant 0 : i32
    %c0_i32_1 = arith.constant 0 : i32
    return %c0_i32, %c0_i32_0 : i32, i32
  }
  func.func @transform_19(%arg0: i32) -> (i32, i32) {
    %c0_i32 = arith.constant 0 : i32
    %c0_i32_0 = arith.constant 0 : i32
    %c0_i32_1 = arith.constant 0 : i32
    return %c0_i32, %c0_i32_0 : i32, i32
  }
  func.func @transform_20(%arg0: i32) -> (i32, i32) {
    %c0_i32 = arith.constant 0 : i32
    %c0_i32_0 = arith.constant 0 : i32
    %c0_i32_1 = arith.constant 0 : i32
    return %c0_i32, %c0_i32_0 : i32, i32
  }
  func.func @transform_21(%arg0: i32) -> (i32, i32) {
    %c0_i32 = arith.constant 0 : i32
    %c0_i32_0 = arith.constant 0 : i32
    %c0_i32_1 = arith.constant 0 : i32
    return %c0_i32, %c0_i32_0 : i32, i32
  }
  func.func @transform_22(%arg0: i32) -> (i32, i32) {
    %c0_i32 = arith.constant 0 : i32
    %c0_i32_0 = arith.constant 0 : i32
    %c0_i32_1 = arith.constant 0 : i32
    return %c0_i32, %c0_i32_0 : i32, i32
  }
  func.func @transform_23(%arg0: i32) -> (i32, i32, i32) {
    %c0_i32 = arith.constant 0 : i32
    %c0_i32_0 = arith.constant 0 : i32
    %c0_i32_1 = arith.constant 0 : i32
    return %arg0, %c0_i32, %c0_i32_0 : i32, i32, i32
  }
}

</mosaic_0001>

<llo_original>
// kernel: transformer_forward.9
$region0: #{transformer_forward.9}
  #allocation0 [shape = 'u32[]', space=smem, size = 0x4, offset = 0x4, fixed_abs, tag = 'smem constant byte address 0x4 - core index']
  #allocation1 [shape = 'u32[144,128]{1,0:T(1,128)}', space=vmem, size = 0x12000, scoped, tag = 'internal scratch']
  %s0 = inlined_call_operand.vmem [shape: bf16[2,8,32], index: 0, kind: input, shape index: {}]
  %s1 = inlined_call_operand.vmem [shape: bf16[32,128], index: 1, kind: input, shape index: {}]
  %s2 = inlined_call_operand.vmem [shape: f32[1,128], index: 2, kind: input, shape index: {}]
  %s3 = inlined_call_operand.hbm [shape: f32[2,8,128], index: 3, kind: output, shape index: {}]
  %s4 = sld [smem:[#allocation0]]
  $region45: #{transformer_forward.9} parent=0
    _
  %s6 = ssub.s32 1, %s4
  %s7 = scalar_select 0, %s6, %s4
  $region1: #{transformer_forward.9} parent=0
    #allocation2 [shape = 'u8[8192]{0}', space=vmem, size = 0x2000, scoped, tag = 'output window, operand 0']
    #allocation3 [shape = 's32[2]{0}', space=sflag, size = 0x8, scoped, tag = 'scoped memory for transformer_forward.9']
    %8 = vsyncpa [#allocation3], 0
    %s9 = scalar_lea.sflag [#allocation3], 1
    %10 = vsyncpa %s9, 0
    loop: start=0, step=1, limit=4
    $region2: #{transformer_forward.9} parent=1 // loop_pre_header
      _
    $region3: #{transformer_forward.9} parent=1 // loop_header
      %s12 = sphi 0, %s16
      %p13 = scmp.ge.s32.totalorder %s12, 4
      %s22 = sphi 0, %s24
      %s25 = sphi 0, %s22
      %s26 = sphi 0, %s25
      %s42 = sphi 0, %s26
      %s46 = sphi 0, %s46
      %s48 = sphi 0, %s46
      %s49 = sphi 0, %s48
      %s63 = sphi 0, %s49
      %s67 = sphi 0, %s67
      %s69 = sphi 0, %s67
      %s70 = sphi 0, %s69
      %s84 = sphi 0, %s70
      %s90 = sphi 0, %s92
      %s93 = sphi 0, %s90
      %s94 = sphi 0, %s93
      %s110 = sphi 0, %s94
    $region4: #{transformer_forward.9} parent=1 // loop_header_branch
      %15 = sbr.rel (%p13) target = $region8
    $region5: #{transformer_forward.9} parent=1 // loop_body
      %s17 = ssub.s32 %s12, 1
      %s18 = ssub.s32 %s12, 2
      %s19 = sadd.s32 %s12, 1
      %s20 = ssub.s32 %s12, %s19
      %p21 = scmp.eq.s32.totalorder %s20, 0
      %s23 = sadd.s32 %s22, 1
      %s24 = scalar_select %p21, %s22, %s23
      %p27 = pneg %p21
      %p28 = scmp.eq.s32.totalorder %s12, 1
      %p29 = por %p27, %p28
      %p30 = scmp.ne.s32.totalorder %s22, %s25
      %p31 = scmp.eq.s32.totalorder %s12, 0
      %p32 = por %p30, %p31
      %p33 = scmp.ne.s32.totalorder %s22, %s25
      %p34 = scmp.eq.s32.totalorder %s17, 1
      %p35 = por %p33, %p34
      %p36 = scmp.ne.s32.totalorder %s25, %s26
      %p37 = scmp.eq.s32.totalorder %s17, 0
      %p38 = por %p36, %p37
      %p39 = scmp.ne.s32.totalorder %s25, %s26
      %p40 = scmp.eq.s32.totalorder %s18, 1
      %p41 = por %p39, %p40
      %p43 = scmp.ne.s32.totalorder %s26, %s42
      %p44 = scmp.eq.s32.totalorder %s18, 0
      %p45 = por %p43, %p44
      %s47 = sadd.s32 %s46, 1
      %p50 = scmp.eq.s32.totalorder %s12, 1
      %p51 = scmp.ne.s32.totalorder %s46, %s48
      %p52 = scmp.eq.s32.totalorder %s12, 0
      %p53 = por %p51, %p52
      %p54 = scmp.ne.s32.totalorder %s46, %s48
      %p55 = scmp.eq.s32.totalorder %s17, 1
      %p56 = por %p54, %p55
      %p57 = scmp.ne.s32.totalorder %s48, %s49
      %p58 = scmp.eq.s32.totalorder %s17, 0
      %p59 = por %p57, %p58
      %p60 = scmp.ne.s32.totalorder %s48, %s49
      %p61 = scmp.eq.s32.totalorder %s18, 1
      %p62 = por %p60, %p61
      %p64 = scmp.ne.s32.totalorder %s49, %s63
      %p65 = scmp.eq.s32.totalorder %s18, 0
      %p66 = por %p64, %p65
      %s68 = sadd.s32 %s67, 1
      %p71 = scmp.eq.s32.totalorder %s12, 1
      %p72 = scmp.ne.s32.totalorder %s67, %s69
      %p73 = scmp.eq.s32.totalorder %s12, 0
      %p74 = por %p72, %p73
      %p75 = scmp.ne.s32.totalorder %s67, %s69
      %p76 = scmp.eq.s32.totalorder %s17, 1
      %p77 = por %p75, %p76
      %p78 = scmp.ne.s32.totalorder %s69, %s70
      %p79 = scmp.eq.s32.totalorder %s17, 0
      %p80 = por %p78, %p79
      %p81 = scmp.ne.s32.totalorder %s69, %s70
      %p82 = scmp.eq.s32.totalorder %s18, 1
      %p83 = por %p81, %p82
      %p85 = scmp.ne.s32.totalorder %s70, %s84
      %p86 = scmp.eq.s32.totalorder %s18, 0
      %p87 = por %p85, %p86
      %s88 = ssub.s32 %s12, %s19
      %p89 = scmp.eq.s32.totalorder %s88, 0
      %s91 = sadd.s32 %s90, 1
      %s92 = scalar_select %p89, %s90, %s91
      %p95 = pneg %p89
      %p96 = scmp.eq.s32.totalorder %s12, 1
      %p97 = por %p95, %p96
      %p98 = scmp.ne.s32.totalorder %s90, %s93
      %p99 = scmp.eq.s32.totalorder %s12, 0
      %p100 = por %p98, %p99
      %p101 = scmp.ne.s32.totalorder %s90, %s93
      %p102 = scmp.eq.s32.totalorder %s17, 1
      %p103 = por %p101, %p102
      %p104 = scmp.ne.s32.totalorder %s93, %s94
      %p105 = scmp.eq.s32.totalorder %s17, 0
      %p106 = por %p104, %p105
      %p107 = scmp.ne.s32.totalorder %s93, %s94
      %p108 = scmp.eq.s32.totalorder %s18, 1
      %p109 = por %p107, %p108
      %p111 = scmp.ne.s32.totalorder %s94, %s110
      %p112 = scmp.eq.s32.totalorder %s18, 0
      %p113 = por %p111, %p112
      %p114 = scmp.le.s32.totalorder 1, %s12
      %p115 = scmp.lt.s32.totalorder %s12, 3
      %p116 = pnand %p114, %p115
      %p117 = pneg %p116
      // Predicated region
      $region9: #{transformer_forward.9} parent=5 // pred_check
        _
      $region10: #{transformer_forward.9} parent=5 // pred_check_branch
        %119 = sbr.rel (%p116) target = $region12
      $region11: #{transformer_forward.9} parent=5 // pred_region
        %s120 = ssub.s32 %s12, 1
        // Predicated region
        $region13: #{transformer_forward.9} parent=11 // pred_check
          %p121 = pneg %p59
        $region14: #{transformer_forward.9} parent=11 // pred_check_branch
          %123 = sbr.rel (%p121) target = $region16
        $region15: #{transformer_forward.9} parent=11 // pred_region
          _
        $region16: #{transformer_forward.9} parent=11 // pred_fallthru
          _
        // Predicated region
        $region17: #{transformer_forward.9} parent=11 // pred_check
          %p124 = pneg %p80
        $region18: #{transformer_forward.9} parent=11 // pred_check_branch
          %126 = sbr.rel (%p124) target = $region20
        $region19: #{transformer_forward.9} parent=11 // pred_region
          _
        $region20: #{transformer_forward.9} parent=11 // pred_fallthru
          _
      $region12: #{transformer_forward.9} parent=5 // pred_fallthru
        _
      %p127 = scmp.lt.s32.totalorder %s12, 2
      // Predicated region
      $region21: #{transformer_forward.9} parent=5 // pred_check
        %p128 = pneg %p127
      $region22: #{transformer_forward.9} parent=5 // pred_check_branch
        %130 = sbr.rel (%p128) target = $region24
      $region23: #{transformer_forward.9} parent=5 // pred_region
        // Predicated region
        $region25: #{transformer_forward.9} parent=23 // pred_check
          %p131 = pneg %p32
        $region26: #{transformer_forward.9} parent=23 // pred_check_branch
          %133 = sbr.rel (%p131) target = $region28
        $region27: #{transformer_forward.9} parent=23 // pred_region
          %p134 = scmp.lt.s32.totalorder %s12, 1
          %s135 = scalar_select %p134, %s12, 1
          %s136 = smul.addr %s135, 4
          %s137 = scalar_lea.vmem %s0, %s136
        $region28: #{transformer_forward.9} parent=23 // pred_fallthru
          _
      $region24: #{transformer_forward.9} parent=5 // pred_fallthru
        _
      %p138 = scmp.le.s32.totalorder 1, %s12
      %p139 = scmp.lt.s32.totalorder %s12, 3
      %p140 = pnand %p138, %p139
      %p141 = pneg %p140
      // Predicated region
      $region29: #{transformer_forward.9} parent=5 // pred_check
        _
      $region30: #{transformer_forward.9} parent=5 // pred_check_branch
        %143 = sbr.rel (%p140) target = $region32
      $region31: #{transformer_forward.9} parent=5 // pred_region
        %s144 = ssub.s32 %s12, 1
        %p145 = scmp.lt.s32.totalorder %s17, 1
        %s146 = scalar_select %p145, %s17, 1
        %s147 = smul.addr %s146, 4
        %s148 = scalar_lea.vmem %s0, %s147
        %p149 = pneg %p38
        %p150 = pneg %p35
        %p151 = pneg %p59
        %p152 = pneg %p56
        %p153 = pneg %p80
        %p154 = pneg %p77
        %p155 = pneg %p106
        %p156 = pneg %p103
        %s157 = sand.u32 %s93, 1
        %s158 = scalar_lea.sflag [#allocation3], %s157
        %s159 = sand.u32 %s93, 1
        %s160 = smul.addr %s159, 8
        %s161 = scalar_lea.vmem [#allocation2], %s160
        %p162 = scmp.lt.s32.totalorder %s17, 1
        %s163 = scalar_select %p162, %s17, 1
        %s164 = smul.addr %s163, 4
        %s165 = scalar_lea.vmem %s0, %s164
        %v167 = vld [vmem:[%s165] sm:$0xf]
        %v168 = vld [vmem:[%s1] sm:$0xf]
        %v169 = vld [vmem:[%s1 + $0x4] sm:$0xf]
        %v170 = vld [vmem:[%s1 + $0x8] sm:$0xf]
        %v171 = vld [vmem:[%s1 + $0xc] sm:$0xf]
        %v172 = vld [vmem:[%s2] sm:$0x1]
        %v174 = vlaneseq
        %v175 = vshrl.u32 %v174, 7
        %v176 = vsub.s32 0, %v175
        %v177 = vrot.slane %v172, %v176
        %v183 = vunpack.c.l.b16 %v168
        %v184 = vunpack.c.l.b16 %v169
        %v185 = vunpack.c.l.b16 %v170
        %v186 = vunpack.c.l.b16 %v171
        %v187 = vpack.c.b16 %v184, %v183
        %v188 = vpack.c.b16 %v186, %v185
        %vm191 = vcmask 261120
        %v193 = vsel %vm191, %v167, 0
        %195 = vmatprep.subr.bf16.mxu0 0
        %196 = vmatpush1.bf16.msra.mxu0 0
        %197 = vmatprep.subr.bf16.mxu0 0
        %198 = vmatpush1.bf16.msra.mxu0 0
        %199 = vmatprep.subr.bf16.mxu0 0
        %200 = vmatpush1.bf16.msra.mxu0 0
        %201 = vmatprep.subr.bf16.mxu0 0
        %202 = vmatpush1.bf16.msra.mxu0 0
        %203 = vmatprep.subr.bf16.mxu0 0
        %204 = vmatpush1.bf16.msra.mxu0 0
        %205 = vmatprep.subr.bf16.mxu0 0
        %206 = vmatpush1.bf16.msra.mxu0 0
        %207 = vmatprep.subr.bf16.mxu0 0
        %208 = vmatpush1.bf16.msra.mxu0 %v188
        %209 = vmatprep.subr.bf16.mxu0 0
        %210 = vmatpush1.bf16.msra.mxu0 %v187
        %211 = vmatprep.subr.bf16.mxu0 0
        %212 = vmatpush2.bf16.msra.mxu0 0
        %213 = vmatprep.subr.bf16.mxu0 0
        %214 = vmatpush2.bf16.msra.mxu0 0
        %215 = vmatprep.subr.bf16.mxu0 0
        %216 = vmatpush2.bf16.msra.mxu0 0
        %217 = vmatprep.subr.bf16.mxu0 0
        %218 = vmatpush2.bf16.msra.mxu0 0
        %219 = vmatprep.subr.bf16.mxu0 0
        %220 = vmatpush2.bf16.msra.mxu0 0
        %221 = vmatprep.subr.bf16.mxu0 0
        %222 = vmatpush2.bf16.msra.mxu0 0
        %223 = vmatprep.subr.bf16.mxu0 0
        %224 = vmatpush2.bf16.msra.mxu0 0
        %225 = vmatprep.subr.bf16.mxu0 0
        %226 = vmatpush2.bf16.msra.mxu0 0
        %227 = vmatprep.mubr.bf16.mxu0 0
        %228 = vmatmul.mubr.bf16.gmra.mxu0 %v193
        %v229 = vpop.f32.mrf.mxu0
        %v230 = vadd.f32 %v177, %v229
        %v231 = vpop.f32.mrf.mxu0
        %v232 = vpop.f32.mrf.mxu0
        %v233 = vpop.f32.mrf.mxu0
        %234 = vdwg.mxu0
        %235 = vst [vmem:[%s161] sm:$0xff] %v230
        %s236 = sand.u32 %s93, 1
        %s237 = scalar_lea.sflag [#allocation3], %s236
        %s238 = sand.u32 %s93, 1
        %s239 = smul.addr %s238, 8
        %s240 = scalar_lea.vmem [#allocation2], %s239
        // Predicated region
        $region33: #{transformer_forward.9} parent=31 // pred_check
          %p241 = pneg %p103
        $region34: #{transformer_forward.9} parent=31 // pred_check_branch
          %243 = sbr.rel (%p241) target = $region36
        $region35: #{transformer_forward.9} parent=31 // pred_region
          %s245 = ssub.s32 128, 128
          %246 = vsyncadd %s237, %s245
          %s247 = smul.addr %s17, 128
          %s248 = scalar_lea.hbm %s3, %s247
          %s250 = sshll.u32 %s240, 4
          %s251 = int_to_ptr.vmem [resolvable:$true] %s250
          %253 = dma.vmem_to_hbm [thread:$0]  %s251, 128, %s248, %s237
        $region36: #{transformer_forward.9} parent=31 // pred_fallthru
          _
      $region32: #{transformer_forward.9} parent=5 // pred_fallthru
        _
      %p254 = scmp.le.s32.totalorder 2, %s12
      // Predicated region
      $region37: #{transformer_forward.9} parent=5 // pred_check
        %p255 = pneg %p254
      $region38: #{transformer_forward.9} parent=5 // pred_check_branch
        %257 = sbr.rel (%p255) target = $region40
      $region39: #{transformer_forward.9} parent=5 // pred_region
        %s258 = ssub.s32 %s12, 2
        // Predicated region
        $region41: #{transformer_forward.9} parent=39 // pred_check
          %p259 = pneg %p109
        $region42: #{transformer_forward.9} parent=39 // pred_check_branch
          %261 = sbr.rel (%p259) target = $region44
        $region43: #{transformer_forward.9} parent=39 // pred_region
          %s262 = sand.u32 %s94, 1
          %s263 = scalar_lea.sflag [#allocation3], %s262
          %s264 = sand.u32 %s94, 1
          %s265 = smul.addr %s264, 8
          %s266 = scalar_lea.vmem [#allocation2], %s265
          %267 = dma.done %s263, 128
        $region44: #{transformer_forward.9} parent=39 // pred_fallthru
          _
      $region40: #{transformer_forward.9} parent=5 // pred_fallthru
        _
    $region6: #{transformer_forward.9} parent=1 // loop_footer
      %s16 = sadd.s32 1, %s12
    $region7: #{transformer_forward.9} parent=1 // loop_footer_branch
      %11 = sbr.rel target = $region3
    $region8: #{transformer_forward.9} parent=1 // loop_exit
      _
    %268 = vsyncpa [#allocation3], 1
    %s269 = scalar_lea.sflag [#allocation3], 1
    %270 = vsyncpa %s269, 1

// kernel: transformer_forward.5
$region0: #{transformer_forward.5}
  #allocation0 [shape = 'u32[]', space=smem, size = 0x4, offset = 0x4, fixed_abs, tag = 'smem constant byte address 0x4 - core index']
  #allocation1 [shape = 'u32[144,128]{1,0:T(1,128)}', space=vmem, size = 0x12000, scoped, tag = 'internal scratch']
  #allocation2 [shape = 'f32[8,32]{1,0:T(8,128)}', space=vmem, size = 0x1000, scoped, tag = 'scratch operand']
  %s0 = inlined_call_operand.vmem [shape: f32[2,8,1], index: 0, kind: input, shape index: {}]
  %s1 = inlined_call_operand.vmem [shape: f32[2,1,8], index: 1, kind: input, shape index: {}]
  %s2 = inlined_call_operand.vmem [shape: bf16[2,8,32], index: 2, kind: input, shape index: {}]
  %s3 = inlined_call_operand.vmem [shape: bf16[32,96], index: 3, kind: input, shape index: {}]
  %s4 = inlined_call_operand.vmem [shape: f32[1,96], index: 4, kind: input, shape index: {}]
  %s5 = inlined_call_operand.vmem [shape: bf16[32,32], index: 5, kind: input, shape index: {}]
  %s6 = inlined_call_operand.vmem [shape: f32[1,32], index: 6, kind: input, shape index: {}]
  %s7 = inlined_call_operand.vmem [shape: f32[1,32], index: 7, kind: input, shape index: {}]
  %s8 = inlined_call_operand.vmem [shape: f32[1,32], index: 8, kind: input, shape index: {}]
  %s9 = inlined_call_operand.vmem [shape: bf16[32,64], index: 9, kind: input, shape index: {}]
  %s10 = inlined_call_operand.vmem [shape: f32[1,64], index: 10, kind: input, shape index: {}]
  %s11 = inlined_call_operand.vmem [shape: bf16[64,32], index: 11, kind: input, shape index: {}]
  %s12 = inlined_call_operand.vmem [shape: f32[1,32], index: 12, kind: input, shape index: {}]
  %s13 = inlined_call_operand.vmem [shape: f32[1,32], index: 13, kind: input, shape index: {}]
  %s14 = inlined_call_operand.vmem [shape: f32[1,32], index: 14, kind: input, shape index: {}]
  %s15 = inlined_call_operand.vmem [shape: bf16[2,8,32], index: 15, kind: output, shape index: {}]
  %s16 = sld [smem:[#allocation0]]
  $region93: #{transformer_forward.5} parent=0
    _
  %s18 = ssub.s32 1, %s16
  %s19 = scalar_select 0, %s18, %s16
  loop: start=0, step=1, limit=4
  $region2: #{transformer_forward.5} parent=0 // loop_pre_header
    _
  $region3: #{transformer_forward.5} parent=0 // loop_header
    %s21 = sphi 0, %s25
    %p22 = scmp.ge.s32.totalorder %s21, 4
    %s31 = sphi 0, %s33
    %s34 = sphi 0, %s31
    %s35 = sphi 0, %s34
    %s51 = sphi 0, %s35
    %s57 = sphi 0, %s59
    %s60 = sphi 0, %s57
    %s61 = sphi 0, %s60
    %s77 = sphi 0, %s61
    %s83 = sphi 0, %s85
    %s86 = sphi 0, %s83
    %s87 = sphi 0, %s86
    %s103 = sphi 0, %s87
    %s107 = sphi 0, %s107
    %s109 = sphi 0, %s107
    %s110 = sphi 0, %s109
    %s124 = sphi 0, %s110
    %s128 = sphi 0, %s128
    %s130 = sphi 0, %s128
    %s131 = sphi 0, %s130
    %s145 = sphi 0, %s131
    %s149 = sphi 0, %s149
    %s151 = sphi 0, %s149
    %s152 = sphi 0, %s151
    %s166 = sphi 0, %s152
    %s170 = sphi 0, %s170
    %s172 = sphi 0, %s170
    %s173 = sphi 0, %s172
    %s187 = sphi 0, %s173
    %s191 = sphi 0, %s191
    %s193 = sphi 0, %s191
    %s194 = sphi 0, %s193
    %s208 = sphi 0, %s194
    %s212 = sphi 0, %s212
    %s214 = sphi 0, %s212
    %s215 = sphi 0, %s214
    %s229 = sphi 0, %s215
    %s233 = sphi 0, %s233
    %s235 = sphi 0, %s233
    %s236 = sphi 0, %s235
    %s250 = sphi 0, %s236
    %s254 = sphi 0, %s254
    %s256 = sphi 0, %s254
    %s257 = sphi 0, %s256
    %s271 = sphi 0, %s257
    %s275 = sphi 0, %s275
    %s277 = sphi 0, %s275
    %s278 = sphi 0, %s277
    %s292 = sphi 0, %s278
    %s296 = sphi 0, %s296
    %s298 = sphi 0, %s296
    %s299 = sphi 0, %s298
    %s313 = sphi 0, %s299
    %s317 = sphi 0, %s317
    %s319 = sphi 0, %s317
    %s320 = sphi 0, %s319
    %s334 = sphi 0, %s320
    %s338 = sphi 0, %s338
    %s340 = sphi 0, %s338
    %s341 = sphi 0, %s340
    %s355 = sphi 0, %s341
    %s361 = sphi 0, %s363
    %s364 = sphi 0, %s361
    %s365 = sphi 0, %s364
    %s381 = sphi 0, %s365
  $region4: #{transformer_forward.5} parent=0 // loop_header_branch
    %24 = sbr.rel (%p22) target = $region8
  $region5: #{transformer_forward.5} parent=0 // loop_body
    %s26 = ssub.s32 %s21, 1
    %s27 = ssub.s32 %s21, 2
    %s28 = sadd.s32 %s21, 1
    %s29 = ssub.s32 %s21, %s28
    %p30 = scmp.eq.s32.totalorder %s29, 0
    %s32 = sadd.s32 %s31, 1
    %s33 = scalar_select %p30, %s31, %s32
    %p36 = pneg %p30
    %p37 = scmp.eq.s32.totalorder %s21, 1
    %p38 = por %p36, %p37
    %p39 = scmp.ne.s32.totalorder %s31, %s34
    %p40 = scmp.eq.s32.totalorder %s21, 0
    %p41 = por %p39, %p40
    %p42 = scmp.ne.s32.totalorder %s31, %s34
    %p43 = scmp.eq.s32.totalorder %s26, 1
    %p44 = por %p42, %p43
    %p45 = scmp.ne.s32.totalorder %s34, %s35
    %p46 = scmp.eq.s32.totalorder %s26, 0
    %p47 = por %p45, %p46
    %p48 = scmp.ne.s32.totalorder %s34, %s35
    %p49 = scmp.eq.s32.totalorder %s27, 1
    %p50 = por %p48, %p49
    %p52 = scmp.ne.s32.totalorder %s35, %s51
    %p53 = scmp.eq.s32.totalorder %s27, 0
    %p54 = por %p52, %p53
    %s55 = ssub.s32 %s21, %s28
    %p56 = scmp.eq.s32.totalorder %s55, 0
    %s58 = sadd.s32 %s57, 1
    %s59 = scalar_select %p56, %s57, %s58
    %p62 = pneg %p56
    %p63 = scmp.eq.s32.totalorder %s21, 1
    %p64 = por %p62, %p63
    %p65 = scmp.ne.s32.totalorder %s57, %s60
    %p66 = scmp.eq.s32.totalorder %s21, 0
    %p67 = por %p65, %p66
    %p68 = scmp.ne.s32.totalorder %s57, %s60
    %p69 = scmp.eq.s32.totalorder %s26, 1
    %p70 = por %p68, %p69
    %p71 = scmp.ne.s32.totalorder %s60, %s61
    %p72 = scmp.eq.s32.totalorder %s26, 0
    %p73 = por %p71, %p72
    %p74 = scmp.ne.s32.totalorder %s60, %s61
    %p75 = scmp.eq.s32.totalorder %s27, 1
    %p76 = por %p74, %p75
    %p78 = scmp.ne.s32.totalorder %s61, %s77
    %p79 = scmp.eq.s32.totalorder %s27, 0
    %p80 = por %p78, %p79
    %s81 = ssub.s32 %s21, %s28
    %p82 = scmp.eq.s32.totalorder %s81, 0
    %s84 = sadd.s32 %s83, 1
    %s85 = scalar_select %p82, %s83, %s84
    %p88 = pneg %p82
    %p89 = scmp.eq.s32.totalorder %s21, 1
    %p90 = por %p88, %p89
    %p91 = scmp.ne.s32.totalorder %s83, %s86
    %p92 = scmp.eq.s32.totalorder %s21, 0
    %p93 = por %p91, %p92
    %p94 = scmp.ne.s32.totalorder %s83, %s86
    %p95 = scmp.eq.s32.totalorder %s26, 1
    %p96 = por %p94, %p95
    %p97 = scmp.ne.s32.totalorder %s86, %s87
    %p98 = scmp.eq.s32.totalorder %s26, 0
    %p99 = por %p97, %p98
    %p100 = scmp.ne.s32.totalorder %s86, %s87
    %p101 = scmp.eq.s32.totalorder %s27, 1
    %p102 = por %p100, %p101
    %p104 = scmp.ne.s32.totalorder %s87, %s103
    %p105 = scmp.eq.s32.totalorder %s27, 0
    %p106 = por %p104, %p105
    %s108 = sadd.s32 %s107, 1
    %p111 = scmp.eq.s32.totalorder %s21, 1
    %p112 = scmp.ne.s32.totalorder %s107, %s109
    %p113 = scmp.eq.s32.totalorder %s21, 0
    %p114 = por %p112, %p113
    %p115 = scmp.ne.s32.totalorder %s107, %s109
    %p116 = scmp.eq.s32.totalorder %s26, 1
    %p117 = por %p115, %p116
    %p118 = scmp.ne.s32.totalorder %s109, %s110
    %p119 = scmp.eq.s32.totalorder %s26, 0
    %p120 = por %p118, %p119
    %p121 = scmp.ne.s32.totalorder %s109, %s110
    %p122 = scmp.eq.s32.totalorder %s27, 1
    %p123 = por %p121, %p122
    %p125 = scmp.ne.s32.totalorder %s110, %s124
    %p126 = scmp.eq.s32.totalorder %s27, 0
    %p127 = por %p125, %p126
    %s129 = sadd.s32 %s128, 1
    %p132 = scmp.eq.s32.totalorder %s21, 1
    %p133 = scmp.ne.s32.totalorder %s128, %s130
    %p134 = scmp.eq.s32.totalorder %s21, 0
    %p135 = por %p133, %p134
    %p136 = scmp.ne.s32.totalorder %s128, %s130
    %p137 = scmp.eq.s32.totalorder %s26, 1
    %p138 = por %p136, %p137
    %p139 = scmp.ne.s32.totalorder %s130, %s131
    %p140 = scmp.eq.s32.totalorder %s26, 0
    %p141 = por %p139, %p140
    %p142 = scmp.ne.s32.totalorder %s130, %s131
    %p143 = scmp.eq.s32.totalorder %s27, 1
    %p144 = por %p142, %p143
    %p146 = scmp.ne.s32.totalorder %s131, %s145
    %p147 = scmp.eq.s32.totalorder %s27, 0
    %p148 = por %p146, %p147
    %s150 = sadd.s32 %s149, 1
    %p153 = scmp.eq.s32.totalorder %s21, 1
    %p154 = scmp.ne.s32.totalorder %s149, %s151
    %p155 = scmp.eq.s32.totalorder %s21, 0
    %p156 = por %p154, %p155
    %p157 = scmp.ne.s32.totalorder %s149, %s151
    %p158 = scmp.eq.s32.totalorder %s26, 1
    %p159 = por %p157, %p158
    %p160 = scmp.ne.s32.totalorder %s151, %s152
    %p161 = scmp.eq.s32.totalorder %s26, 0
    %p162 = por %p160, %p161
    %p163 = scmp.ne.s32.totalorder %s151, %s152
    %p164 = scmp.eq.s32.totalorder %s27, 1
    %p165 = por %p163, %p164
    %p167 = scmp.ne.s32.totalorder %s152, %s166
    %p168 = scmp.eq.s32.totalorder %s27, 0
    %p169 = por %p167, %p168
    %s171 = sadd.s32 %s170, 1
    %p174 = scmp.eq.s32.totalorder %s21, 1
    %p175 = scmp.ne.s32.totalorder %s170, %s172
    %p176 = scmp.eq.s32.totalorder %s21, 0
    %p177 = por %p175, %p176
    %p178 = scmp.ne.s32.totalorder %s170, %s172
    %p179 = scmp.eq.s32.totalorder %s26, 1
    %p180 = por %p178, %p179
    %p181 = scmp.ne.s32.totalorder %s172, %s173
    %p182 = scmp.eq.s32.totalorder %s26, 0
    %p183 = por %p181, %p182
    %p184 = scmp.ne.s32.totalorder %s172, %s173
    %p185 = scmp.eq.s32.totalorder %s27, 1
    %p186 = por %p184, %p185
    %p188 = scmp.ne.s32.totalorder %s173, %s187
    %p189 = scmp.eq.s32.totalorder %s27, 0
    %p190 = por %p188, %p189
    %s192 = sadd.s32 %s191, 1
    %p195 = scmp.eq.s32.totalorder %s21, 1
    %p196 = scmp.ne.s32.totalorder %s191, %s193
    %p197 = scmp.eq.s32.totalorder %s21, 0
    %p198 = por %p196, %p197
    %p199 = scmp.ne.s32.totalorder %s191, %s193
    %p200 = scmp.eq.s32.totalorder %s26, 1
    %p201 = por %p199, %p200
    %p202 = scmp.ne.s32.totalorder %s193, %s194
    %p203 = scmp.eq.s32.totalorder %s26, 0
    %p204 = por %p202, %p203
    %p205 = scmp.ne.s32.totalorder %s193, %s194
    %p206 = scmp.eq.s32.totalorder %s27, 1
    %p207 = por %p205, %p206
    %p209 = scmp.ne.s32.totalorder %s194, %s208
    %p210 = scmp.eq.s32.totalorder %s27, 0
    %p211 = por %p209, %p210
    %s213 = sadd.s32 %s212, 1
    %p216 = scmp.eq.s32.totalorder %s21, 1
    %p217 = scmp.ne.s32.totalorder %s212, %s214
    %p218 = scmp.eq.s32.totalorder %s21, 0
    %p219 = por %p217, %p218
    %p220 = scmp.ne.s32.totalorder %s212, %s214
    %p221 = scmp.eq.s32.totalorder %s26, 1
    %p222 = por %p220, %p221
    %p223 = scmp.ne.s32.totalorder %s214, %s215
    %p224 = scmp.eq.s32.totalorder %s26, 0
    %p225 = por %p223, %p224
    %p226 = scmp.ne.s32.totalorder %s214, %s215
    %p227 = scmp.eq.s32.totalorder %s27, 1
    %p228 = por %p226, %p227
    %p230 = scmp.ne.s32.totalorder %s215, %s229
    %p231 = scmp.eq.s32.totalorder %s27, 0
    %p232 = por %p230, %p231
    %s234 = sadd.s32 %s233, 1
    %p237 = scmp.eq.s32.totalorder %s21, 1
    %p238 = scmp.ne.s32.totalorder %s233, %s235
    %p239 = scmp.eq.s32.totalorder %s21, 0
    %p240 = por %p238, %p239
    %p241 = scmp.ne.s32.totalorder %s233, %s235
    %p242 = scmp.eq.s32.totalorder %s26, 1
    %p243 = por %p241, %p242
    %p244 = scmp.ne.s32.totalorder %s235, %s236
    %p245 = scmp.eq.s32.totalorder %s26, 0
    %p246 = por %p244, %p245
    %p247 = scmp.ne.s32.totalorder %s235, %s236
    %p248 = scmp.eq.s32.totalorder %s27, 1
    %p249 = por %p247, %p248
    %p251 = scmp.ne.s32.totalorder %s236, %s250
    %p252 = scmp.eq.s32.totalorder %s27, 0
    %p253 = por %p251, %p252
    %s255 = sadd.s32 %s254, 1
    %p258 = scmp.eq.s32.totalorder %s21, 1
    %p259 = scmp.ne.s32.totalorder %s254, %s256
    %p260 = scmp.eq.s32.totalorder %s21, 0
    %p261 = por %p259, %p260
    %p262 = scmp.ne.s32.totalorder %s254, %s256
    %p263 = scmp.eq.s32.totalorder %s26, 1
    %p264 = por %p262, %p263
    %p265 = scmp.ne.s32.totalorder %s256, %s257
    %p266 = scmp.eq.s32.totalorder %s26, 0
    %p267 = por %p265, %p266
    %p268 = scmp.ne.s32.totalorder %s256, %s257
    %p269 = scmp.eq.s32.totalorder %s27, 1
    %p270 = por %p268, %p269
    %p272 = scmp.ne.s32.totalorder %s257, %s271
    %p273 = scmp.eq.s32.totalorder %s27, 0
    %p274 = por %p272, %p273
    %s276 = sadd.s32 %s275, 1
    %p279 = scmp.eq.s32.totalorder %s21, 1
    %p280 = scmp.ne.s32.totalorder %s275, %s277
    %p281 = scmp.eq.s32.totalorder %s21, 0
    %p282 = por %p280, %p281
    %p283 = scmp.ne.s32.totalorder %s275, %s277
    %p284 = scmp.eq.s32.totalorder %s26, 1
    %p285 = por %p283, %p284
    %p286 = scmp.ne.s32.totalorder %s277, %s278
    %p287 = scmp.eq.s32.totalorder %s26, 0
    %p288 = por %p286, %p287
    %p289 = scmp.ne.s32.totalorder %s277, %s278
    %p290 = scmp.eq.s32.totalorder %s27, 1
    %p291 = por %p289, %p290
    %p293 = scmp.ne.s32.totalorder %s278, %s292
    %p294 = scmp.eq.s32.totalorder %s27, 0
    %p295 = por %p293, %p294
    %s297 = sadd.s32 %s296, 1
    %p300 = scmp.eq.s32.totalorder %s21, 1
    %p301 = scmp.ne.s32.totalorder %s296, %s298
    %p302 = scmp.eq.s32.totalorder %s21, 0
    %p303 = por %p301, %p302
    %p304 = scmp.ne.s32.totalorder %s296, %s298
    %p305 = scmp.eq.s32.totalorder %s26, 1
    %p306 = por %p304, %p305
    %p307 = scmp.ne.s32.totalorder %s298, %s299
    %p308 = scmp.eq.s32.totalorder %s26, 0
    %p309 = por %p307, %p308
    %p310 = scmp.ne.s32.totalorder %s298, %s299
    %p311 = scmp.eq.s32.totalorder %s27, 1
    %p312 = por %p310, %p311
    %p314 = scmp.ne.s32.totalorder %s299, %s313
    %p315 = scmp.eq.s32.totalorder %s27, 0
    %p316 = por %p314, %p315
    %s318 = sadd.s32 %s317, 1
    %p321 = scmp.eq.s32.totalorder %s21, 1
    %p322 = scmp.ne.s32.totalorder %s317, %s319
    %p323 = scmp.eq.s32.totalorder %s21, 0
    %p324 = por %p322, %p323
    %p325 = scmp.ne.s32.totalorder %s317, %s319
    %p326 = scmp.eq.s32.totalorder %s26, 1
    %p327 = por %p325, %p326
    %p328 = scmp.ne.s32.totalorder %s319, %s320
    %p329 = scmp.eq.s32.totalorder %s26, 0
    %p330 = por %p328, %p329
    %p331 = scmp.ne.s32.totalorder %s319, %s320
    %p332 = scmp.eq.s32.totalorder %s27, 1
    %p333 = por %p331, %p332
    %p335 = scmp.ne.s32.totalorder %s320, %s334
    %p336 = scmp.eq.s32.totalorder %s27, 0
    %p337 = por %p335, %p336
    %s339 = sadd.s32 %s338, 1
    %p342 = scmp.eq.s32.totalorder %s21, 1
    %p343 = scmp.ne.s32.totalorder %s338, %s340
    %p344 = scmp.eq.s32.totalorder %s21, 0
    %p345 = por %p343, %p344
    %p346 = scmp.ne.s32.totalorder %s338, %s340
    %p347 = scmp.eq.s32.totalorder %s26, 1
    %p348 = por %p346, %p347
    %p349 = scmp.ne.s32.totalorder %s340, %s341
    %p350 = scmp.eq.s32.totalorder %s26, 0
    %p351 = por %p349, %p350
    %p352 = scmp.ne.s32.totalorder %s340, %s341
    %p353 = scmp.eq.s32.totalorder %s27, 1
    %p354 = por %p352, %p353
    %p356 = scmp.ne.s32.totalorder %s341, %s355
    %p357 = scmp.eq.s32.totalorder %s27, 0
    %p358 = por %p356, %p357
    %s359 = ssub.s32 %s21, %s28
    %p360 = scmp.eq.s32.totalorder %s359, 0
    %s362 = sadd.s32 %s361, 1
    %s363 = scalar_select %p360, %s361, %s362
    %p366 = pneg %p360
    %p367 = scmp.eq.s32.totalorder %s21, 1
    %p368 = por %p366, %p367
    %p369 = scmp.ne.s32.totalorder %s361, %s364
    %p370 = scmp.eq.s32.totalorder %s21, 0
    %p371 = por %p369, %p370
    %p372 = scmp.ne.s32.totalorder %s361, %s364
    %p373 = scmp.eq.s32.totalorder %s26, 1
    %p374 = por %p372, %p373
    %p375 = scmp.ne.s32.totalorder %s364, %s365
    %p376 = scmp.eq.s32.totalorder %s26, 0
    %p377 = por %p375, %p376
    %p378 = scmp.ne.s32.totalorder %s364, %s365
    %p379 = scmp.eq.s32.totalorder %s27, 1
    %p380 = por %p378, %p379
    %p382 = scmp.ne.s32.totalorder %s365, %s381
    %p383 = scmp.eq.s32.totalorder %s27, 0
    %p384 = por %p382, %p383
    %p385 = scmp.le.s32.totalorder 1, %s21
    %p386 = scmp.lt.s32.totalorder %s21, 3
    %p387 = pnand %p385, %p386
    %p388 = pneg %p387
    // Predicated region
    $region9: #{transformer_forward.5} parent=5 // pred_check
      _
    $region10: #{transformer_forward.5} parent=5 // pred_check_branch
      %390 = sbr.rel (%p387) target = $region12
    $region11: #{transformer_forward.5} parent=5 // pred_region
      %s391 = ssub.s32 %s21, 1
      // Predicated region
      $region13: #{transformer_forward.5} parent=11 // pred_check
        %p392 = pneg %p120
      $region14: #{transformer_forward.5} parent=11 // pred_check_branch
        %394 = sbr.rel (%p392) target = $region16
      $region15: #{transformer_forward.5} parent=11 // pred_region
        _
      $region16: #{transformer_forward.5} parent=11 // pred_fallthru
        _
      // Predicated region
      $region17: #{transformer_forward.5} parent=11 // pred_check
        %p395 = pneg %p141
      $region18: #{transformer_forward.5} parent=11 // pred_check_branch
        %397 = sbr.rel (%p395) target = $region20
      $region19: #{transformer_forward.5} parent=11 // pred_region
        _
      $region20: #{transformer_forward.5} parent=11 // pred_fallthru
        _
      // Predicated region
      $region21: #{transformer_forward.5} parent=11 // pred_check
        %p398 = pneg %p162
      $region22: #{transformer_forward.5} parent=11 // pred_check_branch
        %400 = sbr.rel (%p398) target = $region24
      $region23: #{transformer_forward.5} parent=11 // pred_region
        _
      $region24: #{transformer_forward.5} parent=11 // pred_fallthru
        _
      // Predicated region
      $region25: #{transformer_forward.5} parent=11 // pred_check
        %p401 = pneg %p183
      $region26: #{transformer_forward.5} parent=11 // pred_check_branch
        %403 = sbr.rel (%p401) target = $region28
      $region27: #{transformer_forward.5} parent=11 // pred_region
        _
      $region28: #{transformer_forward.5} parent=11 // pred_fallthru
        _
      // Predicated region
      $region29: #{transformer_forward.5} parent=11 // pred_check
        %p404 = pneg %p204
      $region30: #{transformer_forward.5} parent=11 // pred_check_branch
        %406 = sbr.rel (%p404) target = $region32
      $region31: #{transformer_forward.5} parent=11 // pred_region
        _
      $region32: #{transformer_forward.5} parent=11 // pred_fallthru
        _
      // Predicated region
      $region33: #{transformer_forward.5} parent=11 // pred_check
        %p407 = pneg %p225
      $region34: #{transformer_forward.5} parent=11 // pred_check_branch
        %409 = sbr.rel (%p407) target = $region36
      $region35: #{transformer_forward.5} parent=11 // pred_region
        _
      $region36: #{transformer_forward.5} parent=11 // pred_fallthru
        _
      // Predicated region
      $region37: #{transformer_forward.5} parent=11 // pred_check
        %p410 = pneg %p246
      $region38: #{transformer_forward.5} parent=11 // pred_check_branch
        %412 = sbr.rel (%p410) target = $region40
      $region39: #{transformer_forward.5} parent=11 // pred_region
        _
      $region40: #{transformer_forward.5} parent=11 // pred_fallthru
        _
      // Predicated region
      $region41: #{transformer_forward.5} parent=11 // pred_check
        %p413 = pneg %p267
      $region42: #{transformer_forward.5} parent=11 // pred_check_branch
        %415 = sbr.rel (%p413) target = $region44
      $region43: #{transformer_forward.5} parent=11 // pred_region
        _
      $region44: #{transformer_forward.5} parent=11 // pred_fallthru
        _
      // Predicated region
      $region45: #{transformer_forward.5} parent=11 // pred_check
        %p416 = pneg %p288
      $region46: #{transformer_forward.5} parent=11 // pred_check_branch
        %418 = sbr.rel (%p416) target = $region48
      $region47: #{transformer_forward.5} parent=11 // pred_region
        _
      $region48: #{transformer_forward.5} parent=11 // pred_fallthru
        _
      // Predicated region
      $region49: #{transformer_forward.5} parent=11 // pred_check
        %p419 = pneg %p309
      $region50: #{transformer_forward.5} parent=11 // pred_check_branch
        %421 = sbr.rel (%p419) target = $region52
      $region51: #{transformer_forward.5} parent=11 // pred_region
        _
      $region52: #{transformer_forward.5} parent=11 // pred_fallthru
        _
      // Predicated region
      $region53: #{transformer_forward.5} parent=11 // pred_check
        %p422 = pneg %p330
      $region54: #{transformer_forward.5} parent=11 // pred_check_branch
        %424 = sbr.rel (%p422) target = $region56
      $region55: #{transformer_forward.5} parent=11 // pred_region
        _
      $region56: #{transformer_forward.5} parent=11 // pred_fallthru
        _
      // Predicated region
      $region57: #{transformer_forward.5} parent=11 // pred_check
        %p425 = pneg %p351
      $region58: #{transformer_forward.5} parent=11 // pred_check_branch
        %427 = sbr.rel (%p425) target = $region60
      $region59: #{transformer_forward.5} parent=11 // pred_region
        _
      $region60: #{transformer_forward.5} parent=11 // pred_fallthru
        _
    $region12: #{transformer_forward.5} parent=5 // pred_fallthru
      _
    %p428 = scmp.lt.s32.totalorder %s21, 2
    // Predicated region
    $region61: #{transformer_forward.5} parent=5 // pred_check
      %p429 = pneg %p428
    $region62: #{transformer_forward.5} parent=5 // pred_check_branch
      %431 = sbr.rel (%p429) target = $region64
    $region63: #{transformer_forward.5} parent=5 // pred_region
      // Predicated region
      $region65: #{transformer_forward.5} parent=63 // pred_check
        %p432 = pneg %p41
      $region66: #{transformer_forward.5} parent=63 // pred_check_branch
        %434 = sbr.rel (%p432) target = $region68
      $region67: #{transformer_forward.5} parent=63 // pred_region
        %p435 = scmp.lt.s32.totalorder %s21, 1
        %s436 = scalar_select %p435, %s21, 1
        %s437 = smul.addr %s436, 8
        %s438 = scalar_lea.vmem %s0, %s437
      $region68: #{transformer_forward.5} parent=63 // pred_fallthru
        _
      // Predicated region
      $region69: #{transformer_forward.5} parent=63 // pred_check
        %p439 = pneg %p67
      $region70: #{transformer_forward.5} parent=63 // pred_check_branch
        %441 = sbr.rel (%p439) target = $region72
      $region71: #{transformer_forward.5} parent=63 // pred_region
        %p442 = scmp.lt.s32.totalorder %s21, 1
        %s443 = scalar_select %p442, %s21, 1
        %s444 = scalar_lea.vmem %s1, %s443
      $region72: #{transformer_forward.5} parent=63 // pred_fallthru
        _
      // Predicated region
      $region73: #{transformer_forward.5} parent=63 // pred_check
        %p445 = pneg %p93
      $region74: #{transformer_forward.5} parent=63 // pred_check_branch
        %447 = sbr.rel (%p445) target = $region76
      $region75: #{transformer_forward.5} parent=63 // pred_region
        %p448 = scmp.lt.s32.totalorder %s21, 1
        %s449 = scalar_select %p448, %s21, 1
        %s450 = smul.addr %s449, 4
        %s451 = scalar_lea.vmem %s2, %s450
      $region76: #{transformer_forward.5} parent=63 // pred_fallthru
        _
    $region64: #{transformer_forward.5} parent=5 // pred_fallthru
      _
    %p452 = scmp.le.s32.totalorder 1, %s21
    %p453 = scmp.lt.s32.totalorder %s21, 3
    %p454 = pnand %p452, %p453
    %p455 = pneg %p454
    // Predicated region
    $region77: #{transformer_forward.5} parent=5 // pred_check
      _
    $region78: #{transformer_forward.5} parent=5 // pred_check_branch
      %457 = sbr.rel (%p454) target = $region80
    $region79: #{transformer_forward.5} parent=5 // pred_region
      %s458 = ssub.s32 %s21, 1
      %p459 = scmp.lt.s32.totalorder %s26, 1
      %s460 = scalar_select %p459, %s26, 1
      %s461 = smul.addr %s460, 8
      %s462 = scalar_lea.vmem %s0, %s461
      %p463 = pneg %p47
      %p464 = pneg %p44
      %p465 = scmp.lt.s32.totalorder %s26, 1
      %s466 = scalar_select %p465, %s26, 1
      %s467 = scalar_lea.vmem %s1, %s466
      %p468 = pneg %p73
      %p469 = pneg %p70
      %p470 = scmp.lt.s32.totalorder %s26, 1
      %s471 = scalar_select %p470, %s26, 1
      %s472 = smul.addr %s471, 4
      %s473 = scalar_lea.vmem %s2, %s472
      %p474 = pneg %p99
      %p475 = pneg %p96
      %p476 = pneg %p120
      %p477 = pneg %p117
      %p478 = pneg %p141
      %p479 = pneg %p138
      %p480 = pneg %p162
      %p481 = pneg %p159
      %p482 = pneg %p183
      %p483 = pneg %p180
      %p484 = pneg %p204
      %p485 = pneg %p201
      %p486 = pneg %p225
      %p487 = pneg %p222
      %p488 = pneg %p246
      %p489 = pneg %p243
      %p490 = pneg %p267
      %p491 = pneg %p264
      %p492 = pneg %p288
      %p493 = pneg %p285
      %p494 = pneg %p309
      %p495 = pneg %p306
      %p496 = pneg %p330
      %p497 = pneg %p327
      %p498 = pneg %p351
      %p499 = pneg %p348
      %p500 = pneg %p377
      %p501 = pneg %p374
      %p502 = scmp.lt.s32.totalorder %s26, 1
      %s503 = scalar_select %p502, %s26, 1
      %s504 = smul.addr %s503, 4
      %s505 = scalar_lea.vmem %s15, %s504
      %p506 = scmp.lt.s32.totalorder %s26, 1
      %s507 = scalar_select %p506, %s26, 1
      %s508 = smul.addr %s507, 8
      %s509 = scalar_lea.vmem %s0, %s508
      %p510 = scmp.lt.s32.totalorder %s26, 1
      %s511 = scalar_select %p510, %s26, 1
      %s512 = scalar_lea.vmem %s1, %s511
      %p513 = scmp.lt.s32.totalorder %s26, 1
      %s514 = scalar_select %p513, %s26, 1
      %s515 = smul.addr %s514, 4
      %s516 = scalar_lea.vmem %s2, %s515
      %p517 = scmp.lt.s32.totalorder %s26, 1
      %s518 = scalar_select %p517, %s26, 1
      %s519 = smul.addr %s518, 4
      %s520 = scalar_lea.vmem %s15, %s519
      %v522 = vld [vmem:[%s516] sm:$0xf]
      %v523 = vunpack.c.l.bf16 %v522
      %v524 = vld [vmem:[%s509] sm:$0xff]
      %vm525 = vcmp.gt.f32.partialorder %v524, 0.5
      %v526 = vld [vmem:[%s512] sm:$0x1]
      %vm527 = vcmp.gt.f32.partialorder %v526, 0.5
      %v528 = vsel %vm525, 1, 0
      %529 = vset.pattern.permute.xlu0 0
      %530 = vperm.xlu0 %529, %v528
      %v531 = vpop.permute.xlu0 %530
      %vm532 = vcmp.eq.s32.totalorder %v531, 1
      %v533 = vsel %vm527, 1, 0
      %v534 = vlaneseq
      %v535 = vshrl.u32 %v534, 7
      %v536 = vsub.s32 0, %v535
      %v537 = vrot.slane %v533, %v536
      %vm538 = vcmp.eq.s32.totalorder %v537, 1
      %vm539 = vmand %vm532, %vm538
      %v540 = vld [vmem:[%s3] sm:$0xf]
      %v541 = vld [vmem:[%s3 + $0x4] sm:$0xf]
      %v542 = vld [vmem:[%s3 + $0x8] sm:$0xf]
      %v543 = vld [vmem:[%s3 + $0xc] sm:$0xf]
      %v544 = vld [vmem:[%s4] sm:$0x1]
      %v546 = vlaneseq
      %v547 = vshrl.u32 %v546, 7
      %v548 = vsub.s32 0, %v547
      %v549 = vrot.slane %v544, %v548
      %v555 = vunpack.c.l.b16 %v540
      %v556 = vunpack.c.l.b16 %v541
      %v557 = vunpack.c.l.b16 %v542
      %v558 = vunpack.c.l.b16 %v543
      %v559 = vpack.c.b16 %v556, %v555
      %v560 = vpack.c.b16 %v558, %v557
      %vm563 = vcmask 261120
      %v565 = vsel %vm563, %v522, 0
      %567 = vmatprep.subr.bf16.mxu0 0
      %568 = vmatpush1.bf16.msra.mxu0 0
      %569 = vmatprep.subr.bf16.mxu0 0
      %570 = vmatpush1.bf16.msra.mxu0 0
      %571 = vmatprep.subr.bf16.mxu0 0
      %572 = vmatpush1.bf16.msra.mxu0 0
      %573 = vmatprep.subr.bf16.mxu0 0
      %574 = vmatpush1.bf16.msra.mxu0 0
      %575 = vmatprep.subr.bf16.mxu0 0
      %576 = vmatpush1.bf16.msra.mxu0 0
      %577 = vmatprep.subr.bf16.mxu0 0
      %578 = vmatpush1.bf16.msra.mxu0 0
      %579 = vmatprep.subr.bf16.mxu0 0
      %580 = vmatpush1.bf16.msra.mxu0 %v560
      %581 = vmatprep.subr.bf16.mxu0 0
      %582 = vmatpush1.bf16.msra.mxu0 %v559
      %583 = vmatprep.subr.bf16.mxu0 0
      %584 = vmatpush2.bf16.msra.mxu0 0
      %585 = vmatprep.subr.bf16.mxu0 0
      %586 = vmatpush2.bf16.msra.mxu0 0
      %587 = vmatprep.subr.bf16.mxu0 0
      %588 = vmatpush2.bf16.msra.mxu0 0
      %589 = vmatprep.subr.bf16.mxu0 0
      %590 = vmatpush2.bf16.msra.mxu0 0
      %591 = vmatprep.subr.bf16.mxu0 0
      %592 = vmatpush2.bf16.msra.mxu0 0
      %593 = vmatprep.subr.bf16.mxu0 0
      %594 = vmatpush2.bf16.msra.mxu0 0
      %595 = vmatprep.subr.bf16.mxu0 0
      %596 = vmatpush2.bf16.msra.mxu0 0
      %597 = vmatprep.subr.bf16.mxu0 0
      %598 = vmatpush2.bf16.msra.mxu0 0
      %599 = vmatprep.mubr.bf16.mxu0 0
      %600 = vmatmul.mubr.bf16.gmra.mxu0 %v565
      %v601 = vpop.f32.mrf.mxu0
      %v602 = vadd.f32 %v549, %v601
      %v603 = vpop.f32.mrf.mxu0
      %v604 = vpop.f32.mrf.mxu0
      %v605 = vpop.f32.mrf.mxu0
      %606 = vdwg.mxu0
      %v607 = vpack.c.bf16 %v602, %v602
      %609 = vrot.lane.b32.xlu0 %v607, 96
      %v610 = vpop.permute.xlu0 %609
      %vm611 = vcmask 64512
      %v613 = vsel %vm611, %v607, 0
      %v616 = vsel %vm611, %v610, 0
      %618 = vmatprep.subr.bf16.mxu0 0
      %619 = vmatpush1.bf16.xpose.msra.mxu0 0
      %620 = vmatprep.subr.bf16.mxu0 0
      %621 = vmatpush1.bf16.xpose.msra.mxu0 0
      %622 = vmatprep.subr.bf16.mxu0 0
      %623 = vmatpush1.bf16.xpose.msra.mxu0 0
      %624 = vmatprep.subr.bf16.mxu0 0
      %625 = vmatpush1.bf16.xpose.msra.mxu0 0
      %626 = vmatprep.subr.bf16.mxu0 0
      %627 = vmatpush1.bf16.xpose.msra.mxu0 0
      %628 = vmatprep.subr.bf16.mxu0 0
      %629 = vmatpush1.bf16.xpose.msra.mxu0 0
      %630 = vmatprep.subr.bf16.mxu0 0
      %631 = vmatpush1.bf16.xpose.msra.mxu0 0
      %632 = vmatprep.subr.bf16.mxu0 0
      %633 = vmatpush1.bf16.xpose.msra.mxu0 %v616
      %634 = vmatprep.subr.bf16.mxu0 0
      %635 = vmatpush2.bf16.xpose.msra.mxu0 0
      %636 = vmatprep.subr.bf16.mxu0 0
      %637 = vmatpush2.bf16.xpose.msra.mxu0 0
      %638 = vmatprep.subr.bf16.mxu0 0
      %639 = vmatpush2.bf16.xpose.msra.mxu0 0
      %640 = vmatprep.subr.bf16.mxu0 0
      %641 = vmatpush2.bf16.xpose.msra.mxu0 0
      %642 = vmatprep.subr.bf16.mxu0 0
      %643 = vmatpush2.bf16.xpose.msra.mxu0 0
      %644 = vmatprep.subr.bf16.mxu0 0
      %645 = vmatpush2.bf16.xpose.msra.mxu0 0
      %646 = vmatprep.subr.bf16.mxu0 0
      %647 = vmatpush2.bf16.xpose.msra.mxu0 0
      %648 = vmatprep.subr.bf16.mxu0 0
      %649 = vmatpush2.bf16.xpose.msra.mxu0 0
      %650 = vmatprep.mubr.bf16.mxu0 0
      %651 = vmatmul.mubr.bf16.gmra.mxu0 %v613
      %v652 = vpop.f32.mrf.mxu0
      %v653 = vadd.f32 0.0, %v652
      %v654 = vpop.f32.mrf.mxu0
      %v655 = vpop.f32.mrf.mxu0
      %v656 = vpop.f32.mrf.mxu0
      %657 = vdwg.mxu0
      %v658 = vmul.f32 %v653, 0.35355338
      %v659 = vsel %vm539, %v658, -1e+09
      %v660 = vsel %vm611, %v659, -inf
      %661 = vmax.xlane.f32.xlu0 %v660
      %v662 = vpop.xlane.xlu0 %661
      %v663 = vsub.f32 %v659, %v662
      %v664 = vmul.f32 %v663, 1.442695
      %v665 = vpow.pop %v664
      %v666 = vsel %vm611, %v665, 0.0
      %667 = vadd.xlane.f32.xlu0 %v666
      %v668 = vpop.xlane.xlu0 %667
      %v669 = vrcp.pop %v668
      %v670 = vmul.f32 %v665, %v669
      %v671 = vpack.c.bf16 %v670, %v670
      %672 = vrot.lane.b32.xlu0 %v607, 64
      %v673 = vpop.permute.xlu0 %672
      %v675 = vsel %vm611, %v671, 0
      %vm677 = vcmask 1043456
      %v679 = vsel %vm677, %v673, 0
      %681 = vmatprep.subr.bf16.mxu0 0
      %682 = vmatpush1.bf16.msra.mxu0 0
      %683 = vmatprep.subr.bf16.mxu0 0
      %684 = vmatpush1.bf16.msra.mxu0 0
      %685 = vmatprep.subr.bf16.mxu0 0
      %686 = vmatpush1.bf16.msra.mxu0 0
      %687 = vmatprep.subr.bf16.mxu0 0
      %688 = vmatpush1.bf16.msra.mxu0 0
      %689 = vmatprep.subr.bf16.mxu0 0
      %690 = vmatpush1.bf16.msra.mxu0 0
      %691 = vmatprep.subr.bf16.mxu0 0
      %692 = vmatpush1.bf16.msra.mxu0 0
      %693 = vmatprep.subr.bf16.mxu0 0
      %694 = vmatpush1.bf16.msra.mxu0 0
      %695 = vmatprep.subr.bf16.mxu0 0
      %696 = vmatpush1.bf16.msra.mxu0 %v679
      %697 = vmatprep.subr.bf16.mxu0 0
      %698 = vmatpush2.bf16.msra.mxu0 0
      %699 = vmatprep.subr.bf16.mxu0 0
      %700 = vmatpush2.bf16.msra.mxu0 0
      %701 = vmatprep.subr.bf16.mxu0 0
      %702 = vmatpush2.bf16.msra.mxu0 0
      %703 = vmatprep.subr.bf16.mxu0 0
      %704 = vmatpush2.bf16.msra.mxu0 0
      %705 = vmatprep.subr.bf16.mxu0 0
      %706 = vmatpush2.bf16.msra.mxu0 0
      %707 = vmatprep.subr.bf16.mxu0 0
      %708 = vmatpush2.bf16.msra.mxu0 0
      %709 = vmatprep.subr.bf16.mxu0 0
      %710 = vmatpush2.bf16.msra.mxu0 0
      %711 = vmatprep.subr.bf16.mxu0 0
      %712 = vmatpush2.bf16.msra.mxu0 0
      %713 = vmatprep.mubr.bf16.mxu0 0
      %714 = vmatmul.mubr.bf16.gmra.mxu0 %v675
      %v715 = vpop.f32.mrf.mxu0
      %v716 = vadd.f32 0.0, %v715
      %v717 = vpop.f32.mrf.mxu0
      %v718 = vpop.f32.mrf.mxu0
      %v719 = vpop.f32.mrf.mxu0
      %720 = vdwg.mxu0
      %721 = vst.msk [vmem:[#allocation2] sm:$0xff] %vm611, %v716
      %722 = vrot.lane.b32.xlu0 %v607, 120
      %v723 = vpop.permute.xlu0 %722
      %724 = vrot.lane.b32.xlu0 %v607, 88
      %v725 = vpop.permute.xlu0 %724
      %v727 = vsel %vm611, %v723, 0
      %v730 = vsel %vm611, %v725, 0
      %732 = vmatprep.subr.bf16.mxu0 0
      %733 = vmatpush1.bf16.xpose.msra.mxu0 0
      %734 = vmatprep.subr.bf16.mxu0 0
      %735 = vmatpush1.bf16.xpose.msra.mxu0 0
      %736 = vmatprep.subr.bf16.mxu0 0
      %737 = vmatpush1.bf16.xpose.msra.mxu0 0
      %738 = vmatprep.subr.bf16.mxu0 0
      %739 = vmatpush1.bf16.xpose.msra.mxu0 0
      %740 = vmatprep.subr.bf16.mxu0 0
      %741 = vmatpush1.bf16.xpose.msra.mxu0 0
      %742 = vmatprep.subr.bf16.mxu0 0
      %743 = vmatpush1.bf16.xpose.msra.mxu0 0
      %744 = vmatprep.subr.bf16.mxu0 0
      %745 = vmatpush1.bf16.xpose.msra.mxu0 0
      %746 = vmatprep.subr.bf16.mxu0 0
      %747 = vmatpush1.bf16.xpose.msra.mxu0 %v730
      %748 = vmatprep.subr.bf16.mxu0 0
      %749 = vmatpush2.bf16.xpose.msra.mxu0 0
      %750 = vmatprep.subr.bf16.mxu0 0
      %751 = vmatpush2.bf16.xpose.msra.mxu0 0
      %752 = vmatprep.subr.bf16.mxu0 0
      %753 = vmatpush2.bf16.xpose.msra.mxu0 0
      %754 = vmatprep.subr.bf16.mxu0 0
      %755 = vmatpush2.bf16.xpose.msra.mxu0 0
      %756 = vmatprep.subr.bf16.mxu0 0
      %757 = vmatpush2.bf16.xpose.msra.mxu0 0
      %758 = vmatprep.subr.bf16.mxu0 0
      %759 = vmatpush2.bf16.xpose.msra.mxu0 0
      %760 = vmatprep.subr.bf16.mxu0 0
      %761 = vmatpush2.bf16.xpose.msra.mxu0 0
      %762 = vmatprep.subr.bf16.mxu0 0
      %763 = vmatpush2.bf16.xpose.msra.mxu0 0
      %764 = vmatprep.mubr.bf16.mxu0 0
      %765 = vmatmul.mubr.bf16.gmra.mxu0 %v727
      %v766 = vpop.f32.mrf.mxu0
      %v767 = vadd.f32 0.0, %v766
      %v768 = vpop.f32.mrf.mxu0
      %v769 = vpop.f32.mrf.mxu0
      %v770 = vpop.f32.mrf.mxu0
      %771 = vdwg.mxu0
      %v772 = vmul.f32 %v767, 0.35355338
      %v773 = vsel %vm539, %v772, -1e+09
      %v774 = vsel %vm611, %v773, -inf
      %775 = vmax.xlane.f32.xlu0 %v774
      %v776 = vpop.xlane.xlu0 %775
      %v777 = vsub.f32 %v773, %v776
      %v778 = vmul.f32 %v777, 1.442695
      %v779 = vpow.pop %v778
      %v780 = vsel %vm611, %v779, 0.0
      %781 = vadd.xlane.f32.xlu0 %v780
      %v782 = vpop.xlane.xlu0 %781
      %v783 = vrcp.pop %v782
      %v784 = vmul.f32 %v779, %v783
      %v785 = vpack.c.bf16 %v784, %v784
      %786 = vrot.lane.b32.xlu0 %v607, 56
      %v787 = vpop.permute.xlu0 %786
      %v789 = vsel %vm611, %v785, 0
      %v792 = vsel %vm677, %v787, 0
      %794 = vmatprep.subr.bf16.mxu0 0
      %795 = vmatpush1.bf16.msra.mxu0 0
      %796 = vmatprep.subr.bf16.mxu0 0
      %797 = vmatpush1.bf16.msra.mxu0 0
      %798 = vmatprep.subr.bf16.mxu0 0
      %799 = vmatpush1.bf16.msra.mxu0 0
      %800 = vmatprep.subr.bf16.mxu0 0
      %801 = vmatpush1.bf16.msra.mxu0 0
      %802 = vmatprep.subr.bf16.mxu0 0
      %803 = vmatpush1.bf16.msra.mxu0 0
      %804 = vmatprep.subr.bf16.mxu0 0
      %805 = vmatpush1.bf16.msra.mxu0 0
      %806 = vmatprep.subr.bf16.mxu0 0
      %807 = vmatpush1.bf16.msra.mxu0 0
      %808 = vmatprep.subr.bf16.mxu0 0
      %809 = vmatpush1.bf16.msra.mxu0 %v792
      %810 = vmatprep.subr.bf16.mxu0 0
      %811 = vmatpush2.bf16.msra.mxu0 0
      %812 = vmatprep.subr.bf16.mxu0 0
      %813 = vmatpush2.bf16.msra.mxu0 0
      %814 = vmatprep.subr.bf16.mxu0 0
      %815 = vmatpush2.bf16.msra.mxu0 0
      %816 = vmatprep.subr.bf16.mxu0 0
      %817 = vmatpush2.bf16.msra.mxu0 0
      %818 = vmatprep.subr.bf16.mxu0 0
      %819 = vmatpush2.bf16.msra.mxu0 0
      %820 = vmatprep.subr.bf16.mxu0 0
      %821 = vmatpush2.bf16.msra.mxu0 0
      %822 = vmatprep.subr.bf16.mxu0 0
      %823 = vmatpush2.bf16.msra.mxu0 0
      %824 = vmatprep.subr.bf16.mxu0 0
      %825 = vmatpush2.bf16.msra.mxu0 0
      %826 = vmatprep.mubr.bf16.mxu0 0
      %827 = vmatmul.mubr.bf16.gmra.mxu0 %v789
      %v828 = vpop.f32.mrf.mxu0
      %v829 = vadd.f32 0.0, %v828
      %v830 = vpop.f32.mrf.mxu0
      %v831 = vpop.f32.mrf.mxu0
      %v832 = vpop.f32.mrf.mxu0
      %833 = vdwg.mxu0
      %835 = vrot.lane.b32.xlu0 %v829, 8
      %v836 = vpop.permute.xlu0 %835
      %vm838 = vcmask 130112
      %839 = vst.msk [vmem:[#allocation2] sm:$0xff] %vm838, %v836
      %840 = vrot.lane.b32.xlu0 %v607, 112
      %v841 = vpop.permute.xlu0 %840
      %842 = vrot.lane.b32.xlu0 %v607, 80
      %v843 = vpop.permute.xlu0 %842
      %v845 = vsel %vm611, %v841, 0
      %v848 = vsel %vm611, %v843, 0
      %850 = vmatprep.subr.bf16.mxu0 0
      %851 = vmatpush1.bf16.xpose.msra.mxu0 0
      %852 = vmatprep.subr.bf16.mxu0 0
      %853 = vmatpush1.bf16.xpose.msra.mxu0 0
      %854 = vmatprep.subr.bf16.mxu0 0
      %855 = vmatpush1.bf16.xpose.msra.mxu0 0
      %856 = vmatprep.subr.bf16.mxu0 0
      %857 = vmatpush1.bf16.xpose.msra.mxu0 0
      %858 = vmatprep.subr.bf16.mxu0 0
      %859 = vmatpush1.bf16.xpose.msra.mxu0 0
      %860 = vmatprep.subr.bf16.mxu0 0
      %861 = vmatpush1.bf16.xpose.msra.mxu0 0
      %862 = vmatprep.subr.bf16.mxu0 0
      %863 = vmatpush1.bf16.xpose.msra.mxu0 0
      %864 = vmatprep.subr.bf16.mxu0 0
      %865 = vmatpush1.bf16.xpose.msra.mxu0 %v848
      %866 = vmatprep.subr.bf16.mxu0 0
      %867 = vmatpush2.bf16.xpose.msra.mxu0 0
      %868 = vmatprep.subr.bf16.mxu0 0
      %869 = vmatpush2.bf16.xpose.msra.mxu0 0
      %870 = vmatprep.subr.bf16.mxu0 0
      %871 = vmatpush2.bf16.xpose.msra.mxu0 0
      %872 = vmatprep.subr.bf16.mxu0 0
      %873 = vmatpush2.bf16.xpose.msra.mxu0 0
      %874 = vmatprep.subr.bf16.mxu0 0
      %875 = vmatpush2.bf16.xpose.msra.mxu0 0
      %876 = vmatprep.subr.bf16.mxu0 0
      %877 = vmatpush2.bf16.xpose.msra.mxu0 0
      %878 = vmatprep.subr.bf16.mxu0 0
      %879 = vmatpush2.bf16.xpose.msra.mxu0 0
      %880 = vmatprep.subr.bf16.mxu0 0
      %881 = vmatpush2.bf16.xpose.msra.mxu0 0
      %882 = vmatprep.mubr.bf16.mxu0 0
      %883 = vmatmul.mubr.bf16.gmra.mxu0 %v845
      %v884 = vpop.f32.mrf.mxu0
      %v885 = vadd.f32 0.0, %v884
      %v886 = vpop.f32.mrf.mxu0
      %v887 = vpop.f32.mrf.mxu0
      %v888 = vpop.f32.mrf.mxu0
      %889 = vdwg.mxu0
      %v890 = vmul.f32 %v885, 0.35355338
      %v891 = vsel %vm539, %v890, -1e+09
      %v892 = vsel %vm611, %v891, -inf
      %893 = vmax.xlane.f32.xlu0 %v892
      %v894 = vpop.xlane.xlu0 %893
      %v895 = vsub.f32 %v891, %v894
      %v896 = vmul.f32 %v895, 1.442695
      %v897 = vpow.pop %v896
      %v898 = vsel %vm611, %v897, 0.0
      %899 = vadd.xlane.f32.xlu0 %v898
      %v900 = vpop.xlane.xlu0 %899
      %v901 = vrcp.pop %v900
      %v902 = vmul.f32 %v897, %v901
      %v903 = vpack.c.bf16 %v902, %v902
      %904 = vrot.lane.b32.xlu0 %v607, 48
      %v905 = vpop.permute.xlu0 %904
      %v907 = vsel %vm611, %v903, 0
      %v910 = vsel %vm677, %v905, 0
      %912 = vmatprep.subr.bf16.mxu0 0
      %913 = vmatpush1.bf16.msra.mxu0 0
      %914 = vmatprep.subr.bf16.mxu0 0
      %915 = vmatpush1.bf16.msra.mxu0 0
      %916 = vmatprep.subr.bf16.mxu0 0
      %917 = vmatpush1.bf16.msra.mxu0 0
      %918 = vmatprep.subr.bf16.mxu0 0
      %919 = vmatpush1.bf16.msra.mxu0 0
      %920 = vmatprep.subr.bf16.mxu0 0
      %921 = vmatpush1.bf16.msra.mxu0 0
      %922 = vmatprep.subr.bf16.mxu0 0
      %923 = vmatpush1.bf16.msra.mxu0 0
      %924 = vmatprep.subr.bf16.mxu0 0
      %925 = vmatpush1.bf16.msra.mxu0 0
      %926 = vmatprep.subr.bf16.mxu0 0
      %927 = vmatpush1.bf16.msra.mxu0 %v910
      %928 = vmatprep.subr.bf16.mxu0 0
      %929 = vmatpush2.bf16.msra.mxu0 0
      %930 = vmatprep.subr.bf16.mxu0 0
      %931 = vmatpush2.bf16.msra.mxu0 0
      %932 = vmatprep.subr.bf16.mxu0 0
      %933 = vmatpush2.bf16.msra.mxu0 0
      %934 = vmatprep.subr.bf16.mxu0 0
      %935 = vmatpush2.bf16.msra.mxu0 0
      %936 = vmatprep.subr.bf16.mxu0 0
      %937 = vmatpush2.bf16.msra.mxu0 0
      %938 = vmatprep.subr.bf16.mxu0 0
      %939 = vmatpush2.bf16.msra.mxu0 0
      %940 = vmatprep.subr.bf16.mxu0 0
      %941 = vmatpush2.bf16.msra.mxu0 0
      %942 = vmatprep.subr.bf16.mxu0 0
      %943 = vmatpush2.bf16.msra.mxu0 0
      %944 = vmatprep.mubr.bf16.mxu0 0
      %945 = vmatmul.mubr.bf16.gmra.mxu0 %v907
      %v946 = vpop.f32.mrf.mxu0
      %v947 = vadd.f32 0.0, %v946
      %v948 = vpop.f32.mrf.mxu0
      %v949 = vpop.f32.mrf.mxu0
      %v950 = vpop.f32.mrf.mxu0
      %951 = vdwg.mxu0
      %953 = vrot.lane.b32.xlu0 %v947, 16
      %v954 = vpop.permute.xlu0 %953
      %vm956 = vcmask 195712
      %957 = vst.msk [vmem:[#allocation2] sm:$0xff] %vm956, %v954
      %958 = vrot.lane.b32.xlu0 %v607, 104
      %v959 = vpop.permute.xlu0 %958
      %960 = vrot.lane.b32.xlu0 %v607, 72
      %v961 = vpop.permute.xlu0 %960
      %v963 = vsel %vm611, %v959, 0
      %v966 = vsel %vm611, %v961, 0
      %968 = vmatprep.subr.bf16.mxu0 0
      %969 = vmatpush1.bf16.xpose.msra.mxu0 0
      %970 = vmatprep.subr.bf16.mxu0 0
      %971 = vmatpush1.bf16.xpose.msra.mxu0 0
      %972 = vmatprep.subr.bf16.mxu0 0
      %973 = vmatpush1.bf16.xpose.msra.mxu0 0
      %974 = vmatprep.subr.bf16.mxu0 0
      %975 = vmatpush1.bf16.xpose.msra.mxu0 0
      %976 = vmatprep.subr.bf16.mxu0 0
      %977 = vmatpush1.bf16.xpose.msra.mxu0 0
      %978 = vmatprep.subr.bf16.mxu0 0
      %979 = vmatpush1.bf16.xpose.msra.mxu0 0
      %980 = vmatprep.subr.bf16.mxu0 0
      %981 = vmatpush1.bf16.xpose.msra.mxu0 0
      %982 = vmatprep.subr.bf16.mxu0 0
      %983 = vmatpush1.bf16.xpose.msra.mxu0 %v966
      %984 = vmatprep.subr.bf16.mxu0 0
      %985 = vmatpush2.bf16.xpose.msra.mxu0 0
      %986 = vmatprep.subr.bf16.mxu0 0
      %987 = vmatpush2.bf16.xpose.msra.mxu0 0
      %988 = vmatprep.subr.bf16.mxu0 0
      %989 = vmatpush2.bf16.xpose.msra.mxu0 0
      %990 = vmatprep.subr.bf16.mxu0 0
      %991 = vmatpush2.bf16.xpose.msra.mxu0 0
      %992 = vmatprep.subr.bf16.mxu0 0
      %993 = vmatpush2.bf16.xpose.msra.mxu0 0
      %994 = vmatprep.subr.bf16.mxu0 0
      %995 = vmatpush2.bf16.xpose.msra.mxu0 0
      %996 = vmatprep.subr.bf16.mxu0 0
      %997 = vmatpush2.bf16.xpose.msra.mxu0 0
      %998 = vmatprep.subr.bf16.mxu0 0
      %999 = vmatpush2.bf16.xpose.msra.mxu0 0
      %1000 = vmatprep.mubr.bf16.mxu0 0
      %1001 = vmatmul.mubr.bf16.gmra.mxu0 %v963
      %v1002 = vpop.f32.mrf.mxu0
      %v1003 = vadd.f32 0.0, %v1002
      %v1004 = vpop.f32.mrf.mxu0
      %v1005 = vpop.f32.mrf.mxu0
      %v1006 = vpop.f32.mrf.mxu0
      %1007 = vdwg.mxu0
      %v1008 = vmul.f32 %v1003, 0.35355338
      %v1009 = vsel %vm539, %v1008, -1e+09
      %v1010 = vsel %vm611, %v1009, -inf
      %1011 = vmax.xlane.f32.xlu0 %v1010
      %v1012 = vpop.xlane.xlu0 %1011
      %v1013 = vsub.f32 %v1009, %v1012
      %v1014 = vmul.f32 %v1013, 1.442695
      %v1015 = vpow.pop %v1014
      %v1016 = vsel %vm611, %v1015, 0.0
      %1017 = vadd.xlane.f32.xlu0 %v1016
      %v1018 = vpop.xlane.xlu0 %1017
      %v1019 = vrcp.pop %v1018
      %v1020 = vmul.f32 %v1015, %v1019
      %v1021 = vpack.c.bf16 %v1020, %v1020
      %1022 = vrot.lane.b32.xlu0 %v607, 40
      %v1023 = vpop.permute.xlu0 %1022
      %v1025 = vsel %vm611, %v1021, 0
      %v1028 = vsel %vm677, %v1023, 0
      %1030 = vmatprep.subr.bf16.mxu0 0
      %1031 = vmatpush1.bf16.msra.mxu0 0
      %1032 = vmatprep.subr.bf16.mxu0 0
      %1033 = vmatpush1.bf16.msra.mxu0 0
      %1034 = vmatprep.subr.bf16.mxu0 0
      %1035 = vmatpush1.bf16.msra.mxu0 0
      %1036 = vmatprep.subr.bf16.mxu0 0
      %1037 = vmatpush1.bf16.msra.mxu0 0
      %1038 = vmatprep.subr.bf16.mxu0 0
      %1039 = vmatpush1.bf16.msra.mxu0 0
      %1040 = vmatprep.subr.bf16.mxu0 0
      %1041 = vmatpush1.bf16.msra.mxu0 0
      %1042 = vmatprep.subr.bf16.mxu0 0
      %1043 = vmatpush1.bf16.msra.mxu0 0
      %1044 = vmatprep.subr.bf16.mxu0 0
      %1045 = vmatpush1.bf16.msra.mxu0 %v1028
      %1046 = vmatprep.subr.bf16.mxu0 0
      %1047 = vmatpush2.bf16.msra.mxu0 0
      %1048 = vmatprep.subr.bf16.mxu0 0
      %1049 = vmatpush2.bf16.msra.mxu0 0
      %1050 = vmatprep.subr.bf16.mxu0 0
      %1051 = vmatpush2.bf16.msra.mxu0 0
      %1052 = vmatprep.subr.bf16.mxu0 0
      %1053 = vmatpush2.bf16.msra.mxu0 0
      %1054 = vmatprep.subr.bf16.mxu0 0
      %1055 = vmatpush2.bf16.msra.mxu0 0
      %1056 = vmatprep.subr.bf16.mxu0 0
      %1057 = vmatpush2.bf16.msra.mxu0 0
      %1058 = vmatprep.subr.bf16.mxu0 0
      %1059 = vmatpush2.bf16.msra.mxu0 0
      %1060 = vmatprep.subr.bf16.mxu0 0
      %1061 = vmatpush2.bf16.msra.mxu0 0
      %1062 = vmatprep.mubr.bf16.mxu0 0
      %1063 = vmatmul.mubr.bf16.gmra.mxu0 %v1025
      %v1064 = vpop.f32.mrf.mxu0
      %v1065 = vadd.f32 0.0, %v1064
      %v1066 = vpop.f32.mrf.mxu0
      %v1067 = vpop.f32.mrf.mxu0
      %v1068 = vpop.f32.mrf.mxu0
      %1069 = vdwg.mxu0
      %1071 = vrot.lane.b32.xlu0 %v1065, 24
      %v1072 = vpop.permute.xlu0 %1071
      %vm1074 = vcmask 261312
      %1075 = vst.msk [vmem:[#allocation2] sm:$0xff] %vm1074, %v1072
      %v1076 = vld [vmem:[#allocation2] sm:$0xff]
      %v1077 = vpack.c.bf16 %v1076, %v1076
      %v1078 = vld [vmem:[%s5] sm:$0xf]
      %v1079 = vld [vmem:[%s5 + $0x4] sm:$0xf]
      %v1080 = vld [vmem:[%s5 + $0x8] sm:$0xf]
      %v1081 = vld [vmem:[%s5 + $0xc] sm:$0xf]
      %v1082 = vld [vmem:[%s6] sm:$0x1]
      %v1084 = vlaneseq
      %v1085 = vshrl.u32 %v1084, 7
      %v1086 = vsub.s32 0, %v1085
      %v1087 = vrot.slane %v1082, %v1086
      %v1093 = vunpack.c.l.b16 %v1078
      %v1094 = vunpack.c.l.b16 %v1079
      %v1095 = vunpack.c.l.b16 %v1080
      %v1096 = vunpack.c.l.b16 %v1081
      %v1097 = vpack.c.b16 %v1094, %v1093
      %v1098 = vpack.c.b16 %v1096, %v1095
      %v1102 = vsel %vm563, %v1077, 0
      %1104 = vmatprep.subr.bf16.mxu0 0
      %1105 = vmatpush1.bf16.msra.mxu0 0
      %1106 = vmatprep.subr.bf16.mxu0 0
      %1107 = vmatpush1.bf16.msra.mxu0 0
      %1108 = vmatprep.subr.bf16.mxu0 0
      %1109 = vmatpush1.bf16.msra.mxu0 0
      %1110 = vmatprep.subr.bf16.mxu0 0
      %1111 = vmatpush1.bf16.msra.mxu0 0
      %1112 = vmatprep.subr.bf16.mxu0 0
      %1113 = vmatpush1.bf16.msra.mxu0 0
      %1114 = vmatprep.subr.bf16.mxu0 0
      %1115 = vmatpush1.bf16.msra.mxu0 0
      %1116 = vmatprep.subr.bf16.mxu0 0
      %1117 = vmatpush1.bf16.msra.mxu0 %v1098
      %1118 = vmatprep.subr.bf16.mxu0 0
      %1119 = vmatpush1.bf16.msra.mxu0 %v1097
      %1120 = vmatprep.subr.bf16.mxu0 0
      %1121 = vmatpush2.bf16.msra.mxu0 0
      %1122 = vmatprep.subr.bf16.mxu0 0
      %1123 = vmatpush2.bf16.msra.mxu0 0
      %1124 = vmatprep.subr.bf16.mxu0 0
      %1125 = vmatpush2.bf16.msra.mxu0 0
      %1126 = vmatprep.subr.bf16.mxu0 0
      %1127 = vmatpush2.bf16.msra.mxu0 0
      %1128 = vmatprep.subr.bf16.mxu0 0
      %1129 = vmatpush2.bf16.msra.mxu0 0
      %1130 = vmatprep.subr.bf16.mxu0 0
      %1131 = vmatpush2.bf16.msra.mxu0 0
      %1132 = vmatprep.subr.bf16.mxu0 0
      %1133 = vmatpush2.bf16.msra.mxu0 0
      %1134 = vmatprep.subr.bf16.mxu0 0
      %1135 = vmatpush2.bf16.msra.mxu0 0
      %1136 = vmatprep.mubr.bf16.mxu0 0
      %1137 = vmatmul.mubr.bf16.gmra.mxu0 %v1102
      %v1138 = vpop.f32.mrf.mxu0
      %v1139 = vadd.f32 %v1087, %v1138
      %v1140 = vpop.f32.mrf.mxu0
      %v1141 = vpop.f32.mrf.mxu0
      %v1142 = vpop.f32.mrf.mxu0
      %1143 = vdwg.mxu0
      %v1144 = vadd.f32 %v523, %v1139
      %v1145 = vld [vmem:[%s7] sm:$0x1]
      %v1146 = vld [vmem:[%s8] sm:$0x1]
      %v1147 = vsel %vm563, %v1144, 0.0
      %1148 = vadd.xlane.f32.xlu0 %v1147
      %v1149 = vpop.xlane.xlu0 %1148
      %v1150 = vrcp.pop 32.0
      %v1151 = vmul.f32 %v1149, %v1150
      %v1152 = vsub.f32 %v1144, %v1151
      %v1153 = vmul.f32 %v1152, %v1152
      %v1154 = vsel %vm563, %v1153, 0.0
      %1155 = vadd.xlane.f32.xlu0 %v1154
      %v1156 = vpop.xlane.xlu0 %1155
      %v1157 = vmul.f32 %v1156, %v1150
      %v1158 = vadd.f32 %v1157, 1e-05
      %v1159 = vrsqrt.pop %v1158
      %v1160 = vmul.f32 %v1152, %v1159
      %v1162 = vlaneseq
      %v1163 = vshrl.u32 %v1162, 7
      %v1164 = vsub.s32 0, %v1163
      %v1165 = vrot.slane %v1145, %v1164
      %v1167 = vmul.f32 %v1160, %v1165
      %v1169 = vlaneseq
      %v1170 = vshrl.u32 %v1169, 7
      %v1171 = vsub.s32 0, %v1170
      %v1172 = vrot.slane %v1146, %v1171
      %v1174 = vadd.f32 %v1167, %v1172
      %v1175 = vpack.c.bf16 %v1174, %v1174
      %v1176 = vld [vmem:[%s9] sm:$0xf]
      %v1177 = vld [vmem:[%s9 + $0x4] sm:$0xf]
      %v1178 = vld [vmem:[%s9 + $0x8] sm:$0xf]
      %v1179 = vld [vmem:[%s9 + $0xc] sm:$0xf]
      %v1180 = vld [vmem:[%s10] sm:$0x1]
      %v1182 = vlaneseq
      %v1183 = vshrl.u32 %v1182, 7
      %v1184 = vsub.s32 0, %v1183
      %v1185 = vrot.slane %v1180, %v1184
      %v1191 = vunpack.c.l.b16 %v1176
      %v1192 = vunpack.c.l.b16 %v1177
      %v1193 = vunpack.c.l.b16 %v1178
      %v1194 = vunpack.c.l.b16 %v1179
      %v1195 = vpack.c.b16 %v1192, %v1191
      %v1196 = vpack.c.b16 %v1194, %v1193
      %v1200 = vsel %vm563, %v1175, 0
      %1202 = vmatprep.subr.bf16.mxu0 0
      %1203 = vmatpush1.bf16.msra.mxu0 0
      %1204 = vmatprep.subr.bf16.mxu0 0
      %1205 = vmatpush1.bf16.msra.mxu0 0
      %1206 = vmatprep.subr.bf16.mxu0 0
      %1207 = vmatpush1.bf16.msra.mxu0 0
      %1208 = vmatprep.subr.bf16.mxu0 0
      %1209 = vmatpush1.bf16.msra.mxu0 0
      %1210 = vmatprep.subr.bf16.mxu0 0
      %1211 = vmatpush1.bf16.msra.mxu0 0
      %1212 = vmatprep.subr.bf16.mxu0 0
      %1213 = vmatpush1.bf16.msra.mxu0 0
      %1214 = vmatprep.subr.bf16.mxu0 0
      %1215 = vmatpush1.bf16.msra.mxu0 %v1196
      %1216 = vmatprep.subr.bf16.mxu0 0
      %1217 = vmatpush1.bf16.msra.mxu0 %v1195
      %1218 = vmatprep.subr.bf16.mxu0 0
      %1219 = vmatpush2.bf16.msra.mxu0 0
      %1220 = vmatprep.subr.bf16.mxu0 0
      %1221 = vmatpush2.bf16.msra.mxu0 0
      %1222 = vmatprep.subr.bf16.mxu0 0
      %1223 = vmatpush2.bf16.msra.mxu0 0
      %1224 = vmatprep.subr.bf16.mxu0 0
      %1225 = vmatpush2.bf16.msra.mxu0 0
      %1226 = vmatprep.subr.bf16.mxu0 0
      %1227 = vmatpush2.bf16.msra.mxu0 0
      %1228 = vmatprep.subr.bf16.mxu0 0
      %1229 = vmatpush2.bf16.msra.mxu0 0
      %1230 = vmatprep.subr.bf16.mxu0 0
      %1231 = vmatpush2.bf16.msra.mxu0 0
      %1232 = vmatprep.subr.bf16.mxu0 0
      %1233 = vmatpush2.bf16.msra.mxu0 0
      %1234 = vmatprep.mubr.bf16.mxu0 0
      %1235 = vmatmul.mubr.bf16.gmra.mxu0 %v1200
      %v1236 = vpop.f32.mrf.mxu0
      %v1237 = vadd.f32 %v1185, %v1236
      %v1238 = vpop.f32.mrf.mxu0
      %v1239 = vpop.f32.mrf.mxu0
      %v1240 = vpop.f32.mrf.mxu0
      %1241 = vdwg.mxu0
      %v1242 = vmax.f32 %v1237, 0.0
      %v1243 = vpack.c.bf16 %v1242, %v1242
      %v1244 = vld [vmem:[%s11] sm:$0xf]
      %v1245 = vld [vmem:[%s11 + $0x4] sm:$0xf]
      %v1246 = vld [vmem:[%s11 + $0x8] sm:$0xf]
      %v1247 = vld [vmem:[%s11 + $0xc] sm:$0xf]
      %v1248 = vld [vmem:[%s11 + $0x10] sm:$0xf]
      %v1249 = vld [vmem:[%s11 + $0x14] sm:$0xf]
      %v1250 = vld [vmem:[%s11 + $0x18] sm:$0xf]
      %v1251 = vld [vmem:[%s11 + $0x1c] sm:$0xf]
      %v1252 = vld [vmem:[%s12] sm:$0x1]
      %v1254 = vlaneseq
      %v1255 = vshrl.u32 %v1254, 7
      %v1256 = vsub.s32 0, %v1255
      %v1257 = vrot.slane %v1252, %v1256
      %v1267 = vunpack.c.l.b16 %v1244
      %v1268 = vunpack.c.l.b16 %v1245
      %v1269 = vunpack.c.l.b16 %v1246
      %v1270 = vunpack.c.l.b16 %v1247
      %v1271 = vunpack.c.l.b16 %v1248
      %v1272 = vunpack.c.l.b16 %v1249
      %v1273 = vunpack.c.l.b16 %v1250
      %v1274 = vunpack.c.l.b16 %v1251
      %v1275 = vpack.c.b16 %v1268, %v1267
      %v1276 = vpack.c.b16 %v1270, %v1269
      %v1277 = vpack.c.b16 %v1272, %v1271
      %v1278 = vpack.c.b16 %v1274, %v1273
      %vm1283 = vcmask 523264
      %v1285 = vsel %vm1283, %v1243, 0
      %1287 = vmatprep.subr.bf16.mxu0 0
      %1288 = vmatpush1.bf16.msra.mxu0 0
      %1289 = vmatprep.subr.bf16.mxu0 0
      %1290 = vmatpush1.bf16.msra.mxu0 0
      %1291 = vmatprep.subr.bf16.mxu0 0
      %1292 = vmatpush1.bf16.msra.mxu0 0
      %1293 = vmatprep.subr.bf16.mxu0 0
      %1294 = vmatpush1.bf16.msra.mxu0 0
      %1295 = vmatprep.subr.bf16.mxu0 0
      %1296 = vmatpush1.bf16.msra.mxu0 %v1278
      %1297 = vmatprep.subr.bf16.mxu0 0
      %1298 = vmatpush1.bf16.msra.mxu0 %v1277
      %1299 = vmatprep.subr.bf16.mxu0 0
      %1300 = vmatpush1.bf16.msra.mxu0 %v1276
      %1301 = vmatprep.subr.bf16.mxu0 0
      %1302 = vmatpush1.bf16.msra.mxu0 %v1275
      %1303 = vmatprep.subr.bf16.mxu0 0
      %1304 = vmatpush2.bf16.msra.mxu0 0
      %1305 = vmatprep.subr.bf16.mxu0 0
      %1306 = vmatpush2.bf16.msra.mxu0 0
      %1307 = vmatprep.subr.bf16.mxu0 0
      %1308 = vmatpush2.bf16.msra.mxu0 0
      %1309 = vmatprep.subr.bf16.mxu0 0
      %1310 = vmatpush2.bf16.msra.mxu0 0
      %1311 = vmatprep.subr.bf16.mxu0 0
      %1312 = vmatpush2.bf16.msra.mxu0 0
      %1313 = vmatprep.subr.bf16.mxu0 0
      %1314 = vmatpush2.bf16.msra.mxu0 0
      %1315 = vmatprep.subr.bf16.mxu0 0
      %1316 = vmatpush2.bf16.msra.mxu0 0
      %1317 = vmatprep.subr.bf16.mxu0 0
      %1318 = vmatpush2.bf16.msra.mxu0 0
      %1319 = vmatprep.mubr.bf16.mxu0 0
      %1320 = vmatmul.mubr.bf16.gmra.mxu0 %v1285
      %v1321 = vpop.f32.mrf.mxu0
      %v1322 = vadd.f32 %v1257, %v1321
      %v1323 = vpop.f32.mrf.mxu0
      %v1324 = vpop.f32.mrf.mxu0
      %v1325 = vpop.f32.mrf.mxu0
      %1326 = vdwg.mxu0
      %v1327 = vadd.f32 %v1174, %v1322
      %v1328 = vld [vmem:[%s13] sm:$0x1]
      %v1329 = vld [vmem:[%s14] sm:$0x1]
      %v1330 = vsel %vm563, %v1327, 0.0
      %1331 = vadd.xlane.f32.xlu0 %v1330
      %v1332 = vpop.xlane.xlu0 %1331
      %v1333 = vmul.f32 %v1332, %v1150
      %v1334 = vsub.f32 %v1327, %v1333
      %v1335 = vmul.f32 %v1334, %v1334
      %v1336 = vsel %vm563, %v1335, 0.0
      %1337 = vadd.xlane.f32.xlu0 %v1336
      %v1338 = vpop.xlane.xlu0 %1337
      %v1339 = vmul.f32 %v1338, %v1150
      %v1340 = vadd.f32 %v1339, 1e-05
      %v1341 = vrsqrt.pop %v1340
      %v1342 = vmul.f32 %v1334, %v1341
      %v1344 = vlaneseq
      %v1345 = vshrl.u32 %v1344, 7
      %v1346 = vsub.s32 0, %v1345
      %v1347 = vrot.slane %v1328, %v1346
      %v1349 = vmul.f32 %v1342, %v1347
      %v1351 = vlaneseq
      %v1352 = vshrl.u32 %v1351, 7
      %v1353 = vsub.s32 0, %v1352
      %v1354 = vrot.slane %v1329, %v1353
      %v1356 = vadd.f32 %v1349, %v1354
      %v1357 = vpack.c.bf16 %v1356, %v1356
      %vm1358 = vcmask 257024
      %1359 = vst.msk [vmem:[%s520] sm:$0xf] %vm1358, %v1357
      %p1360 = scmp.lt.s32.totalorder %s26, 1
      %s1361 = scalar_select %p1360, %s26, 1
      %s1362 = smul.addr %s1361, 4
      %s1363 = scalar_lea.vmem %s15, %s1362
      // Predicated region
      $region81: #{transformer_forward.5} parent=79 // pred_check
        %p1364 = pneg %p374
      $region82: #{transformer_forward.5} parent=79 // pred_check_branch
        %1366 = sbr.rel (%p1364) target = $region84
      $region83: #{transformer_forward.5} parent=79 // pred_region
        _
      $region84: #{transformer_forward.5} parent=79 // pred_fallthru
        _
    $region80: #{transformer_forward.5} parent=5 // pred_fallthru
      _
    %p1367 = scmp.le.s32.totalorder 2, %s21
    // Predicated region
    $region85: #{transformer_forward.5} parent=5 // pred_check
      %p1368 = pneg %p1367
    $region86: #{transformer_forward.5} parent=5 // pred_check_branch
      %1370 = sbr.rel (%p1368) target = $region88
    $region87: #{transformer_forward.5} parent=5 // pred_region
      %s1371 = ssub.s32 %s21, 2
      // Predicated region
      $region89: #{transformer_forward.5} parent=87 // pred_check
        %p1372 = pneg %p380
      $region90: #{transformer_forward.5} parent=87 // pred_check_branch
        %1374 = sbr.rel (%p1372) target = $region92
      $region91: #{transformer_forward.5} parent=87 // pred_region
        %p1375 = scmp.lt.s32.totalorder %s27, 1
        %s1376 = scalar_select %p1375, %s27, 1
        %s1377 = smul.addr %s1376, 4
        %s1378 = scalar_lea.vmem %s15, %s1377
      $region92: #{transformer_forward.5} parent=87 // pred_fallthru
        _
    $region88: #{transformer_forward.5} parent=5 // pred_fallthru
      _
  $region6: #{transformer_forward.5} parent=0 // loop_footer
    %s25 = sadd.s32 1, %s21
  $region7: #{transformer_forward.5} parent=0 // loop_footer_branch
    %20 = sbr.rel target = $region3
  $region8: #{transformer_forward.5} parent=0 // loop_exit
    _

// kernel: transformer_forward.7
$region0: #{transformer_forward.7}
  #allocation0 [shape = 'u32[]', space=smem, size = 0x4, offset = 0x4, fixed_abs, tag = 'smem constant byte address 0x4 - core index']
  #allocation1 [shape = 'u32[144,128]{1,0:T(1,128)}', space=vmem, size = 0x12000, scoped, tag = 'internal scratch']
  #allocation2 [shape = 'f32[8,32]{1,0:T(8,128)}', space=vmem, size = 0x1000, scoped, tag = 'scratch operand']
  %s0 = inlined_call_operand.vmem [shape: f32[2,8,1], index: 0, kind: input, shape index: {}]
  %s1 = inlined_call_operand.vmem [shape: f32[2,1,8], index: 1, kind: input, shape index: {}]
  %s2 = inlined_call_operand.vmem [shape: f32[2,1,8], index: 2, kind: input, shape index: {}]
  %s3 = inlined_call_operand.vmem [shape: bf16[2,8,32], index: 3, kind: input, shape index: {}]
  %s4 = inlined_call_operand.vmem [shape: bf16[2,8,32], index: 4, kind: input, shape index: {}]
  %s5 = inlined_call_operand.vmem [shape: bf16[32,96], index: 5, kind: input, shape index: {}]
  %s6 = inlined_call_operand.vmem [shape: f32[1,96], index: 6, kind: input, shape index: {}]
  %s7 = inlined_call_operand.vmem [shape: bf16[32,32], index: 7, kind: input, shape index: {}]
  %s8 = inlined_call_operand.vmem [shape: f32[1,32], index: 8, kind: input, shape index: {}]
  %s9 = inlined_call_operand.vmem [shape: f32[1,32], index: 9, kind: input, shape index: {}]
  %s10 = inlined_call_operand.vmem [shape: f32[1,32], index: 10, kind: input, shape index: {}]
  %s11 = inlined_call_operand.vmem [shape: bf16[32,96], index: 11, kind: input, shape index: {}]
  %s12 = inlined_call_operand.vmem [shape: f32[1,96], index: 12, kind: input, shape index: {}]
  %s13 = inlined_call_operand.vmem [shape: bf16[32,32], index: 13, kind: input, shape index: {}]
  %s14 = inlined_call_operand.vmem [shape: f32[1,32], index: 14, kind: input, shape index: {}]
  %s15 = inlined_call_operand.vmem [shape: f32[1,32], index: 15, kind: input, shape index: {}]
  %s16 = inlined_call_operand.vmem [shape: f32[1,32], index: 16, kind: input, shape index: {}]
  %s17 = inlined_call_operand.vmem [shape: bf16[32,64], index: 17, kind: input, shape index: {}]
  %s18 = inlined_call_operand.vmem [shape: f32[1,64], index: 18, kind: input, shape index: {}]
  %s19 = inlined_call_operand.vmem [shape: bf16[64,32], index: 19, kind: input, shape index: {}]
  %s20 = inlined_call_operand.vmem [shape: f32[1,32], index: 20, kind: input, shape index: {}]
  %s21 = inlined_call_operand.vmem [shape: f32[1,32], index: 21, kind: input, shape index: {}]
  %s22 = inlined_call_operand.vmem [shape: f32[1,32], index: 22, kind: input, shape index: {}]
  %s23 = inlined_call_operand.vmem [shape: bf16[2,8,32], index: 23, kind: output, shape index: {}]
  %s24 = sld [smem:[#allocation0]]
  $region125: #{transformer_forward.7} parent=0
    _
  %s26 = ssub.s32 1, %s24
  %s27 = scalar_select 0, %s26, %s24
  loop: start=0, step=1, limit=4
  $region2: #{transformer_forward.7} parent=0 // loop_pre_header
    _
  $region3: #{transformer_forward.7} parent=0 // loop_header
    %s29 = sphi 0, %s33
    %p30 = scmp.ge.s32.totalorder %s29, 4
    %s39 = sphi 0, %s41
    %s42 = sphi 0, %s39
    %s43 = sphi 0, %s42
    %s59 = sphi 0, %s43
    %s65 = sphi 0, %s67
    %s68 = sphi 0, %s65
    %s69 = sphi 0, %s68
    %s85 = sphi 0, %s69
    %s91 = sphi 0, %s93
    %s94 = sphi 0, %s91
    %s95 = sphi 0, %s94
    %s111 = sphi 0, %s95
    %s117 = sphi 0, %s119
    %s120 = sphi 0, %s117
    %s121 = sphi 0, %s120
    %s137 = sphi 0, %s121
    %s143 = sphi 0, %s145
    %s146 = sphi 0, %s143
    %s147 = sphi 0, %s146
    %s163 = sphi 0, %s147
    %s167 = sphi 0, %s167
    %s169 = sphi 0, %s167
    %s170 = sphi 0, %s169
    %s184 = sphi 0, %s170
    %s188 = sphi 0, %s188
    %s190 = sphi 0, %s188
    %s191 = sphi 0, %s190
    %s205 = sphi 0, %s191
    %s209 = sphi 0, %s209
    %s211 = sphi 0, %s209
    %s212 = sphi 0, %s211
    %s226 = sphi 0, %s212
    %s230 = sphi 0, %s230
    %s232 = sphi 0, %s230
    %s233 = sphi 0, %s232
    %s247 = sphi 0, %s233
    %s251 = sphi 0, %s251
    %s253 = sphi 0, %s251
    %s254 = sphi 0, %s253
    %s268 = sphi 0, %s254
    %s272 = sphi 0, %s272
    %s274 = sphi 0, %s272
    %s275 = sphi 0, %s274
    %s289 = sphi 0, %s275
    %s293 = sphi 0, %s293
    %s295 = sphi 0, %s293
    %s296 = sphi 0, %s295
    %s310 = sphi 0, %s296
    %s314 = sphi 0, %s314
    %s316 = sphi 0, %s314
    %s317 = sphi 0, %s316
    %s331 = sphi 0, %s317
    %s335 = sphi 0, %s335
    %s337 = sphi 0, %s335
    %s338 = sphi 0, %s337
    %s352 = sphi 0, %s338
    %s356 = sphi 0, %s356
    %s358 = sphi 0, %s356
    %s359 = sphi 0, %s358
    %s373 = sphi 0, %s359
    %s377 = sphi 0, %s377
    %s379 = sphi 0, %s377
    %s380 = sphi 0, %s379
    %s394 = sphi 0, %s380
    %s398 = sphi 0, %s398
    %s400 = sphi 0, %s398
    %s401 = sphi 0, %s400
    %s415 = sphi 0, %s401
    %s419 = sphi 0, %s419
    %s421 = sphi 0, %s419
    %s422 = sphi 0, %s421
    %s436 = sphi 0, %s422
    %s440 = sphi 0, %s440
    %s442 = sphi 0, %s440
    %s443 = sphi 0, %s442
    %s457 = sphi 0, %s443
    %s461 = sphi 0, %s461
    %s463 = sphi 0, %s461
    %s464 = sphi 0, %s463
    %s478 = sphi 0, %s464
    %s482 = sphi 0, %s482
    %s484 = sphi 0, %s482
    %s485 = sphi 0, %s484
    %s499 = sphi 0, %s485
    %s503 = sphi 0, %s503
    %s505 = sphi 0, %s503
    %s506 = sphi 0, %s505
    %s520 = sphi 0, %s506
    %s524 = sphi 0, %s524
    %s526 = sphi 0, %s524
    %s527 = sphi 0, %s526
    %s541 = sphi 0, %s527
    %s547 = sphi 0, %s549
    %s550 = sphi 0, %s547
    %s551 = sphi 0, %s550
    %s567 = sphi 0, %s551
  $region4: #{transformer_forward.7} parent=0 // loop_header_branch
    %32 = sbr.rel (%p30) target = $region8
  $region5: #{transformer_forward.7} parent=0 // loop_body
    %s34 = ssub.s32 %s29, 1
    %s35 = ssub.s32 %s29, 2
    %s36 = sadd.s32 %s29, 1
    %s37 = ssub.s32 %s29, %s36
    %p38 = scmp.eq.s32.totalorder %s37, 0
    %s40 = sadd.s32 %s39, 1
    %s41 = scalar_select %p38, %s39, %s40
    %p44 = pneg %p38
    %p45 = scmp.eq.s32.totalorder %s29, 1
    %p46 = por %p44, %p45
    %p47 = scmp.ne.s32.totalorder %s39, %s42
    %p48 = scmp.eq.s32.totalorder %s29, 0
    %p49 = por %p47, %p48
    %p50 = scmp.ne.s32.totalorder %s39, %s42
    %p51 = scmp.eq.s32.totalorder %s34, 1
    %p52 = por %p50, %p51
    %p53 = scmp.ne.s32.totalorder %s42, %s43
    %p54 = scmp.eq.s32.totalorder %s34, 0
    %p55 = por %p53, %p54
    %p56 = scmp.ne.s32.totalorder %s42, %s43
    %p57 = scmp.eq.s32.totalorder %s35, 1
    %p58 = por %p56, %p57
    %p60 = scmp.ne.s32.totalorder %s43, %s59
    %p61 = scmp.eq.s32.totalorder %s35, 0
    %p62 = por %p60, %p61
    %s63 = ssub.s32 %s29, %s36
    %p64 = scmp.eq.s32.totalorder %s63, 0
    %s66 = sadd.s32 %s65, 1
    %s67 = scalar_select %p64, %s65, %s66
    %p70 = pneg %p64
    %p71 = scmp.eq.s32.totalorder %s29, 1
    %p72 = por %p70, %p71
    %p73 = scmp.ne.s32.totalorder %s65, %s68
    %p74 = scmp.eq.s32.totalorder %s29, 0
    %p75 = por %p73, %p74
    %p76 = scmp.ne.s32.totalorder %s65, %s68
    %p77 = scmp.eq.s32.totalorder %s34, 1
    %p78 = por %p76, %p77
    %p79 = scmp.ne.s32.totalorder %s68, %s69
    %p80 = scmp.eq.s32.totalorder %s34, 0
    %p81 = por %p79, %p80
    %p82 = scmp.ne.s32.totalorder %s68, %s69
    %p83 = scmp.eq.s32.totalorder %s35, 1
    %p84 = por %p82, %p83
    %p86 = scmp.ne.s32.totalorder %s69, %s85
    %p87 = scmp.eq.s32.totalorder %s35, 0
    %p88 = por %p86, %p87
    %s89 = ssub.s32 %s29, %s36
    %p90 = scmp.eq.s32.totalorder %s89, 0
    %s92 = sadd.s32 %s91, 1
    %s93 = scalar_select %p90, %s91, %s92
    %p96 = pneg %p90
    %p97 = scmp.eq.s32.totalorder %s29, 1
    %p98 = por %p96, %p97
    %p99 = scmp.ne.s32.totalorder %s91, %s94
    %p100 = scmp.eq.s32.totalorder %s29, 0
    %p101 = por %p99, %p100
    %p102 = scmp.ne.s32.totalorder %s91, %s94
    %p103 = scmp.eq.s32.totalorder %s34, 1
    %p104 = por %p102, %p103
    %p105 = scmp.ne.s32.totalorder %s94, %s95
    %p106 = scmp.eq.s32.totalorder %s34, 0
    %p107 = por %p105, %p106
    %p108 = scmp.ne.s32.totalorder %s94, %s95
    %p109 = scmp.eq.s32.totalorder %s35, 1
    %p110 = por %p108, %p109
    %p112 = scmp.ne.s32.totalorder %s95, %s111
    %p113 = scmp.eq.s32.totalorder %s35, 0
    %p114 = por %p112, %p113
    %s115 = ssub.s32 %s29, %s36
    %p116 = scmp.eq.s32.totalorder %s115, 0
    %s118 = sadd.s32 %s117, 1
    %s119 = scalar_select %p116, %s117, %s118
    %p122 = pneg %p116
    %p123 = scmp.eq.s32.totalorder %s29, 1
    %p124 = por %p122, %p123
    %p125 = scmp.ne.s32.totalorder %s117, %s120
    %p126 = scmp.eq.s32.totalorder %s29, 0
    %p127 = por %p125, %p126
    %p128 = scmp.ne.s32.totalorder %s117, %s120
    %p129 = scmp.eq.s32.totalorder %s34, 1
    %p130 = por %p128, %p129
    %p131 = scmp.ne.s32.totalorder %s120, %s121
    %p132 = scmp.eq.s32.totalorder %s34, 0
    %p133 = por %p131, %p132
    %p134 = scmp.ne.s32.totalorder %s120, %s121
    %p135 = scmp.eq.s32.totalorder %s35, 1
    %p136 = por %p134, %p135
    %p138 = scmp.ne.s32.totalorder %s121, %s137
    %p139 = scmp.eq.s32.totalorder %s35, 0
    %p140 = por %p138, %p139
    %s141 = ssub.s32 %s29, %s36
    %p142 = scmp.eq.s32.totalorder %s141, 0
    %s144 = sadd.s32 %s143, 1
    %s145 = scalar_select %p142, %s143, %s144
    %p148 = pneg %p142
    %p149 = scmp.eq.s32.totalorder %s29, 1
    %p150 = por %p148, %p149
    %p151 = scmp.ne.s32.totalorder %s143, %s146
    %p152 = scmp.eq.s32.totalorder %s29, 0
    %p153 = por %p151, %p152
    %p154 = scmp.ne.s32.totalorder %s143, %s146
    %p155 = scmp.eq.s32.totalorder %s34, 1
    %p156 = por %p154, %p155
    %p157 = scmp.ne.s32.totalorder %s146, %s147
    %p158 = scmp.eq.s32.totalorder %s34, 0
    %p159 = por %p157, %p158
    %p160 = scmp.ne.s32.totalorder %s146, %s147
    %p161 = scmp.eq.s32.totalorder %s35, 1
    %p162 = por %p160, %p161
    %p164 = scmp.ne.s32.totalorder %s147, %s163
    %p165 = scmp.eq.s32.totalorder %s35, 0
    %p166 = por %p164, %p165
    %s168 = sadd.s32 %s167, 1
    %p171 = scmp.eq.s32.totalorder %s29, 1
    %p172 = scmp.ne.s32.totalorder %s167, %s169
    %p173 = scmp.eq.s32.totalorder %s29, 0
    %p174 = por %p172, %p173
    %p175 = scmp.ne.s32.totalorder %s167, %s169
    %p176 = scmp.eq.s32.totalorder %s34, 1
    %p177 = por %p175, %p176
    %p178 = scmp.ne.s32.totalorder %s169, %s170
    %p179 = scmp.eq.s32.totalorder %s34, 0
    %p180 = por %p178, %p179
    %p181 = scmp.ne.s32.totalorder %s169, %s170
    %p182 = scmp.eq.s32.totalorder %s35, 1
    %p183 = por %p181, %p182
    %p185 = scmp.ne.s32.totalorder %s170, %s184
    %p186 = scmp.eq.s32.totalorder %s35, 0
    %p187 = por %p185, %p186
    %s189 = sadd.s32 %s188, 1
    %p192 = scmp.eq.s32.totalorder %s29, 1
    %p193 = scmp.ne.s32.totalorder %s188, %s190
    %p194 = scmp.eq.s32.totalorder %s29, 0
    %p195 = por %p193, %p194
    %p196 = scmp.ne.s32.totalorder %s188, %s190
    %p197 = scmp.eq.s32.totalorder %s34, 1
    %p198 = por %p196, %p197
    %p199 = scmp.ne.s32.totalorder %s190, %s191
    %p200 = scmp.eq.s32.totalorder %s34, 0
    %p201 = por %p199, %p200
    %p202 = scmp.ne.s32.totalorder %s190, %s191
    %p203 = scmp.eq.s32.totalorder %s35, 1
    %p204 = por %p202, %p203
    %p206 = scmp.ne.s32.totalorder %s191, %s205
    %p207 = scmp.eq.s32.totalorder %s35, 0
    %p208 = por %p206, %p207
    %s210 = sadd.s32 %s209, 1
    %p213 = scmp.eq.s32.totalorder %s29, 1
    %p214 = scmp.ne.s32.totalorder %s209, %s211
    %p215 = scmp.eq.s32.totalorder %s29, 0
    %p216 = por %p214, %p215
    %p217 = scmp.ne.s32.totalorder %s209, %s211
    %p218 = scmp.eq.s32.totalorder %s34, 1
    %p219 = por %p217, %p218
    %p220 = scmp.ne.s32.totalorder %s211, %s212
    %p221 = scmp.eq.s32.totalorder %s34, 0
    %p222 = por %p220, %p221
    %p223 = scmp.ne.s32.totalorder %s211, %s212
    %p224 = scmp.eq.s32.totalorder %s35, 1
    %p225 = por %p223, %p224
    %p227 = scmp.ne.s32.totalorder %s212, %s226
    %p228 = scmp.eq.s32.totalorder %s35, 0
    %p229 = por %p227, %p228
    %s231 = sadd.s32 %s230, 1
    %p234 = scmp.eq.s32.totalorder %s29, 1
    %p235 = scmp.ne.s32.totalorder %s230, %s232
    %p236 = scmp.eq.s32.totalorder %s29, 0
    %p237 = por %p235, %p236
    %p238 = scmp.ne.s32.totalorder %s230, %s232
    %p239 = scmp.eq.s32.totalorder %s34, 1
    %p240 = por %p238, %p239
    %p241 = scmp.ne.s32.totalorder %s232, %s233
    %p242 = scmp.eq.s32.totalorder %s34, 0
    %p243 = por %p241, %p242
    %p244 = scmp.ne.s32.totalorder %s232, %s233
    %p245 = scmp.eq.s32.totalorder %s35, 1
    %p246 = por %p244, %p245
    %p248 = scmp.ne.s32.totalorder %s233, %s247
    %p249 = scmp.eq.s32.totalorder %s35, 0
    %p250 = por %p248, %p249
    %s252 = sadd.s32 %s251, 1
    %p255 = scmp.eq.s32.totalorder %s29, 1
    %p256 = scmp.ne.s32.totalorder %s251, %s253
    %p257 = scmp.eq.s32.totalorder %s29, 0
    %p258 = por %p256, %p257
    %p259 = scmp.ne.s32.totalorder %s251, %s253
    %p260 = scmp.eq.s32.totalorder %s34, 1
    %p261 = por %p259, %p260
    %p262 = scmp.ne.s32.totalorder %s253, %s254
    %p263 = scmp.eq.s32.totalorder %s34, 0
    %p264 = por %p262, %p263
    %p265 = scmp.ne.s32.totalorder %s253, %s254
    %p266 = scmp.eq.s32.totalorder %s35, 1
    %p267 = por %p265, %p266
    %p269 = scmp.ne.s32.totalorder %s254, %s268
    %p270 = scmp.eq.s32.totalorder %s35, 0
    %p271 = por %p269, %p270
    %s273 = sadd.s32 %s272, 1
    %p276 = scmp.eq.s32.totalorder %s29, 1
    %p277 = scmp.ne.s32.totalorder %s272, %s274
    %p278 = scmp.eq.s32.totalorder %s29, 0
    %p279 = por %p277, %p278
    %p280 = scmp.ne.s32.totalorder %s272, %s274
    %p281 = scmp.eq.s32.totalorder %s34, 1
    %p282 = por %p280, %p281
    %p283 = scmp.ne.s32.totalorder %s274, %s275
    %p284 = scmp.eq.s32.totalorder %s34, 0
    %p285 = por %p283, %p284
    %p286 = scmp.ne.s32.totalorder %s274, %s275
    %p287 = scmp.eq.s32.totalorder %s35, 1
    %p288 = por %p286, %p287
    %p290 = scmp.ne.s32.totalorder %s275, %s289
    %p291 = scmp.eq.s32.totalorder %s35, 0
    %p292 = por %p290, %p291
    %s294 = sadd.s32 %s293, 1
    %p297 = scmp.eq.s32.totalorder %s29, 1
    %p298 = scmp.ne.s32.totalorder %s293, %s295
    %p299 = scmp.eq.s32.totalorder %s29, 0
    %p300 = por %p298, %p299
    %p301 = scmp.ne.s32.totalorder %s293, %s295
    %p302 = scmp.eq.s32.totalorder %s34, 1
    %p303 = por %p301, %p302
    %p304 = scmp.ne.s32.totalorder %s295, %s296
    %p305 = scmp.eq.s32.totalorder %s34, 0
    %p306 = por %p304, %p305
    %p307 = scmp.ne.s32.totalorder %s295, %s296
    %p308 = scmp.eq.s32.totalorder %s35, 1
    %p309 = por %p307, %p308
    %p311 = scmp.ne.s32.totalorder %s296, %s310
    %p312 = scmp.eq.s32.totalorder %s35, 0
    %p313 = por %p311, %p312
    %s315 = sadd.s32 %s314, 1
    %p318 = scmp.eq.s32.totalorder %s29, 1
    %p319 = scmp.ne.s32.totalorder %s314, %s316
    %p320 = scmp.eq.s32.totalorder %s29, 0
    %p321 = por %p319, %p320
    %p322 = scmp.ne.s32.totalorder %s314, %s316
    %p323 = scmp.eq.s32.totalorder %s34, 1
    %p324 = por %p322, %p323
    %p325 = scmp.ne.s32.totalorder %s316, %s317
    %p326 = scmp.eq.s32.totalorder %s34, 0
    %p327 = por %p325, %p326
    %p328 = scmp.ne.s32.totalorder %s316, %s317
    %p329 = scmp.eq.s32.totalorder %s35, 1
    %p330 = por %p328, %p329
    %p332 = scmp.ne.s32.totalorder %s317, %s331
    %p333 = scmp.eq.s32.totalorder %s35, 0
    %p334 = por %p332, %p333
    %s336 = sadd.s32 %s335, 1
    %p339 = scmp.eq.s32.totalorder %s29, 1
    %p340 = scmp.ne.s32.totalorder %s335, %s337
    %p341 = scmp.eq.s32.totalorder %s29, 0
    %p342 = por %p340, %p341
    %p343 = scmp.ne.s32.totalorder %s335, %s337
    %p344 = scmp.eq.s32.totalorder %s34, 1
    %p345 = por %p343, %p344
    %p346 = scmp.ne.s32.totalorder %s337, %s338
    %p347 = scmp.eq.s32.totalorder %s34, 0
    %p348 = por %p346, %p347
    %p349 = scmp.ne.s32.totalorder %s337, %s338
    %p350 = scmp.eq.s32.totalorder %s35, 1
    %p351 = por %p349, %p350
    %p353 = scmp.ne.s32.totalorder %s338, %s352
    %p354 = scmp.eq.s32.totalorder %s35, 0
    %p355 = por %p353, %p354
    %s357 = sadd.s32 %s356, 1
    %p360 = scmp.eq.s32.totalorder %s29, 1
    %p361 = scmp.ne.s32.totalorder %s356, %s358
    %p362 = scmp.eq.s32.totalorder %s29, 0
    %p363 = por %p361, %p362
    %p364 = scmp.ne.s32.totalorder %s356, %s358
    %p365 = scmp.eq.s32.totalorder %s34, 1
    %p366 = por %p364, %p365
    %p367 = scmp.ne.s32.totalorder %s358, %s359
    %p368 = scmp.eq.s32.totalorder %s34, 0
    %p369 = por %p367, %p368
    %p370 = scmp.ne.s32.totalorder %s358, %s359
    %p371 = scmp.eq.s32.totalorder %s35, 1
    %p372 = por %p370, %p371
    %p374 = scmp.ne.s32.totalorder %s359, %s373
    %p375 = scmp.eq.s32.totalorder %s35, 0
    %p376 = por %p374, %p375
    %s378 = sadd.s32 %s377, 1
    %p381 = scmp.eq.s32.totalorder %s29, 1
    %p382 = scmp.ne.s32.totalorder %s377, %s379
    %p383 = scmp.eq.s32.totalorder %s29, 0
    %p384 = por %p382, %p383
    %p385 = scmp.ne.s32.totalorder %s377, %s379
    %p386 = scmp.eq.s32.totalorder %s34, 1
    %p387 = por %p385, %p386
    %p388 = scmp.ne.s32.totalorder %s379, %s380
    %p389 = scmp.eq.s32.totalorder %s34, 0
    %p390 = por %p388, %p389
    %p391 = scmp.ne.s32.totalorder %s379, %s380
    %p392 = scmp.eq.s32.totalorder %s35, 1
    %p393 = por %p391, %p392
    %p395 = scmp.ne.s32.totalorder %s380, %s394
    %p396 = scmp.eq.s32.totalorder %s35, 0
    %p397 = por %p395, %p396
    %s399 = sadd.s32 %s398, 1
    %p402 = scmp.eq.s32.totalorder %s29, 1
    %p403 = scmp.ne.s32.totalorder %s398, %s400
    %p404 = scmp.eq.s32.totalorder %s29, 0
    %p405 = por %p403, %p404
    %p406 = scmp.ne.s32.totalorder %s398, %s400
    %p407 = scmp.eq.s32.totalorder %s34, 1
    %p408 = por %p406, %p407
    %p409 = scmp.ne.s32.totalorder %s400, %s401
    %p410 = scmp.eq.s32.totalorder %s34, 0
    %p411 = por %p409, %p410
    %p412 = scmp.ne.s32.totalorder %s400, %s401
    %p413 = scmp.eq.s32.totalorder %s35, 1
    %p414 = por %p412, %p413
    %p416 = scmp.ne.s32.totalorder %s401, %s415
    %p417 = scmp.eq.s32.totalorder %s35, 0
    %p418 = por %p416, %p417
    %s420 = sadd.s32 %s419, 1
    %p423 = scmp.eq.s32.totalorder %s29, 1
    %p424 = scmp.ne.s32.totalorder %s419, %s421
    %p425 = scmp.eq.s32.totalorder %s29, 0
    %p426 = por %p424, %p425
    %p427 = scmp.ne.s32.totalorder %s419, %s421
    %p428 = scmp.eq.s32.totalorder %s34, 1
    %p429 = por %p427, %p428
    %p430 = scmp.ne.s32.totalorder %s421, %s422
    %p431 = scmp.eq.s32.totalorder %s34, 0
    %p432 = por %p430, %p431
    %p433 = scmp.ne.s32.totalorder %s421, %s422
    %p434 = scmp.eq.s32.totalorder %s35, 1
    %p435 = por %p433, %p434
    %p437 = scmp.ne.s32.totalorder %s422, %s436
    %p438 = scmp.eq.s32.totalorder %s35, 0
    %p439 = por %p437, %p438
    %s441 = sadd.s32 %s440, 1
    %p444 = scmp.eq.s32.totalorder %s29, 1
    %p445 = scmp.ne.s32.totalorder %s440, %s442
    %p446 = scmp.eq.s32.totalorder %s29, 0
    %p447 = por %p445, %p446
    %p448 = scmp.ne.s32.totalorder %s440, %s442
    %p449 = scmp.eq.s32.totalorder %s34, 1
    %p450 = por %p448, %p449
    %p451 = scmp.ne.s32.totalorder %s442, %s443
    %p452 = scmp.eq.s32.totalorder %s34, 0
    %p453 = por %p451, %p452
    %p454 = scmp.ne.s32.totalorder %s442, %s443
    %p455 = scmp.eq.s32.totalorder %s35, 1
    %p456 = por %p454, %p455
    %p458 = scmp.ne.s32.totalorder %s443, %s457
    %p459 = scmp.eq.s32.totalorder %s35, 0
    %p460 = por %p458, %p459
    %s462 = sadd.s32 %s461, 1
    %p465 = scmp.eq.s32.totalorder %s29, 1
    %p466 = scmp.ne.s32.totalorder %s461, %s463
    %p467 = scmp.eq.s32.totalorder %s29, 0
    %p468 = por %p466, %p467
    %p469 = scmp.ne.s32.totalorder %s461, %s463
    %p470 = scmp.eq.s32.totalorder %s34, 1
    %p471 = por %p469, %p470
    %p472 = scmp.ne.s32.totalorder %s463, %s464
    %p473 = scmp.eq.s32.totalorder %s34, 0
    %p474 = por %p472, %p473
    %p475 = scmp.ne.s32.totalorder %s463, %s464
    %p476 = scmp.eq.s32.totalorder %s35, 1
    %p477 = por %p475, %p476
    %p479 = scmp.ne.s32.totalorder %s464, %s478
    %p480 = scmp.eq.s32.totalorder %s35, 0
    %p481 = por %p479, %p480
    %s483 = sadd.s32 %s482, 1
    %p486 = scmp.eq.s32.totalorder %s29, 1
    %p487 = scmp.ne.s32.totalorder %s482, %s484
    %p488 = scmp.eq.s32.totalorder %s29, 0
    %p489 = por %p487, %p488
    %p490 = scmp.ne.s32.totalorder %s482, %s484
    %p491 = scmp.eq.s32.totalorder %s34, 1
    %p492 = por %p490, %p491
    %p493 = scmp.ne.s32.totalorder %s484, %s485
    %p494 = scmp.eq.s32.totalorder %s34, 0
    %p495 = por %p493, %p494
    %p496 = scmp.ne.s32.totalorder %s484, %s485
    %p497 = scmp.eq.s32.totalorder %s35, 1
    %p498 = por %p496, %p497
    %p500 = scmp.ne.s32.totalorder %s485, %s499
    %p501 = scmp.eq.s32.totalorder %s35, 0
    %p502 = por %p500, %p501
    %s504 = sadd.s32 %s503, 1
    %p507 = scmp.eq.s32.totalorder %s29, 1
    %p508 = scmp.ne.s32.totalorder %s503, %s505
    %p509 = scmp.eq.s32.totalorder %s29, 0
    %p510 = por %p508, %p509
    %p511 = scmp.ne.s32.totalorder %s503, %s505
    %p512 = scmp.eq.s32.totalorder %s34, 1
    %p513 = por %p511, %p512
    %p514 = scmp.ne.s32.totalorder %s505, %s506
    %p515 = scmp.eq.s32.totalorder %s34, 0
    %p516 = por %p514, %p515
    %p517 = scmp.ne.s32.totalorder %s505, %s506
    %p518 = scmp.eq.s32.totalorder %s35, 1
    %p519 = por %p517, %p518
    %p521 = scmp.ne.s32.totalorder %s506, %s520
    %p522 = scmp.eq.s32.totalorder %s35, 0
    %p523 = por %p521, %p522
    %s525 = sadd.s32 %s524, 1
    %p528 = scmp.eq.s32.totalorder %s29, 1
    %p529 = scmp.ne.s32.totalorder %s524, %s526
    %p530 = scmp.eq.s32.totalorder %s29, 0
    %p531 = por %p529, %p530
    %p532 = scmp.ne.s32.totalorder %s524, %s526
    %p533 = scmp.eq.s32.totalorder %s34, 1
    %p534 = por %p532, %p533
    %p535 = scmp.ne.s32.totalorder %s526, %s527
    %p536 = scmp.eq.s32.totalorder %s34, 0
    %p537 = por %p535, %p536
    %p538 = scmp.ne.s32.totalorder %s526, %s527
    %p539 = scmp.eq.s32.totalorder %s35, 1
    %p540 = por %p538, %p539
    %p542 = scmp.ne.s32.totalorder %s527, %s541
    %p543 = scmp.eq.s32.totalorder %s35, 0
    %p544 = por %p542, %p543
    %s545 = ssub.s32 %s29, %s36
    %p546 = scmp.eq.s32.totalorder %s545, 0
    %s548 = sadd.s32 %s547, 1
    %s549 = scalar_select %p546, %s547, %s548
    %p552 = pneg %p546
    %p553 = scmp.eq.s32.totalorder %s29, 1
    %p554 = por %p552, %p553
    %p555 = scmp.ne.s32.totalorder %s547, %s550
    %p556 = scmp.eq.s32.totalorder %s29, 0
    %p557 = por %p555, %p556
    %p558 = scmp.ne.s32.totalorder %s547, %s550
    %p559 = scmp.eq.s32.totalorder %s34, 1
    %p560 = por %p558, %p559
    %p561 = scmp.ne.s32.totalorder %s550, %s551
    %p562 = scmp.eq.s32.totalorder %s34, 0
    %p563 = por %p561, %p562
    %p564 = scmp.ne.s32.totalorder %s550, %s551
    %p565 = scmp.eq.s32.totalorder %s35, 1
    %p566 = por %p564, %p565
    %p568 = scmp.ne.s32.totalorder %s551, %s567
    %p569 = scmp.eq.s32.totalorder %s35, 0
    %p570 = por %p568, %p569
    %p571 = scmp.le.s32.totalorder 1, %s29
    %p572 = scmp.lt.s32.totalorder %s29, 3
    %p573 = pnand %p571, %p572
    %p574 = pneg %p573
    // Predicated region
    $region9: #{transformer_forward.7} parent=5 // pred_check
      _
    $region10: #{transformer_forward.7} parent=5 // pred_check_branch
      %576 = sbr.rel (%p573) target = $region12
    $region11: #{transformer_forward.7} parent=5 // pred_region
      %s577 = ssub.s32 %s29, 1
      // Predicated region
      $region13: #{transformer_forward.7} parent=11 // pred_check
        %p578 = pneg %p180
      $region14: #{transformer_forward.7} parent=11 // pred_check_branch
        %580 = sbr.rel (%p578) target = $region16
      $region15: #{transformer_forward.7} parent=11 // pred_region
        _
      $region16: #{transformer_forward.7} parent=11 // pred_fallthru
        _
      // Predicated region
      $region17: #{transformer_forward.7} parent=11 // pred_check
        %p581 = pneg %p201
      $region18: #{transformer_forward.7} parent=11 // pred_check_branch
        %583 = sbr.rel (%p581) target = $region20
      $region19: #{transformer_forward.7} parent=11 // pred_region
        _
      $region20: #{transformer_forward.7} parent=11 // pred_fallthru
        _
      // Predicated region
      $region21: #{transformer_forward.7} parent=11 // pred_check
        %p584 = pneg %p222
      $region22: #{transformer_forward.7} parent=11 // pred_check_branch
        %586 = sbr.rel (%p584) target = $region24
      $region23: #{transformer_forward.7} parent=11 // pred_region
        _
      $region24: #{transformer_forward.7} parent=11 // pred_fallthru
        _
      // Predicated region
      $region25: #{transformer_forward.7} parent=11 // pred_check
        %p587 = pneg %p243
      $region26: #{transformer_forward.7} parent=11 // pred_check_branch
        %589 = sbr.rel (%p587) target = $region28
      $region27: #{transformer_forward.7} parent=11 // pred_region
        _
      $region28: #{transformer_forward.7} parent=11 // pred_fallthru
        _
      // Predicated region
      $region29: #{transformer_forward.7} parent=11 // pred_check
        %p590 = pneg %p264
      $region30: #{transformer_forward.7} parent=11 // pred_check_branch
        %592 = sbr.rel (%p590) target = $region32
      $region31: #{transformer_forward.7} parent=11 // pred_region
        _
      $region32: #{transformer_forward.7} parent=11 // pred_fallthru
        _
      // Predicated region
      $region33: #{transformer_forward.7} parent=11 // pred_check
        %p593 = pneg %p285
      $region34: #{transformer_forward.7} parent=11 // pred_check_branch
        %595 = sbr.rel (%p593) target = $region36
      $region35: #{transformer_forward.7} parent=11 // pred_region
        _
      $region36: #{transformer_forward.7} parent=11 // pred_fallthru
        _
      // Predicated region
      $region37: #{transformer_forward.7} parent=11 // pred_check
        %p596 = pneg %p306
      $region38: #{transformer_forward.7} parent=11 // pred_check_branch
        %598 = sbr.rel (%p596) target = $region40
      $region39: #{transformer_forward.7} parent=11 // pred_region
        _
      $region40: #{transformer_forward.7} parent=11 // pred_fallthru
        _
      // Predicated region
      $region41: #{transformer_forward.7} parent=11 // pred_check
        %p599 = pneg %p327
      $region42: #{transformer_forward.7} parent=11 // pred_check_branch
        %601 = sbr.rel (%p599) target = $region44
      $region43: #{transformer_forward.7} parent=11 // pred_region
        _
      $region44: #{transformer_forward.7} parent=11 // pred_fallthru
        _
      // Predicated region
      $region45: #{transformer_forward.7} parent=11 // pred_check
        %p602 = pneg %p348
      $region46: #{transformer_forward.7} parent=11 // pred_check_branch
        %604 = sbr.rel (%p602) target = $region48
      $region47: #{transformer_forward.7} parent=11 // pred_region
        _
      $region48: #{transformer_forward.7} parent=11 // pred_fallthru
        _
      // Predicated region
      $region49: #{transformer_forward.7} parent=11 // pred_check
        %p605 = pneg %p369
      $region50: #{transformer_forward.7} parent=11 // pred_check_branch
        %607 = sbr.rel (%p605) target = $region52
      $region51: #{transformer_forward.7} parent=11 // pred_region
        _
      $region52: #{transformer_forward.7} parent=11 // pred_fallthru
        _
      // Predicated region
      $region53: #{transformer_forward.7} parent=11 // pred_check
        %p608 = pneg %p390
      $region54: #{transformer_forward.7} parent=11 // pred_check_branch
        %610 = sbr.rel (%p608) target = $region56
      $region55: #{transformer_forward.7} parent=11 // pred_region
        _
      $region56: #{transformer_forward.7} parent=11 // pred_fallthru
        _
      // Predicated region
      $region57: #{transformer_forward.7} parent=11 // pred_check
        %p611 = pneg %p411
      $region58: #{transformer_forward.7} parent=11 // pred_check_branch
        %613 = sbr.rel (%p611) target = $region60
      $region59: #{transformer_forward.7} parent=11 // pred_region
        _
      $region60: #{transformer_forward.7} parent=11 // pred_fallthru
        _
      // Predicated region
      $region61: #{transformer_forward.7} parent=11 // pred_check
        %p614 = pneg %p432
      $region62: #{transformer_forward.7} parent=11 // pred_check_branch
        %616 = sbr.rel (%p614) target = $region64
      $region63: #{transformer_forward.7} parent=11 // pred_region
        _
      $region64: #{transformer_forward.7} parent=11 // pred_fallthru
        _
      // Predicated region
      $region65: #{transformer_forward.7} parent=11 // pred_check
        %p617 = pneg %p453
      $region66: #{transformer_forward.7} parent=11 // pred_check_branch
        %619 = sbr.rel (%p617) target = $region68
      $region67: #{transformer_forward.7} parent=11 // pred_region
        _
      $region68: #{transformer_forward.7} parent=11 // pred_fallthru
        _
      // Predicated region
      $region69: #{transformer_forward.7} parent=11 // pred_check
        %p620 = pneg %p474
      $region70: #{transformer_forward.7} parent=11 // pred_check_branch
        %622 = sbr.rel (%p620) target = $region72
      $region71: #{transformer_forward.7} parent=11 // pred_region
        _
      $region72: #{transformer_forward.7} parent=11 // pred_fallthru
        _
      // Predicated region
      $region73: #{transformer_forward.7} parent=11 // pred_check
        %p623 = pneg %p495
      $region74: #{transformer_forward.7} parent=11 // pred_check_branch
        %625 = sbr.rel (%p623) target = $region76
      $region75: #{transformer_forward.7} parent=11 // pred_region
        _
      $region76: #{transformer_forward.7} parent=11 // pred_fallthru
        _
      // Predicated region
      $region77: #{transformer_forward.7} parent=11 // pred_check
        %p626 = pneg %p516
      $region78: #{transformer_forward.7} parent=11 // pred_check_branch
        %628 = sbr.rel (%p626) target = $region80
      $region79: #{transformer_forward.7} parent=11 // pred_region
        _
      $region80: #{transformer_forward.7} parent=11 // pred_fallthru
        _
      // Predicated region
      $region81: #{transformer_forward.7} parent=11 // pred_check
        %p629 = pneg %p537
      $region82: #{transformer_forward.7} parent=11 // pred_check_branch
        %631 = sbr.rel (%p629) target = $region84
      $region83: #{transformer_forward.7} parent=11 // pred_region
        _
      $region84: #{transformer_forward.7} parent=11 // pred_fallthru
        _
    $region12: #{transformer_forward.7} parent=5 // pred_fallthru
      _
    %p632 = scmp.lt.s32.totalorder %s29, 2
    // Predicated region
    $region85: #{transformer_forward.7} parent=5 // pred_check
      %p633 = pneg %p632
    $region86: #{transformer_forward.7} parent=5 // pred_check_branch
      %635 = sbr.rel (%p633) target = $region88
    $region87: #{transformer_forward.7} parent=5 // pred_region
      // Predicated region
      $region89: #{transformer_forward.7} parent=87 // pred_check
        %p636 = pneg %p49
      $region90: #{transformer_forward.7} parent=87 // pred_check_branch
        %638 = sbr.rel (%p636) target = $region92
      $region91: #{transformer_forward.7} parent=87 // pred_region
        %p639 = scmp.lt.s32.totalorder %s29, 1
        %s640 = scalar_select %p639, %s29, 1
        %s641 = smul.addr %s640, 8
        %s642 = scalar_lea.vmem %s0, %s641
      $region92: #{transformer_forward.7} parent=87 // pred_fallthru
        _
      // Predicated region
      $region93: #{transformer_forward.7} parent=87 // pred_check
        %p643 = pneg %p75
      $region94: #{transformer_forward.7} parent=87 // pred_check_branch
        %645 = sbr.rel (%p643) target = $region96
      $region95: #{transformer_forward.7} parent=87 // pred_region
        %p646 = scmp.lt.s32.totalorder %s29, 1
        %s647 = scalar_select %p646, %s29, 1
        %s648 = scalar_lea.vmem %s1, %s647
      $region96: #{transformer_forward.7} parent=87 // pred_fallthru
        _
      // Predicated region
      $region97: #{transformer_forward.7} parent=87 // pred_check
        %p649 = pneg %p101
      $region98: #{transformer_forward.7} parent=87 // pred_check_branch
        %651 = sbr.rel (%p649) target = $region100
      $region99: #{transformer_forward.7} parent=87 // pred_region
        %p652 = scmp.lt.s32.totalorder %s29, 1
        %s653 = scalar_select %p652, %s29, 1
        %s654 = scalar_lea.vmem %s2, %s653
      $region100: #{transformer_forward.7} parent=87 // pred_fallthru
        _
      // Predicated region
      $region101: #{transformer_forward.7} parent=87 // pred_check
        %p655 = pneg %p127
      $region102: #{transformer_forward.7} parent=87 // pred_check_branch
        %657 = sbr.rel (%p655) target = $region104
      $region103: #{transformer_forward.7} parent=87 // pred_region
        %p658 = scmp.lt.s32.totalorder %s29, 1
        %s659 = scalar_select %p658, %s29, 1
        %s660 = smul.addr %s659, 4
        %s661 = scalar_lea.vmem %s3, %s660
      $region104: #{transformer_forward.7} parent=87 // pred_fallthru
        _
      // Predicated region
      $region105: #{transformer_forward.7} parent=87 // pred_check
        %p662 = pneg %p153
      $region106: #{transformer_forward.7} parent=87 // pred_check_branch
        %664 = sbr.rel (%p662) target = $region108
      $region107: #{transformer_forward.7} parent=87 // pred_region
        %p665 = scmp.lt.s32.totalorder %s29, 1
        %s666 = scalar_select %p665, %s29, 1
        %s667 = smul.addr %s666, 4
        %s668 = scalar_lea.vmem %s4, %s667
      $region108: #{transformer_forward.7} parent=87 // pred_fallthru
        _
    $region88: #{transformer_forward.7} parent=5 // pred_fallthru
      _
    %p669 = scmp.le.s32.totalorder 1, %s29
    %p670 = scmp.lt.s32.totalorder %s29, 3
    %p671 = pnand %p669, %p670
    %p672 = pneg %p671
    // Predicated region
    $region109: #{transformer_forward.7} parent=5 // pred_check
      _
    $region110: #{transformer_forward.7} parent=5 // pred_check_branch
      %674 = sbr.rel (%p671) target = $region112
    $region111: #{transformer_forward.7} parent=5 // pred_region
      %s675 = ssub.s32 %s29, 1
      %p676 = scmp.lt.s32.totalorder %s34, 1
      %s677 = scalar_select %p676, %s34, 1
      %s678 = smul.addr %s677, 8
      %s679 = scalar_lea.vmem %s0, %s678
      %p680 = pneg %p55
      %p681 = pneg %p52
      %p682 = scmp.lt.s32.totalorder %s34, 1
      %s683 = scalar_select %p682, %s34, 1
      %s684 = scalar_lea.vmem %s1, %s683
      %p685 = pneg %p81
      %p686 = pneg %p78
      %p687 = scmp.lt.s32.totalorder %s34, 1
      %s688 = scalar_select %p687, %s34, 1
      %s689 = scalar_lea.vmem %s2, %s688
      %p690 = pneg %p107
      %p691 = pneg %p104
      %p692 = scmp.lt.s32.totalorder %s34, 1
      %s693 = scalar_select %p692, %s34, 1
      %s694 = smul.addr %s693, 4
      %s695 = scalar_lea.vmem %s3, %s694
      %p696 = pneg %p133
      %p697 = pneg %p130
      %p698 = scmp.lt.s32.totalorder %s34, 1
      %s699 = scalar_select %p698, %s34, 1
      %s700 = smul.addr %s699, 4
      %s701 = scalar_lea.vmem %s4, %s700
      %p702 = pneg %p159
      %p703 = pneg %p156
      %p704 = pneg %p180
      %p705 = pneg %p177
      %p706 = pneg %p201
      %p707 = pneg %p198
      %p708 = pneg %p222
      %p709 = pneg %p219
      %p710 = pneg %p243
      %p711 = pneg %p240
      %p712 = pneg %p264
      %p713 = pneg %p261
      %p714 = pneg %p285
      %p715 = pneg %p282
      %p716 = pneg %p306
      %p717 = pneg %p303
      %p718 = pneg %p327
      %p719 = pneg %p324
      %p720 = pneg %p348
      %p721 = pneg %p345
      %p722 = pneg %p369
      %p723 = pneg %p366
      %p724 = pneg %p390
      %p725 = pneg %p387
      %p726 = pneg %p411
      %p727 = pneg %p408
      %p728 = pneg %p432
      %p729 = pneg %p429
      %p730 = pneg %p453
      %p731 = pneg %p450
      %p732 = pneg %p474
      %p733 = pneg %p471
      %p734 = pneg %p495
      %p735 = pneg %p492
      %p736 = pneg %p516
      %p737 = pneg %p513
      %p738 = pneg %p537
      %p739 = pneg %p534
      %p740 = pneg %p563
      %p741 = pneg %p560
      %p742 = scmp.lt.s32.totalorder %s34, 1
      %s743 = scalar_select %p742, %s34, 1
      %s744 = smul.addr %s743, 4
      %s745 = scalar_lea.vmem %s23, %s744
      %p746 = scmp.lt.s32.totalorder %s34, 1
      %s747 = scalar_select %p746, %s34, 1
      %s748 = smul.addr %s747, 8
      %s749 = scalar_lea.vmem %s0, %s748
      %p750 = scmp.lt.s32.totalorder %s34, 1
      %s751 = scalar_select %p750, %s34, 1
      %s752 = scalar_lea.vmem %s1, %s751
      %p753 = scmp.lt.s32.totalorder %s34, 1
      %s754 = scalar_select %p753, %s34, 1
      %s755 = scalar_lea.vmem %s2, %s754
      %p756 = scmp.lt.s32.totalorder %s34, 1
      %s757 = scalar_select %p756, %s34, 1
      %s758 = smul.addr %s757, 4
      %s759 = scalar_lea.vmem %s3, %s758
      %p760 = scmp.lt.s32.totalorder %s34, 1
      %s761 = scalar_select %p760, %s34, 1
      %s762 = smul.addr %s761, 4
      %s763 = scalar_lea.vmem %s4, %s762
      %p764 = scmp.lt.s32.totalorder %s34, 1
      %s765 = scalar_select %p764, %s34, 1
      %s766 = smul.addr %s765, 4
      %s767 = scalar_lea.vmem %s23, %s766
      %v769 = vld [vmem:[%s759] sm:$0xf]
      %v770 = vunpack.c.l.bf16 %v769
      %v771 = vld [vmem:[%s763] sm:$0xf]
      %v772 = vlaneseq
      %v773 = vshrl.u32 %v772, 7
      %v774 = vlaneseq
      %v775 = vand.u32 %v774, 127
      %v776 = vld [vmem:[%s749] sm:$0xff]
      %vm777 = vcmp.gt.f32.partialorder %v776, 0.5
      %v778 = vld [vmem:[%s752] sm:$0x1]
      %vm779 = vcmp.gt.f32.partialorder %v778, 0.5
      %v780 = vsel %vm777, 1, 0
      %781 = vset.pattern.permute.xlu0 0
      %782 = vperm.xlu0 %781, %v780
      %v783 = vpop.permute.xlu0 %782
      %vm784 = vcmp.eq.s32.totalorder %v783, 1
      %v785 = vsel %vm779, 1, 0
      %v786 = vlaneseq
      %v787 = vshrl.u32 %v786, 7
      %v788 = vsub.s32 0, %v787
      %v789 = vrot.slane %v785, %v788
      %vm790 = vcmp.eq.s32.totalorder %v789, 1
      %vm791 = vmand %vm784, %vm790
      %vm792 = vcmp.le.s32.totalorder %v775, %v773
      %vm793 = vmand %vm791, %vm792
      %v794 = vld [vmem:[%s5] sm:$0xf]
      %v795 = vld [vmem:[%s5 + $0x4] sm:$0xf]
      %v796 = vld [vmem:[%s5 + $0x8] sm:$0xf]
      %v797 = vld [vmem:[%s5 + $0xc] sm:$0xf]
      %v798 = vld [vmem:[%s6] sm:$0x1]
      %v800 = vlaneseq
      %v801 = vshrl.u32 %v800, 7
      %v802 = vsub.s32 0, %v801
      %v803 = vrot.slane %v798, %v802
      %v809 = vunpack.c.l.b16 %v794
      %v810 = vunpack.c.l.b16 %v795
      %v811 = vunpack.c.l.b16 %v796
      %v812 = vunpack.c.l.b16 %v797
      %v813 = vpack.c.b16 %v810, %v809
      %v814 = vpack.c.b16 %v812, %v811
      %vm817 = vcmask 261120
      %v819 = vsel %vm817, %v769, 0
      %821 = vmatprep.subr.bf16.mxu0 0
      %822 = vmatpush1.bf16.msra.mxu0 0
      %823 = vmatprep.subr.bf16.mxu0 0
      %824 = vmatpush1.bf16.msra.mxu0 0
      %825 = vmatprep.subr.bf16.mxu0 0
      %826 = vmatpush1.bf16.msra.mxu0 0
      %827 = vmatprep.subr.bf16.mxu0 0
      %828 = vmatpush1.bf16.msra.mxu0 0
      %829 = vmatprep.subr.bf16.mxu0 0
      %830 = vmatpush1.bf16.msra.mxu0 0
      %831 = vmatprep.subr.bf16.mxu0 0
      %832 = vmatpush1.bf16.msra.mxu0 0
      %833 = vmatprep.subr.bf16.mxu0 0
      %834 = vmatpush1.bf16.msra.mxu0 %v814
      %835 = vmatprep.subr.bf16.mxu0 0
      %836 = vmatpush1.bf16.msra.mxu0 %v813
      %837 = vmatprep.subr.bf16.mxu0 0
      %838 = vmatpush2.bf16.msra.mxu0 0
      %839 = vmatprep.subr.bf16.mxu0 0
      %840 = vmatpush2.bf16.msra.mxu0 0
      %841 = vmatprep.subr.bf16.mxu0 0
      %842 = vmatpush2.bf16.msra.mxu0 0
      %843 = vmatprep.subr.bf16.mxu0 0
      %844 = vmatpush2.bf16.msra.mxu0 0
      %845 = vmatprep.subr.bf16.mxu0 0
      %846 = vmatpush2.bf16.msra.mxu0 0
      %847 = vmatprep.subr.bf16.mxu0 0
      %848 = vmatpush2.bf16.msra.mxu0 0
      %849 = vmatprep.subr.bf16.mxu0 0
      %850 = vmatpush2.bf16.msra.mxu0 0
      %851 = vmatprep.subr.bf16.mxu0 0
      %852 = vmatpush2.bf16.msra.mxu0 0
      %853 = vmatprep.mubr.bf16.mxu0 0
      %854 = vmatmul.mubr.bf16.gmra.mxu0 %v819
      %v855 = vpop.f32.mrf.mxu0
      %v856 = vadd.f32 %v803, %v855
      %v857 = vpop.f32.mrf.mxu0
      %v858 = vpop.f32.mrf.mxu0
      %v859 = vpop.f32.mrf.mxu0
      %860 = vdwg.mxu0
      %v861 = vpack.c.bf16 %v856, %v856
      %863 = vrot.lane.b32.xlu0 %v861, 96
      %v864 = vpop.permute.xlu0 %863
      %vm865 = vcmask 64512
      %v867 = vsel %vm865, %v861, 0
      %v870 = vsel %vm865, %v864, 0
      %872 = vmatprep.subr.bf16.mxu0 0
      %873 = vmatpush1.bf16.xpose.msra.mxu0 0
      %874 = vmatprep.subr.bf16.mxu0 0
      %875 = vmatpush1.bf16.xpose.msra.mxu0 0
      %876 = vmatprep.subr.bf16.mxu0 0
      %877 = vmatpush1.bf16.xpose.msra.mxu0 0
      %878 = vmatprep.subr.bf16.mxu0 0
      %879 = vmatpush1.bf16.xpose.msra.mxu0 0
      %880 = vmatprep.subr.bf16.mxu0 0
      %881 = vmatpush1.bf16.xpose.msra.mxu0 0
      %882 = vmatprep.subr.bf16.mxu0 0
      %883 = vmatpush1.bf16.xpose.msra.mxu0 0
      %884 = vmatprep.subr.bf16.mxu0 0
      %885 = vmatpush1.bf16.xpose.msra.mxu0 0
      %886 = vmatprep.subr.bf16.mxu0 0
      %887 = vmatpush1.bf16.xpose.msra.mxu0 %v870
      %888 = vmatprep.subr.bf16.mxu0 0
      %889 = vmatpush2.bf16.xpose.msra.mxu0 0
      %890 = vmatprep.subr.bf16.mxu0 0
      %891 = vmatpush2.bf16.xpose.msra.mxu0 0
      %892 = vmatprep.subr.bf16.mxu0 0
      %893 = vmatpush2.bf16.xpose.msra.mxu0 0
      %894 = vmatprep.subr.bf16.mxu0 0
      %895 = vmatpush2.bf16.xpose.msra.mxu0 0
      %896 = vmatprep.subr.bf16.mxu0 0
      %897 = vmatpush2.bf16.xpose.msra.mxu0 0
      %898 = vmatprep.subr.bf16.mxu0 0
      %899 = vmatpush2.bf16.xpose.msra.mxu0 0
      %900 = vmatprep.subr.bf16.mxu0 0
      %901 = vmatpush2.bf16.xpose.msra.mxu0 0
      %902 = vmatprep.subr.bf16.mxu0 0
      %903 = vmatpush2.bf16.xpose.msra.mxu0 0
      %904 = vmatprep.mubr.bf16.mxu0 0
      %905 = vmatmul.mubr.bf16.gmra.mxu0 %v867
      %v906 = vpop.f32.mrf.mxu0
      %v907 = vadd.f32 0.0, %v906
      %v908 = vpop.f32.mrf.mxu0
      %v909 = vpop.f32.mrf.mxu0
      %v910 = vpop.f32.mrf.mxu0
      %911 = vdwg.mxu0
      %v912 = vmul.f32 %v907, 0.35355338
      %v913 = vsel %vm793, %v912, -1e+09
      %v914 = vsel %vm865, %v913, -inf
      %915 = vmax.xlane.f32.xlu0 %v914
      %v916 = vpop.xlane.xlu0 %915
      %v917 = vsub.f32 %v913, %v916
      %v918 = vmul.f32 %v917, 1.442695
      %v919 = vpow.pop %v918
      %v920 = vsel %vm865, %v919, 0.0
      %921 = vadd.xlane.f32.xlu0 %v920
      %v922 = vpop.xlane.xlu0 %921
      %v923 = vrcp.pop %v922
      %v924 = vmul.f32 %v919, %v923
      %v925 = vpack.c.bf16 %v924, %v924
      %926 = vrot.lane.b32.xlu0 %v861, 64
      %v927 = vpop.permute.xlu0 %926
      %v929 = vsel %vm865, %v925, 0
      %vm931 = vcmask 1043456
      %v933 = vsel %vm931, %v927, 0
      %935 = vmatprep.subr.bf16.mxu0 0
      %936 = vmatpush1.bf16.msra.mxu0 0
      %937 = vmatprep.subr.bf16.mxu0 0
      %938 = vmatpush1.bf16.msra.mxu0 0
      %939 = vmatprep.subr.bf16.mxu0 0
      %940 = vmatpush1.bf16.msra.mxu0 0
      %941 = vmatprep.subr.bf16.mxu0 0
      %942 = vmatpush1.bf16.msra.mxu0 0
      %943 = vmatprep.subr.bf16.mxu0 0
      %944 = vmatpush1.bf16.msra.mxu0 0
      %945 = vmatprep.subr.bf16.mxu0 0
      %946 = vmatpush1.bf16.msra.mxu0 0
      %947 = vmatprep.subr.bf16.mxu0 0
      %948 = vmatpush1.bf16.msra.mxu0 0
      %949 = vmatprep.subr.bf16.mxu0 0
      %950 = vmatpush1.bf16.msra.mxu0 %v933
      %951 = vmatprep.subr.bf16.mxu0 0
      %952 = vmatpush2.bf16.msra.mxu0 0
      %953 = vmatprep.subr.bf16.mxu0 0
      %954 = vmatpush2.bf16.msra.mxu0 0
      %955 = vmatprep.subr.bf16.mxu0 0
      %956 = vmatpush2.bf16.msra.mxu0 0
      %957 = vmatprep.subr.bf16.mxu0 0
      %958 = vmatpush2.bf16.msra.mxu0 0
      %959 = vmatprep.subr.bf16.mxu0 0
      %960 = vmatpush2.bf16.msra.mxu0 0
      %961 = vmatprep.subr.bf16.mxu0 0
      %962 = vmatpush2.bf16.msra.mxu0 0
      %963 = vmatprep.subr.bf16.mxu0 0
      %964 = vmatpush2.bf16.msra.mxu0 0
      %965 = vmatprep.subr.bf16.mxu0 0
      %966 = vmatpush2.bf16.msra.mxu0 0
      %967 = vmatprep.mubr.bf16.mxu0 0
      %968 = vmatmul.mubr.bf16.gmra.mxu0 %v929
      %v969 = vpop.f32.mrf.mxu0
      %v970 = vadd.f32 0.0, %v969
      %v971 = vpop.f32.mrf.mxu0
      %v972 = vpop.f32.mrf.mxu0
      %v973 = vpop.f32.mrf.mxu0
      %974 = vdwg.mxu0
      %975 = vst.msk [vmem:[#allocation2] sm:$0xff] %vm865, %v970
      %976 = vrot.lane.b32.xlu0 %v861, 120
      %v977 = vpop.permute.xlu0 %976
      %978 = vrot.lane.b32.xlu0 %v861, 88
      %v979 = vpop.permute.xlu0 %978
      %v981 = vsel %vm865, %v977, 0
      %v984 = vsel %vm865, %v979, 0
      %986 = vmatprep.subr.bf16.mxu0 0
      %987 = vmatpush1.bf16.xpose.msra.mxu0 0
      %988 = vmatprep.subr.bf16.mxu0 0
      %989 = vmatpush1.bf16.xpose.msra.mxu0 0
      %990 = vmatprep.subr.bf16.mxu0 0
      %991 = vmatpush1.bf16.xpose.msra.mxu0 0
      %992 = vmatprep.subr.bf16.mxu0 0
      %993 = vmatpush1.bf16.xpose.msra.mxu0 0
      %994 = vmatprep.subr.bf16.mxu0 0
      %995 = vmatpush1.bf16.xpose.msra.mxu0 0
      %996 = vmatprep.subr.bf16.mxu0 0
      %997 = vmatpush1.bf16.xpose.msra.mxu0 0
      %998 = vmatprep.subr.bf16.mxu0 0
      %999 = vmatpush1.bf16.xpose.msra.mxu0 0
      %1000 = vmatprep.subr.bf16.mxu0 0
      %1001 = vmatpush1.bf16.xpose.msra.mxu0 %v984
      %1002 = vmatprep.subr.bf16.mxu0 0
      %1003 = vmatpush2.bf16.xpose.msra.mxu0 0
      %1004 = vmatprep.subr.bf16.mxu0 0
      %1005 = vmatpush2.bf16.xpose.msra.mxu0 0
      %1006 = vmatprep.subr.bf16.mxu0 0
      %1007 = vmatpush2.bf16.xpose.msra.mxu0 0
      %1008 = vmatprep.subr.bf16.mxu0 0
      %1009 = vmatpush2.bf16.xpose.msra.mxu0 0
      %1010 = vmatprep.subr.bf16.mxu0 0
      %1011 = vmatpush2.bf16.xpose.msra.mxu0 0
      %1012 = vmatprep.subr.bf16.mxu0 0
      %1013 = vmatpush2.bf16.xpose.msra.mxu0 0
      %1014 = vmatprep.subr.bf16.mxu0 0
      %1015 = vmatpush2.bf16.xpose.msra.mxu0 0
      %1016 = vmatprep.subr.bf16.mxu0 0
      %1017 = vmatpush2.bf16.xpose.msra.mxu0 0
      %1018 = vmatprep.mubr.bf16.mxu0 0
      %1019 = vmatmul.mubr.bf16.gmra.mxu0 %v981
      %v1020 = vpop.f32.mrf.mxu0
      %v1021 = vadd.f32 0.0, %v1020
      %v1022 = vpop.f32.mrf.mxu0
      %v1023 = vpop.f32.mrf.mxu0
      %v1024 = vpop.f32.mrf.mxu0
      %1025 = vdwg.mxu0
      %v1026 = vmul.f32 %v1021, 0.35355338
      %v1027 = vsel %vm793, %v1026, -1e+09
      %v1028 = vsel %vm865, %v1027, -inf
      %1029 = vmax.xlane.f32.xlu0 %v1028
      %v1030 = vpop.xlane.xlu0 %1029
      %v1031 = vsub.f32 %v1027, %v1030
      %v1032 = vmul.f32 %v1031, 1.442695
      %v1033 = vpow.pop %v1032
      %v1034 = vsel %vm865, %v1033, 0.0
      %1035 = vadd.xlane.f32.xlu0 %v1034
      %v1036 = vpop.xlane.xlu0 %1035
      %v1037 = vrcp.pop %v1036
      %v1038 = vmul.f32 %v1033, %v1037
      %v1039 = vpack.c.bf16 %v1038, %v1038
      %1040 = vrot.lane.b32.xlu0 %v861, 56
      %v1041 = vpop.permute.xlu0 %1040
      %v1043 = vsel %vm865, %v1039, 0
      %v1046 = vsel %vm931, %v1041, 0
      %1048 = vmatprep.subr.bf16.mxu0 0
      %1049 = vmatpush1.bf16.msra.mxu0 0
      %1050 = vmatprep.subr.bf16.mxu0 0
      %1051 = vmatpush1.bf16.msra.mxu0 0
      %1052 = vmatprep.subr.bf16.mxu0 0
      %1053 = vmatpush1.bf16.msra.mxu0 0
      %1054 = vmatprep.subr.bf16.mxu0 0
      %1055 = vmatpush1.bf16.msra.mxu0 0
      %1056 = vmatprep.subr.bf16.mxu0 0
      %1057 = vmatpush1.bf16.msra.mxu0 0
      %1058 = vmatprep.subr.bf16.mxu0 0
      %1059 = vmatpush1.bf16.msra.mxu0 0
      %1060 = vmatprep.subr.bf16.mxu0 0
      %1061 = vmatpush1.bf16.msra.mxu0 0
      %1062 = vmatprep.subr.bf16.mxu0 0
      %1063 = vmatpush1.bf16.msra.mxu0 %v1046
      %1064 = vmatprep.subr.bf16.mxu0 0
      %1065 = vmatpush2.bf16.msra.mxu0 0
      %1066 = vmatprep.subr.bf16.mxu0 0
      %1067 = vmatpush2.bf16.msra.mxu0 0
      %1068 = vmatprep.subr.bf16.mxu0 0
      %1069 = vmatpush2.bf16.msra.mxu0 0
      %1070 = vmatprep.subr.bf16.mxu0 0
      %1071 = vmatpush2.bf16.msra.mxu0 0
      %1072 = vmatprep.subr.bf16.mxu0 0
      %1073 = vmatpush2.bf16.msra.mxu0 0
      %1074 = vmatprep.subr.bf16.mxu0 0
      %1075 = vmatpush2.bf16.msra.mxu0 0
      %1076 = vmatprep.subr.bf16.mxu0 0
      %1077 = vmatpush2.bf16.msra.mxu0 0
      %1078 = vmatprep.subr.bf16.mxu0 0
      %1079 = vmatpush2.bf16.msra.mxu0 0
      %1080 = vmatprep.mubr.bf16.mxu0 0
      %1081 = vmatmul.mubr.bf16.gmra.mxu0 %v1043
      %v1082 = vpop.f32.mrf.mxu0
      %v1083 = vadd.f32 0.0, %v1082
      %v1084 = vpop.f32.mrf.mxu0
      %v1085 = vpop.f32.mrf.mxu0
      %v1086 = vpop.f32.mrf.mxu0
      %1087 = vdwg.mxu0
      %1089 = vrot.lane.b32.xlu0 %v1083, 8
      %v1090 = vpop.permute.xlu0 %1089
      %vm1092 = vcmask 130112
      %1093 = vst.msk [vmem:[#allocation2] sm:$0xff] %vm1092, %v1090
      %1094 = vrot.lane.b32.xlu0 %v861, 112
      %v1095 = vpop.permute.xlu0 %1094
      %1096 = vrot.lane.b32.xlu0 %v861, 80
      %v1097 = vpop.permute.xlu0 %1096
      %v1099 = vsel %vm865, %v1095, 0
      %v1102 = vsel %vm865, %v1097, 0
      %1104 = vmatprep.subr.bf16.mxu0 0
      %1105 = vmatpush1.bf16.xpose.msra.mxu0 0
      %1106 = vmatprep.subr.bf16.mxu0 0
      %1107 = vmatpush1.bf16.xpose.msra.mxu0 0
      %1108 = vmatprep.subr.bf16.mxu0 0
      %1109 = vmatpush1.bf16.xpose.msra.mxu0 0
      %1110 = vmatprep.subr.bf16.mxu0 0
      %1111 = vmatpush1.bf16.xpose.msra.mxu0 0
      %1112 = vmatprep.subr.bf16.mxu0 0
      %1113 = vmatpush1.bf16.xpose.msra.mxu0 0
      %1114 = vmatprep.subr.bf16.mxu0 0
      %1115 = vmatpush1.bf16.xpose.msra.mxu0 0
      %1116 = vmatprep.subr.bf16.mxu0 0
      %1117 = vmatpush1.bf16.xpose.msra.mxu0 0
      %1118 = vmatprep.subr.bf16.mxu0 0
      %1119 = vmatpush1.bf16.xpose.msra.mxu0 %v1102
      %1120 = vmatprep.subr.bf16.mxu0 0
      %1121 = vmatpush2.bf16.xpose.msra.mxu0 0
      %1122 = vmatprep.subr.bf16.mxu0 0
      %1123 = vmatpush2.bf16.xpose.msra.mxu0 0
      %1124 = vmatprep.subr.bf16.mxu0 0
      %1125 = vmatpush2.bf16.xpose.msra.mxu0 0
      %1126 = vmatprep.subr.bf16.mxu0 0
      %1127 = vmatpush2.bf16.xpose.msra.mxu0 0
      %1128 = vmatprep.subr.bf16.mxu0 0
      %1129 = vmatpush2.bf16.xpose.msra.mxu0 0
      %1130 = vmatprep.subr.bf16.mxu0 0
      %1131 = vmatpush2.bf16.xpose.msra.mxu0 0
      %1132 = vmatprep.subr.bf16.mxu0 0
      %1133 = vmatpush2.bf16.xpose.msra.mxu0 0
      %1134 = vmatprep.subr.bf16.mxu0 0
      %1135 = vmatpush2.bf16.xpose.msra.mxu0 0
      %1136 = vmatprep.mubr.bf16.mxu0 0
      %1137 = vmatmul.mubr.bf16.gmra.mxu0 %v1099
      %v1138 = vpop.f32.mrf.mxu0
      %v1139 = vadd.f32 0.0, %v1138
      %v1140 = vpop.f32.mrf.mxu0
      %v1141 = vpop.f32.mrf.mxu0
      %v1142 = vpop.f32.mrf.mxu0
      %1143 = vdwg.mxu0
      %v1144 = vmul.f32 %v1139, 0.35355338
      %v1145 = vsel %vm793, %v1144, -1e+09
      %v1146 = vsel %vm865, %v1145, -inf
      %1147 = vmax.xlane.f32.xlu0 %v1146
      %v1148 = vpop.xlane.xlu0 %1147
      %v1149 = vsub.f32 %v1145, %v1148
      %v1150 = vmul.f32 %v1149, 1.442695
      %v1151 = vpow.pop %v1150
      %v1152 = vsel %vm865, %v1151, 0.0
      %1153 = vadd.xlane.f32.xlu0 %v1152
      %v1154 = vpop.xlane.xlu0 %1153
      %v1155 = vrcp.pop %v1154
      %v1156 = vmul.f32 %v1151, %v1155
      %v1157 = vpack.c.bf16 %v1156, %v1156
      %1158 = vrot.lane.b32.xlu0 %v861, 48
      %v1159 = vpop.permute.xlu0 %1158
      %v1161 = vsel %vm865, %v1157, 0
      %v1164 = vsel %vm931, %v1159, 0
      %1166 = vmatprep.subr.bf16.mxu0 0
      %1167 = vmatpush1.bf16.msra.mxu0 0
      %1168 = vmatprep.subr.bf16.mxu0 0
      %1169 = vmatpush1.bf16.msra.mxu0 0
      %1170 = vmatprep.subr.bf16.mxu0 0
      %1171 = vmatpush1.bf16.msra.mxu0 0
      %1172 = vmatprep.subr.bf16.mxu0 0
      %1173 = vmatpush1.bf16.msra.mxu0 0
      %1174 = vmatprep.subr.bf16.mxu0 0
      %1175 = vmatpush1.bf16.msra.mxu0 0
      %1176 = vmatprep.subr.bf16.mxu0 0
      %1177 = vmatpush1.bf16.msra.mxu0 0
      %1178 = vmatprep.subr.bf16.mxu0 0
      %1179 = vmatpush1.bf16.msra.mxu0 0
      %1180 = vmatprep.subr.bf16.mxu0 0
      %1181 = vmatpush1.bf16.msra.mxu0 %v1164
      %1182 = vmatprep.subr.bf16.mxu0 0
      %1183 = vmatpush2.bf16.msra.mxu0 0
      %1184 = vmatprep.subr.bf16.mxu0 0
      %1185 = vmatpush2.bf16.msra.mxu0 0
      %1186 = vmatprep.subr.bf16.mxu0 0
      %1187 = vmatpush2.bf16.msra.mxu0 0
      %1188 = vmatprep.subr.bf16.mxu0 0
      %1189 = vmatpush2.bf16.msra.mxu0 0
      %1190 = vmatprep.subr.bf16.mxu0 0
      %1191 = vmatpush2.bf16.msra.mxu0 0
      %1192 = vmatprep.subr.bf16.mxu0 0
      %1193 = vmatpush2.bf16.msra.mxu0 0
      %1194 = vmatprep.subr.bf16.mxu0 0
      %1195 = vmatpush2.bf16.msra.mxu0 0
      %1196 = vmatprep.subr.bf16.mxu0 0
      %1197 = vmatpush2.bf16.msra.mxu0 0
      %1198 = vmatprep.mubr.bf16.mxu0 0
      %1199 = vmatmul.mubr.bf16.gmra.mxu0 %v1161
      %v1200 = vpop.f32.mrf.mxu0
      %v1201 = vadd.f32 0.0, %v1200
      %v1202 = vpop.f32.mrf.mxu0
      %v1203 = vpop.f32.mrf.mxu0
      %v1204 = vpop.f32.mrf.mxu0
      %1205 = vdwg.mxu0
      %1207 = vrot.lane.b32.xlu0 %v1201, 16
      %v1208 = vpop.permute.xlu0 %1207
      %vm1210 = vcmask 195712
      %1211 = vst.msk [vmem:[#allocation2] sm:$0xff] %vm1210, %v1208
      %1212 = vrot.lane.b32.xlu0 %v861, 104
      %v1213 = vpop.permute.xlu0 %1212
      %1214 = vrot.lane.b32.xlu0 %v861, 72
      %v1215 = vpop.permute.xlu0 %1214
      %v1217 = vsel %vm865, %v1213, 0
      %v1220 = vsel %vm865, %v1215, 0
      %1222 = vmatprep.subr.bf16.mxu0 0
      %1223 = vmatpush1.bf16.xpose.msra.mxu0 0
      %1224 = vmatprep.subr.bf16.mxu0 0
      %1225 = vmatpush1.bf16.xpose.msra.mxu0 0
      %1226 = vmatprep.subr.bf16.mxu0 0
      %1227 = vmatpush1.bf16.xpose.msra.mxu0 0
      %1228 = vmatprep.subr.bf16.mxu0 0
      %1229 = vmatpush1.bf16.xpose.msra.mxu0 0
      %1230 = vmatprep.subr.bf16.mxu0 0
      %1231 = vmatpush1.bf16.xpose.msra.mxu0 0
      %1232 = vmatprep.subr.bf16.mxu0 0
      %1233 = vmatpush1.bf16.xpose.msra.mxu0 0
      %1234 = vmatprep.subr.bf16.mxu0 0
      %1235 = vmatpush1.bf16.xpose.msra.mxu0 0
      %1236 = vmatprep.subr.bf16.mxu0 0
      %1237 = vmatpush1.bf16.xpose.msra.mxu0 %v1220
      %1238 = vmatprep.subr.bf16.mxu0 0
      %1239 = vmatpush2.bf16.xpose.msra.mxu0 0
      %1240 = vmatprep.subr.bf16.mxu0 0
      %1241 = vmatpush2.bf16.xpose.msra.mxu0 0
      %1242 = vmatprep.subr.bf16.mxu0 0
      %1243 = vmatpush2.bf16.xpose.msra.mxu0 0
      %1244 = vmatprep.subr.bf16.mxu0 0
      %1245 = vmatpush2.bf16.xpose.msra.mxu0 0
      %1246 = vmatprep.subr.bf16.mxu0 0
      %1247 = vmatpush2.bf16.xpose.msra.mxu0 0
      %1248 = vmatprep.subr.bf16.mxu0 0
      %1249 = vmatpush2.bf16.xpose.msra.mxu0 0
      %1250 = vmatprep.subr.bf16.mxu0 0
      %1251 = vmatpush2.bf16.xpose.msra.mxu0 0
      %1252 = vmatprep.subr.bf16.mxu0 0
      %1253 = vmatpush2.bf16.xpose.msra.mxu0 0
      %1254 = vmatprep.mubr.bf16.mxu0 0
      %1255 = vmatmul.mubr.bf16.gmra.mxu0 %v1217
      %v1256 = vpop.f32.mrf.mxu0
      %v1257 = vadd.f32 0.0, %v1256
      %v1258 = vpop.f32.mrf.mxu0
      %v1259 = vpop.f32.mrf.mxu0
      %v1260 = vpop.f32.mrf.mxu0
      %1261 = vdwg.mxu0
      %v1262 = vmul.f32 %v1257, 0.35355338
      %v1263 = vsel %vm793, %v1262, -1e+09
      %v1264 = vsel %vm865, %v1263, -inf
      %1265 = vmax.xlane.f32.xlu0 %v1264
      %v1266 = vpop.xlane.xlu0 %1265
      %v1267 = vsub.f32 %v1263, %v1266
      %v1268 = vmul.f32 %v1267, 1.442695
      %v1269 = vpow.pop %v1268
      %v1270 = vsel %vm865, %v1269, 0.0
      %1271 = vadd.xlane.f32.xlu0 %v1270
      %v1272 = vpop.xlane.xlu0 %1271
      %v1273 = vrcp.pop %v1272
      %v1274 = vmul.f32 %v1269, %v1273
      %v1275 = vpack.c.bf16 %v1274, %v1274
      %1276 = vrot.lane.b32.xlu0 %v861, 40
      %v1277 = vpop.permute.xlu0 %1276
      %v1279 = vsel %vm865, %v1275, 0
      %v1282 = vsel %vm931, %v1277, 0
      %1284 = vmatprep.subr.bf16.mxu0 0
      %1285 = vmatpush1.bf16.msra.mxu0 0
      %1286 = vmatprep.subr.bf16.mxu0 0
      %1287 = vmatpush1.bf16.msra.mxu0 0
      %1288 = vmatprep.subr.bf16.mxu0 0
      %1289 = vmatpush1.bf16.msra.mxu0 0
      %1290 = vmatprep.subr.bf16.mxu0 0
      %1291 = vmatpush1.bf16.msra.mxu0 0
      %1292 = vmatprep.subr.bf16.mxu0 0
      %1293 = vmatpush1.bf16.msra.mxu0 0
      %1294 = vmatprep.subr.bf16.mxu0 0
      %1295 = vmatpush1.bf16.msra.mxu0 0
      %1296 = vmatprep.subr.bf16.mxu0 0
      %1297 = vmatpush1.bf16.msra.mxu0 0
      %1298 = vmatprep.subr.bf16.mxu0 0
      %1299 = vmatpush1.bf16.msra.mxu0 %v1282
      %1300 = vmatprep.subr.bf16.mxu0 0
      %1301 = vmatpush2.bf16.msra.mxu0 0
      %1302 = vmatprep.subr.bf16.mxu0 0
      %1303 = vmatpush2.bf16.msra.mxu0 0
      %1304 = vmatprep.subr.bf16.mxu0 0
      %1305 = vmatpush2.bf16.msra.mxu0 0
      %1306 = vmatprep.subr.bf16.mxu0 0
      %1307 = vmatpush2.bf16.msra.mxu0 0
      %1308 = vmatprep.subr.bf16.mxu0 0
      %1309 = vmatpush2.bf16.msra.mxu0 0
      %1310 = vmatprep.subr.bf16.mxu0 0
      %1311 = vmatpush2.bf16.msra.mxu0 0
      %1312 = vmatprep.subr.bf16.mxu0 0
      %1313 = vmatpush2.bf16.msra.mxu0 0
      %1314 = vmatprep.subr.bf16.mxu0 0
      %1315 = vmatpush2.bf16.msra.mxu0 0
      %1316 = vmatprep.mubr.bf16.mxu0 0
      %1317 = vmatmul.mubr.bf16.gmra.mxu0 %v1279
      %v1318 = vpop.f32.mrf.mxu0
      %v1319 = vadd.f32 0.0, %v1318
      %v1320 = vpop.f32.mrf.mxu0
      %v1321 = vpop.f32.mrf.mxu0
      %v1322 = vpop.f32.mrf.mxu0
      %1323 = vdwg.mxu0
      %1325 = vrot.lane.b32.xlu0 %v1319, 24
      %v1326 = vpop.permute.xlu0 %1325
      %vm1328 = vcmask 261312
      %1329 = vst.msk [vmem:[#allocation2] sm:$0xff] %vm1328, %v1326
      %v1330 = vld [vmem:[#allocation2] sm:$0xff]
      %v1331 = vpack.c.bf16 %v1330, %v1330
      %v1332 = vld [vmem:[%s7] sm:$0xf]
      %v1333 = vld [vmem:[%s7 + $0x4] sm:$0xf]
      %v1334 = vld [vmem:[%s7 + $0x8] sm:$0xf]
      %v1335 = vld [vmem:[%s7 + $0xc] sm:$0xf]
      %v1336 = vld [vmem:[%s8] sm:$0x1]
      %v1338 = vlaneseq
      %v1339 = vshrl.u32 %v1338, 7
      %v1340 = vsub.s32 0, %v1339
      %v1341 = vrot.slane %v1336, %v1340
      %v1347 = vunpack.c.l.b16 %v1332
      %v1348 = vunpack.c.l.b16 %v1333
      %v1349 = vunpack.c.l.b16 %v1334
      %v1350 = vunpack.c.l.b16 %v1335
      %v1351 = vpack.c.b16 %v1348, %v1347
      %v1352 = vpack.c.b16 %v1350, %v1349
      %v1356 = vsel %vm817, %v1331, 0
      %1358 = vmatprep.subr.bf16.mxu0 0
      %1359 = vmatpush1.bf16.msra.mxu0 0
      %1360 = vmatprep.subr.bf16.mxu0 0
      %1361 = vmatpush1.bf16.msra.mxu0 0
      %1362 = vmatprep.subr.bf16.mxu0 0
      %1363 = vmatpush1.bf16.msra.mxu0 0
      %1364 = vmatprep.subr.bf16.mxu0 0
      %1365 = vmatpush1.bf16.msra.mxu0 0
      %1366 = vmatprep.subr.bf16.mxu0 0
      %1367 = vmatpush1.bf16.msra.mxu0 0
      %1368 = vmatprep.subr.bf16.mxu0 0
      %1369 = vmatpush1.bf16.msra.mxu0 0
      %1370 = vmatprep.subr.bf16.mxu0 0
      %1371 = vmatpush1.bf16.msra.mxu0 %v1352
      %1372 = vmatprep.subr.bf16.mxu0 0
      %1373 = vmatpush1.bf16.msra.mxu0 %v1351
      %1374 = vmatprep.subr.bf16.mxu0 0
      %1375 = vmatpush2.bf16.msra.mxu0 0
      %1376 = vmatprep.subr.bf16.mxu0 0
      %1377 = vmatpush2.bf16.msra.mxu0 0
      %1378 = vmatprep.subr.bf16.mxu0 0
      %1379 = vmatpush2.bf16.msra.mxu0 0
      %1380 = vmatprep.subr.bf16.mxu0 0
      %1381 = vmatpush2.bf16.msra.mxu0 0
      %1382 = vmatprep.subr.bf16.mxu0 0
      %1383 = vmatpush2.bf16.msra.mxu0 0
      %1384 = vmatprep.subr.bf16.mxu0 0
      %1385 = vmatpush2.bf16.msra.mxu0 0
      %1386 = vmatprep.subr.bf16.mxu0 0
      %1387 = vmatpush2.bf16.msra.mxu0 0
      %1388 = vmatprep.subr.bf16.mxu0 0
      %1389 = vmatpush2.bf16.msra.mxu0 0
      %1390 = vmatprep.mubr.bf16.mxu0 0
      %1391 = vmatmul.mubr.bf16.gmra.mxu0 %v1356
      %v1392 = vpop.f32.mrf.mxu0
      %v1393 = vadd.f32 %v1341, %v1392
      %v1394 = vpop.f32.mrf.mxu0
      %v1395 = vpop.f32.mrf.mxu0
      %v1396 = vpop.f32.mrf.mxu0
      %1397 = vdwg.mxu0
      %v1398 = vadd.f32 %v770, %v1393
      %v1399 = vld [vmem:[%s9] sm:$0x1]
      %v1400 = vld [vmem:[%s10] sm:$0x1]
      %v1401 = vsel %vm817, %v1398, 0.0
      %1402 = vadd.xlane.f32.xlu0 %v1401
      %v1403 = vpop.xlane.xlu0 %1402
      %v1404 = vrcp.pop 32.0
      %v1405 = vmul.f32 %v1403, %v1404
      %v1406 = vsub.f32 %v1398, %v1405
      %v1407 = vmul.f32 %v1406, %v1406
      %v1408 = vsel %vm817, %v1407, 0.0
      %1409 = vadd.xlane.f32.xlu0 %v1408
      %v1410 = vpop.xlane.xlu0 %1409
      %v1411 = vmul.f32 %v1410, %v1404
      %v1412 = vadd.f32 %v1411, 1e-05
      %v1413 = vrsqrt.pop %v1412
      %v1414 = vmul.f32 %v1406, %v1413
      %v1416 = vlaneseq
      %v1417 = vshrl.u32 %v1416, 7
      %v1418 = vsub.s32 0, %v1417
      %v1419 = vrot.slane %v1399, %v1418
      %v1421 = vmul.f32 %v1414, %v1419
      %v1423 = vlaneseq
      %v1424 = vshrl.u32 %v1423, 7
      %v1425 = vsub.s32 0, %v1424
      %v1426 = vrot.slane %v1400, %v1425
      %v1428 = vadd.f32 %v1421, %v1426
      %v1429 = vld [vmem:[%s749] sm:$0xff]
      %vm1430 = vcmp.gt.f32.partialorder %v1429, 0.5
      %v1431 = vld [vmem:[%s755] sm:$0x1]
      %vm1432 = vcmp.gt.f32.partialorder %v1431, 0.5
      %v1433 = vsel %vm1430, 1, 0
      %1434 = vset.pattern.permute.xlu0 0
      %1435 = vperm.xlu0 %1434, %v1433
      %v1436 = vpop.permute.xlu0 %1435
      %vm1437 = vcmp.eq.s32.totalorder %v1436, 1
      %v1438 = vsel %vm1432, 1, 0
      %v1439 = vlaneseq
      %v1440 = vshrl.u32 %v1439, 7
      %v1441 = vsub.s32 0, %v1440
      %v1442 = vrot.slane %v1438, %v1441
      %vm1443 = vcmp.eq.s32.totalorder %v1442, 1
      %vm1444 = vmand %vm1437, %vm1443
      %v1445 = vld [vmem:[%s11] sm:$0xf]
      %v1446 = vld [vmem:[%s11 + $0x4] sm:$0xf]
      %v1447 = vld [vmem:[%s11 + $0x8] sm:$0xf]
      %v1448 = vld [vmem:[%s11 + $0xc] sm:$0xf]
      %v1449 = vld [vmem:[%s12] sm:$0x1]
      %v1450 = vpack.c.bf16 %v1428, %v1428
      %v1452 = vlaneseq
      %v1453 = vshrl.u32 %v1452, 7
      %v1454 = vsub.s32 0, %v1453
      %v1455 = vrot.slane %v1449, %v1454
      %v1461 = vunpack.c.l.b16 %v1445
      %v1462 = vunpack.c.l.b16 %v1446
      %v1463 = vunpack.c.l.b16 %v1447
      %v1464 = vunpack.c.l.b16 %v1448
      %v1465 = vpack.c.b16 %v1462, %v1461
      %v1466 = vpack.c.b16 %v1464, %v1463
      %v1470 = vsel %vm817, %v1450, 0
      %1472 = vmatprep.subr.bf16.mxu0 0
      %1473 = vmatpush1.bf16.msra.mxu0 0
      %1474 = vmatprep.subr.bf16.mxu0 0
      %1475 = vmatpush1.bf16.msra.mxu0 0
      %1476 = vmatprep.subr.bf16.mxu0 0
      %1477 = vmatpush1.bf16.msra.mxu0 0
      %1478 = vmatprep.subr.bf16.mxu0 0
      %1479 = vmatpush1.bf16.msra.mxu0 0
      %1480 = vmatprep.subr.bf16.mxu0 0
      %1481 = vmatpush1.bf16.msra.mxu0 0
      %1482 = vmatprep.subr.bf16.mxu0 0
      %1483 = vmatpush1.bf16.msra.mxu0 0
      %1484 = vmatprep.subr.bf16.mxu0 0
      %1485 = vmatpush1.bf16.msra.mxu0 %v1466
      %1486 = vmatprep.subr.bf16.mxu0 0
      %1487 = vmatpush1.bf16.msra.mxu0 %v1465
      %1488 = vmatprep.subr.bf16.mxu0 0
      %1489 = vmatpush2.bf16.msra.mxu0 0
      %1490 = vmatprep.subr.bf16.mxu0 0
      %1491 = vmatpush2.bf16.msra.mxu0 0
      %1492 = vmatprep.subr.bf16.mxu0 0
      %1493 = vmatpush2.bf16.msra.mxu0 0
      %1494 = vmatprep.subr.bf16.mxu0 0
      %1495 = vmatpush2.bf16.msra.mxu0 0
      %1496 = vmatprep.subr.bf16.mxu0 0
      %1497 = vmatpush2.bf16.msra.mxu0 0
      %1498 = vmatprep.subr.bf16.mxu0 0
      %1499 = vmatpush2.bf16.msra.mxu0 0
      %1500 = vmatprep.subr.bf16.mxu0 0
      %1501 = vmatpush2.bf16.msra.mxu0 0
      %1502 = vmatprep.subr.bf16.mxu0 0
      %1503 = vmatpush2.bf16.msra.mxu0 0
      %1504 = vmatprep.mubr.bf16.mxu0 0
      %1505 = vmatmul.mubr.bf16.gmra.mxu0 %v1470
      %v1506 = vpop.f32.mrf.mxu0
      %v1507 = vadd.f32 %v1455, %v1506
      %v1508 = vpop.f32.mrf.mxu0
      %v1509 = vpop.f32.mrf.mxu0
      %v1510 = vpop.f32.mrf.mxu0
      %1511 = vdwg.mxu0
      %1512 = vrot.lane.b32.xlu0 %v1465, 96
      %v1513 = vpop.permute.xlu0 %1512
      %1514 = vrot.lane.b32.xlu0 %v1466, 96
      %v1515 = vpop.permute.xlu0 %1514
      %1518 = vrot.lane.b32.xlu0 %v1455, 96
      %v1519 = vpop.permute.xlu0 %1518
      %v1522 = vsel %vm817, %v771, 0
      %1524 = vmatprep.subr.bf16.mxu0 0
      %1525 = vmatpush1.bf16.msra.mxu0 0
      %1526 = vmatprep.subr.bf16.mxu0 0
      %1527 = vmatpush1.bf16.msra.mxu0 0
      %1528 = vmatprep.subr.bf16.mxu0 0
      %1529 = vmatpush1.bf16.msra.mxu0 0
      %1530 = vmatprep.subr.bf16.mxu0 0
      %1531 = vmatpush1.bf16.msra.mxu0 0
      %1532 = vmatprep.subr.bf16.mxu0 0
      %1533 = vmatpush1.bf16.msra.mxu0 0
      %1534 = vmatprep.subr.bf16.mxu0 0
      %1535 = vmatpush1.bf16.msra.mxu0 0
      %1536 = vmatprep.subr.bf16.mxu0 0
      %1537 = vmatpush1.bf16.msra.mxu0 %v1515
      %1538 = vmatprep.subr.bf16.mxu0 0
      %1539 = vmatpush1.bf16.msra.mxu0 %v1513
      %1540 = vmatprep.subr.bf16.mxu0 0
      %1541 = vmatpush2.bf16.msra.mxu0 0
      %1542 = vmatprep.subr.bf16.mxu0 0
      %1543 = vmatpush2.bf16.msra.mxu0 0
      %1544 = vmatprep.subr.bf16.mxu0 0
      %1545 = vmatpush2.bf16.msra.mxu0 0
      %1546 = vmatprep.subr.bf16.mxu0 0
      %1547 = vmatpush2.bf16.msra.mxu0 0
      %1548 = vmatprep.subr.bf16.mxu0 0
      %1549 = vmatpush2.bf16.msra.mxu0 0
      %1550 = vmatprep.subr.bf16.mxu0 0
      %1551 = vmatpush2.bf16.msra.mxu0 0
      %1552 = vmatprep.subr.bf16.mxu0 0
      %1553 = vmatpush2.bf16.msra.mxu0 0
      %1554 = vmatprep.subr.bf16.mxu0 0
      %1555 = vmatpush2.bf16.msra.mxu0 0
      %1556 = vmatprep.mubr.bf16.mxu0 0
      %1557 = vmatmul.mubr.bf16.gmra.mxu0 %v1522
      %v1558 = vpop.f32.mrf.mxu0
      %v1559 = vadd.f32 %v1519, %v1558
      %v1560 = vpop.f32.mrf.mxu0
      %v1561 = vpop.f32.mrf.mxu0
      %v1562 = vpop.f32.mrf.mxu0
      %1563 = vdwg.mxu0
      %v1564 = vpack.c.bf16 %v1507, %v1507
      %v1565 = vpack.c.bf16 %v1559, %v1559
      %v1567 = vsel %vm865, %v1564, 0
      %v1570 = vsel %vm865, %v1565, 0
      %1572 = vmatprep.subr.bf16.mxu0 0
      %1573 = vmatpush1.bf16.xpose.msra.mxu0 0
      %1574 = vmatprep.subr.bf16.mxu0 0
      %1575 = vmatpush1.bf16.xpose.msra.mxu0 0
      %1576 = vmatprep.subr.bf16.mxu0 0
      %1577 = vmatpush1.bf16.xpose.msra.mxu0 0
      %1578 = vmatprep.subr.bf16.mxu0 0
      %1579 = vmatpush1.bf16.xpose.msra.mxu0 0
      %1580 = vmatprep.subr.bf16.mxu0 0
      %1581 = vmatpush1.bf16.xpose.msra.mxu0 0
      %1582 = vmatprep.subr.bf16.mxu0 0
      %1583 = vmatpush1.bf16.xpose.msra.mxu0 0
      %1584 = vmatprep.subr.bf16.mxu0 0
      %1585 = vmatpush1.bf16.xpose.msra.mxu0 0
      %1586 = vmatprep.subr.bf16.mxu0 0
      %1587 = vmatpush1.bf16.xpose.msra.mxu0 %v1570
      %1588 = vmatprep.subr.bf16.mxu0 0
      %1589 = vmatpush2.bf16.xpose.msra.mxu0 0
      %1590 = vmatprep.subr.bf16.mxu0 0
      %1591 = vmatpush2.bf16.xpose.msra.mxu0 0
      %1592 = vmatprep.subr.bf16.mxu0 0
      %1593 = vmatpush2.bf16.xpose.msra.mxu0 0
      %1594 = vmatprep.subr.bf16.mxu0 0
      %1595 = vmatpush2.bf16.xpose.msra.mxu0 0
      %1596 = vmatprep.subr.bf16.mxu0 0
      %1597 = vmatpush2.bf16.xpose.msra.mxu0 0
      %1598 = vmatprep.subr.bf16.mxu0 0
      %1599 = vmatpush2.bf16.xpose.msra.mxu0 0
      %1600 = vmatprep.subr.bf16.mxu0 0
      %1601 = vmatpush2.bf16.xpose.msra.mxu0 0
      %1602 = vmatprep.subr.bf16.mxu0 0
      %1603 = vmatpush2.bf16.xpose.msra.mxu0 0
      %1604 = vmatprep.mubr.bf16.mxu0 0
      %1605 = vmatmul.mubr.bf16.gmra.mxu0 %v1567
      %v1606 = vpop.f32.mrf.mxu0
      %v1607 = vadd.f32 0.0, %v1606
      %v1608 = vpop.f32.mrf.mxu0
      %v1609 = vpop.f32.mrf.mxu0
      %v1610 = vpop.f32.mrf.mxu0
      %1611 = vdwg.mxu0
      %v1612 = vmul.f32 %v1607, 0.35355338
      %v1613 = vsel %vm1444, %v1612, -1e+09
      %v1614 = vsel %vm865, %v1613, -inf
      %1615 = vmax.xlane.f32.xlu0 %v1614
      %v1616 = vpop.xlane.xlu0 %1615
      %v1617 = vsub.f32 %v1613, %v1616
      %v1618 = vmul.f32 %v1617, 1.442695
      %v1619 = vpow.pop %v1618
      %v1620 = vsel %vm865, %v1619, 0.0
      %1621 = vadd.xlane.f32.xlu0 %v1620
      %v1622 = vpop.xlane.xlu0 %1621
      %v1623 = vrcp.pop %v1622
      %v1624 = vmul.f32 %v1619, %v1623
      %v1625 = vpack.c.bf16 %v1624, %v1624
      %1627 = vrot.lane.b32.xlu0 %v1565, 96
      %v1628 = vpop.permute.xlu0 %1627
      %v1630 = vsel %vm865, %v1625, 0
      %v1633 = vsel %vm931, %v1628, 0
      %1635 = vmatprep.subr.bf16.mxu0 0
      %1636 = vmatpush1.bf16.msra.mxu0 0
      %1637 = vmatprep.subr.bf16.mxu0 0
      %1638 = vmatpush1.bf16.msra.mxu0 0
      %1639 = vmatprep.subr.bf16.mxu0 0
      %1640 = vmatpush1.bf16.msra.mxu0 0
      %1641 = vmatprep.subr.bf16.mxu0 0
      %1642 = vmatpush1.bf16.msra.mxu0 0
      %1643 = vmatprep.subr.bf16.mxu0 0
      %1644 = vmatpush1.bf16.msra.mxu0 0
      %1645 = vmatprep.subr.bf16.mxu0 0
      %1646 = vmatpush1.bf16.msra.mxu0 0
      %1647 = vmatprep.subr.bf16.mxu0 0
      %1648 = vmatpush1.bf16.msra.mxu0 0
      %1649 = vmatprep.subr.bf16.mxu0 0
      %1650 = vmatpush1.bf16.msra.mxu0 %v1633
      %1651 = vmatprep.subr.bf16.mxu0 0
      %1652 = vmatpush2.bf16.msra.mxu0 0
      %1653 = vmatprep.subr.bf16.mxu0 0
      %1654 = vmatpush2.bf16.msra.mxu0 0
      %1655 = vmatprep.subr.bf16.mxu0 0
      %1656 = vmatpush2.bf16.msra.mxu0 0
      %1657 = vmatprep.subr.bf16.mxu0 0
      %1658 = vmatpush2.bf16.msra.mxu0 0
      %1659 = vmatprep.subr.bf16.mxu0 0
      %1660 = vmatpush2.bf16.msra.mxu0 0
      %1661 = vmatprep.subr.bf16.mxu0 0
      %1662 = vmatpush2.bf16.msra.mxu0 0
      %1663 = vmatprep.subr.bf16.mxu0 0
      %1664 = vmatpush2.bf16.msra.mxu0 0
      %1665 = vmatprep.subr.bf16.mxu0 0
      %1666 = vmatpush2.bf16.msra.mxu0 0
      %1667 = vmatprep.mubr.bf16.mxu0 0
      %1668 = vmatmul.mubr.bf16.gmra.mxu0 %v1630
      %v1669 = vpop.f32.mrf.mxu0
      %v1670 = vadd.f32 0.0, %v1669
      %v1671 = vpop.f32.mrf.mxu0
      %v1672 = vpop.f32.mrf.mxu0
      %v1673 = vpop.f32.mrf.mxu0
      %1674 = vdwg.mxu0
      %1675 = vst.msk [vmem:[#allocation2] sm:$0xff] %vm865, %v1670
      %1677 = vrot.lane.b32.xlu0 %v1564, 120
      %v1678 = vpop.permute.xlu0 %1677
      %1679 = vrot.lane.b32.xlu0 %v1565, 120
      %v1680 = vpop.permute.xlu0 %1679
      %v1682 = vsel %vm865, %v1678, 0
      %v1685 = vsel %vm865, %v1680, 0
      %1687 = vmatprep.subr.bf16.mxu0 0
      %1688 = vmatpush1.bf16.xpose.msra.mxu0 0
      %1689 = vmatprep.subr.bf16.mxu0 0
      %1690 = vmatpush1.bf16.xpose.msra.mxu0 0
      %1691 = vmatprep.subr.bf16.mxu0 0
      %1692 = vmatpush1.bf16.xpose.msra.mxu0 0
      %1693 = vmatprep.subr.bf16.mxu0 0
      %1694 = vmatpush1.bf16.xpose.msra.mxu0 0
      %1695 = vmatprep.subr.bf16.mxu0 0
      %1696 = vmatpush1.bf16.xpose.msra.mxu0 0
      %1697 = vmatprep.subr.bf16.mxu0 0
      %1698 = vmatpush1.bf16.xpose.msra.mxu0 0
      %1699 = vmatprep.subr.bf16.mxu0 0
      %1700 = vmatpush1.bf16.xpose.msra.mxu0 0
      %1701 = vmatprep.subr.bf16.mxu0 0
      %1702 = vmatpush1.bf16.xpose.msra.mxu0 %v1685
      %1703 = vmatprep.subr.bf16.mxu0 0
      %1704 = vmatpush2.bf16.xpose.msra.mxu0 0
      %1705 = vmatprep.subr.bf16.mxu0 0
      %1706 = vmatpush2.bf16.xpose.msra.mxu0 0
      %1707 = vmatprep.subr.bf16.mxu0 0
      %1708 = vmatpush2.bf16.xpose.msra.mxu0 0
      %1709 = vmatprep.subr.bf16.mxu0 0
      %1710 = vmatpush2.bf16.xpose.msra.mxu0 0
      %1711 = vmatprep.subr.bf16.mxu0 0
      %1712 = vmatpush2.bf16.xpose.msra.mxu0 0
      %1713 = vmatprep.subr.bf16.mxu0 0
      %1714 = vmatpush2.bf16.xpose.msra.mxu0 0
      %1715 = vmatprep.subr.bf16.mxu0 0
      %1716 = vmatpush2.bf16.xpose.msra.mxu0 0
      %1717 = vmatprep.subr.bf16.mxu0 0
      %1718 = vmatpush2.bf16.xpose.msra.mxu0 0
      %1719 = vmatprep.mubr.bf16.mxu0 0
      %1720 = vmatmul.mubr.bf16.gmra.mxu0 %v1682
      %v1721 = vpop.f32.mrf.mxu0
      %v1722 = vadd.f32 0.0, %v1721
      %v1723 = vpop.f32.mrf.mxu0
      %v1724 = vpop.f32.mrf.mxu0
      %v1725 = vpop.f32.mrf.mxu0
      %1726 = vdwg.mxu0
      %v1727 = vmul.f32 %v1722, 0.35355338
      %v1728 = vsel %vm1444, %v1727, -1e+09
      %v1729 = vsel %vm865, %v1728, -inf
      %1730 = vmax.xlane.f32.xlu0 %v1729
      %v1731 = vpop.xlane.xlu0 %1730
      %v1732 = vsub.f32 %v1728, %v1731
      %v1733 = vmul.f32 %v1732, 1.442695
      %v1734 = vpow.pop %v1733
      %v1735 = vsel %vm865, %v1734, 0.0
      %1736 = vadd.xlane.f32.xlu0 %v1735
      %v1737 = vpop.xlane.xlu0 %1736
      %v1738 = vrcp.pop %v1737
      %v1739 = vmul.f32 %v1734, %v1738
      %v1740 = vpack.c.bf16 %v1739, %v1739
      %1741 = vrot.lane.b32.xlu0 %v1565, 88
      %v1742 = vpop.permute.xlu0 %1741
      %v1744 = vsel %vm865, %v1740, 0
      %v1747 = vsel %vm931, %v1742, 0
      %1749 = vmatprep.subr.bf16.mxu0 0
      %1750 = vmatpush1.bf16.msra.mxu0 0
      %1751 = vmatprep.subr.bf16.mxu0 0
      %1752 = vmatpush1.bf16.msra.mxu0 0
      %1753 = vmatprep.subr.bf16.mxu0 0
      %1754 = vmatpush1.bf16.msra.mxu0 0
      %1755 = vmatprep.subr.bf16.mxu0 0
      %1756 = vmatpush1.bf16.msra.mxu0 0
      %1757 = vmatprep.subr.bf16.mxu0 0
      %1758 = vmatpush1.bf16.msra.mxu0 0
      %1759 = vmatprep.subr.bf16.mxu0 0
      %1760 = vmatpush1.bf16.msra.mxu0 0
      %1761 = vmatprep.subr.bf16.mxu0 0
      %1762 = vmatpush1.bf16.msra.mxu0 0
      %1763 = vmatprep.subr.bf16.mxu0 0
      %1764 = vmatpush1.bf16.msra.mxu0 %v1747
      %1765 = vmatprep.subr.bf16.mxu0 0
      %1766 = vmatpush2.bf16.msra.mxu0 0
      %1767 = vmatprep.subr.bf16.mxu0 0
      %1768 = vmatpush2.bf16.msra.mxu0 0
      %1769 = vmatprep.subr.bf16.mxu0 0
      %1770 = vmatpush2.bf16.msra.mxu0 0
      %1771 = vmatprep.subr.bf16.mxu0 0
      %1772 = vmatpush2.bf16.msra.mxu0 0
      %1773 = vmatprep.subr.bf16.mxu0 0
      %1774 = vmatpush2.bf16.msra.mxu0 0
      %1775 = vmatprep.subr.bf16.mxu0 0
      %1776 = vmatpush2.bf16.msra.mxu0 0
      %1777 = vmatprep.subr.bf16.mxu0 0
      %1778 = vmatpush2.bf16.msra.mxu0 0
      %1779 = vmatprep.subr.bf16.mxu0 0
      %1780 = vmatpush2.bf16.msra.mxu0 0
      %1781 = vmatprep.mubr.bf16.mxu0 0
      %1782 = vmatmul.mubr.bf16.gmra.mxu0 %v1744
      %v1783 = vpop.f32.mrf.mxu0
      %v1784 = vadd.f32 0.0, %v1783
      %v1785 = vpop.f32.mrf.mxu0
      %v1786 = vpop.f32.mrf.mxu0
      %v1787 = vpop.f32.mrf.mxu0
      %1788 = vdwg.mxu0
      %1790 = vrot.lane.b32.xlu0 %v1784, 8
      %v1791 = vpop.permute.xlu0 %1790
      %1793 = vst.msk [vmem:[#allocation2] sm:$0xff] %vm1092, %v1791
      %1794 = vrot.lane.b32.xlu0 %v1564, 112
      %v1795 = vpop.permute.xlu0 %1794
      %1796 = vrot.lane.b32.xlu0 %v1565, 112
      %v1797 = vpop.permute.xlu0 %1796
      %v1799 = vsel %vm865, %v1795, 0
      %v1802 = vsel %vm865, %v1797, 0
      %1804 = vmatprep.subr.bf16.mxu0 0
      %1805 = vmatpush1.bf16.xpose.msra.mxu0 0
      %1806 = vmatprep.subr.bf16.mxu0 0
      %1807 = vmatpush1.bf16.xpose.msra.mxu0 0
      %1808 = vmatprep.subr.bf16.mxu0 0
      %1809 = vmatpush1.bf16.xpose.msra.mxu0 0
      %1810 = vmatprep.subr.bf16.mxu0 0
      %1811 = vmatpush1.bf16.xpose.msra.mxu0 0
      %1812 = vmatprep.subr.bf16.mxu0 0
      %1813 = vmatpush1.bf16.xpose.msra.mxu0 0
      %1814 = vmatprep.subr.bf16.mxu0 0
      %1815 = vmatpush1.bf16.xpose.msra.mxu0 0
      %1816 = vmatprep.subr.bf16.mxu0 0
      %1817 = vmatpush1.bf16.xpose.msra.mxu0 0
      %1818 = vmatprep.subr.bf16.mxu0 0
      %1819 = vmatpush1.bf16.xpose.msra.mxu0 %v1802
      %1820 = vmatprep.subr.bf16.mxu0 0
      %1821 = vmatpush2.bf16.xpose.msra.mxu0 0
      %1822 = vmatprep.subr.bf16.mxu0 0
      %1823 = vmatpush2.bf16.xpose.msra.mxu0 0
      %1824 = vmatprep.subr.bf16.mxu0 0
      %1825 = vmatpush2.bf16.xpose.msra.mxu0 0
      %1826 = vmatprep.subr.bf16.mxu0 0
      %1827 = vmatpush2.bf16.xpose.msra.mxu0 0
      %1828 = vmatprep.subr.bf16.mxu0 0
      %1829 = vmatpush2.bf16.xpose.msra.mxu0 0
      %1830 = vmatprep.subr.bf16.mxu0 0
      %1831 = vmatpush2.bf16.xpose.msra.mxu0 0
      %1832 = vmatprep.subr.bf16.mxu0 0
      %1833 = vmatpush2.bf16.xpose.msra.mxu0 0
      %1834 = vmatprep.subr.bf16.mxu0 0
      %1835 = vmatpush2.bf16.xpose.msra.mxu0 0
      %1836 = vmatprep.mubr.bf16.mxu0 0
      %1837 = vmatmul.mubr.bf16.gmra.mxu0 %v1799
      %v1838 = vpop.f32.mrf.mxu0
      %v1839 = vadd.f32 0.0, %v1838
      %v1840 = vpop.f32.mrf.mxu0
      %v1841 = vpop.f32.mrf.mxu0
      %v1842 = vpop.f32.mrf.mxu0
      %1843 = vdwg.mxu0
      %v1844 = vmul.f32 %v1839, 0.35355338
      %v1845 = vsel %vm1444, %v1844, -1e+09
      %v1846 = vsel %vm865, %v1845, -inf
      %1847 = vmax.xlane.f32.xlu0 %v1846
      %v1848 = vpop.xlane.xlu0 %1847
      %v1849 = vsub.f32 %v1845, %v1848
      %v1850 = vmul.f32 %v1849, 1.442695
      %v1851 = vpow.pop %v1850
      %v1852 = vsel %vm865, %v1851, 0.0
      %1853 = vadd.xlane.f32.xlu0 %v1852
      %v1854 = vpop.xlane.xlu0 %1853
      %v1855 = vrcp.pop %v1854
      %v1856 = vmul.f32 %v1851, %v1855
      %v1857 = vpack.c.bf16 %v1856, %v1856
      %1858 = vrot.lane.b32.xlu0 %v1565, 80
      %v1859 = vpop.permute.xlu0 %1858
      %v1861 = vsel %vm865, %v1857, 0
      %v1864 = vsel %vm931, %v1859, 0
      %1866 = vmatprep.subr.bf16.mxu0 0
      %1867 = vmatpush1.bf16.msra.mxu0 0
      %1868 = vmatprep.subr.bf16.mxu0 0
      %1869 = vmatpush1.bf16.msra.mxu0 0
      %1870 = vmatprep.subr.bf16.mxu0 0
      %1871 = vmatpush1.bf16.msra.mxu0 0
      %1872 = vmatprep.subr.bf16.mxu0 0
      %1873 = vmatpush1.bf16.msra.mxu0 0
      %1874 = vmatprep.subr.bf16.mxu0 0
      %1875 = vmatpush1.bf16.msra.mxu0 0
      %1876 = vmatprep.subr.bf16.mxu0 0
      %1877 = vmatpush1.bf16.msra.mxu0 0
      %1878 = vmatprep.subr.bf16.mxu0 0
      %1879 = vmatpush1.bf16.msra.mxu0 0
      %1880 = vmatprep.subr.bf16.mxu0 0
      %1881 = vmatpush1.bf16.msra.mxu0 %v1864
      %1882 = vmatprep.subr.bf16.mxu0 0
      %1883 = vmatpush2.bf16.msra.mxu0 0
      %1884 = vmatprep.subr.bf16.mxu0 0
      %1885 = vmatpush2.bf16.msra.mxu0 0
      %1886 = vmatprep.subr.bf16.mxu0 0
      %1887 = vmatpush2.bf16.msra.mxu0 0
      %1888 = vmatprep.subr.bf16.mxu0 0
      %1889 = vmatpush2.bf16.msra.mxu0 0
      %1890 = vmatprep.subr.bf16.mxu0 0
      %1891 = vmatpush2.bf16.msra.mxu0 0
      %1892 = vmatprep.subr.bf16.mxu0 0
      %1893 = vmatpush2.bf16.msra.mxu0 0
      %1894 = vmatprep.subr.bf16.mxu0 0
      %1895 = vmatpush2.bf16.msra.mxu0 0
      %1896 = vmatprep.subr.bf16.mxu0 0
      %1897 = vmatpush2.bf16.msra.mxu0 0
      %1898 = vmatprep.mubr.bf16.mxu0 0
      %1899 = vmatmul.mubr.bf16.gmra.mxu0 %v1861
      %v1900 = vpop.f32.mrf.mxu0
      %v1901 = vadd.f32 0.0, %v1900
      %v1902 = vpop.f32.mrf.mxu0
      %v1903 = vpop.f32.mrf.mxu0
      %v1904 = vpop.f32.mrf.mxu0
      %1905 = vdwg.mxu0
      %1907 = vrot.lane.b32.xlu0 %v1901, 16
      %v1908 = vpop.permute.xlu0 %1907
      %1910 = vst.msk [vmem:[#allocation2] sm:$0xff] %vm1210, %v1908
      %1911 = vrot.lane.b32.xlu0 %v1564, 104
      %v1912 = vpop.permute.xlu0 %1911
      %1913 = vrot.lane.b32.xlu0 %v1565, 104
      %v1914 = vpop.permute.xlu0 %1913
      %v1916 = vsel %vm865, %v1912, 0
      %v1919 = vsel %vm865, %v1914, 0
      %1921 = vmatprep.subr.bf16.mxu0 0
      %1922 = vmatpush1.bf16.xpose.msra.mxu0 0
      %1923 = vmatprep.subr.bf16.mxu0 0
      %1924 = vmatpush1.bf16.xpose.msra.mxu0 0
      %1925 = vmatprep.subr.bf16.mxu0 0
      %1926 = vmatpush1.bf16.xpose.msra.mxu0 0
      %1927 = vmatprep.subr.bf16.mxu0 0
      %1928 = vmatpush1.bf16.xpose.msra.mxu0 0
      %1929 = vmatprep.subr.bf16.mxu0 0
      %1930 = vmatpush1.bf16.xpose.msra.mxu0 0
      %1931 = vmatprep.subr.bf16.mxu0 0
      %1932 = vmatpush1.bf16.xpose.msra.mxu0 0
      %1933 = vmatprep.subr.bf16.mxu0 0
      %1934 = vmatpush1.bf16.xpose.msra.mxu0 0
      %1935 = vmatprep.subr.bf16.mxu0 0
      %1936 = vmatpush1.bf16.xpose.msra.mxu0 %v1919
      %1937 = vmatprep.subr.bf16.mxu0 0
      %1938 = vmatpush2.bf16.xpose.msra.mxu0 0
      %1939 = vmatprep.subr.bf16.mxu0 0
      %1940 = vmatpush2.bf16.xpose.msra.mxu0 0
      %1941 = vmatprep.subr.bf16.mxu0 0
      %1942 = vmatpush2.bf16.xpose.msra.mxu0 0
      %1943 = vmatprep.subr.bf16.mxu0 0
      %1944 = vmatpush2.bf16.xpose.msra.mxu0 0
      %1945 = vmatprep.subr.bf16.mxu0 0
      %1946 = vmatpush2.bf16.xpose.msra.mxu0 0
      %1947 = vmatprep.subr.bf16.mxu0 0
      %1948 = vmatpush2.bf16.xpose.msra.mxu0 0
      %1949 = vmatprep.subr.bf16.mxu0 0
      %1950 = vmatpush2.bf16.xpose.msra.mxu0 0
      %1951 = vmatprep.subr.bf16.mxu0 0
      %1952 = vmatpush2.bf16.xpose.msra.mxu0 0
      %1953 = vmatprep.mubr.bf16.mxu0 0
      %1954 = vmatmul.mubr.bf16.gmra.mxu0 %v1916
      %v1955 = vpop.f32.mrf.mxu0
      %v1956 = vadd.f32 0.0, %v1955
      %v1957 = vpop.f32.mrf.mxu0
      %v1958 = vpop.f32.mrf.mxu0
      %v1959 = vpop.f32.mrf.mxu0
      %1960 = vdwg.mxu0
      %v1961 = vmul.f32 %v1956, 0.35355338
      %v1962 = vsel %vm1444, %v1961, -1e+09
      %v1963 = vsel %vm865, %v1962, -inf
      %1964 = vmax.xlane.f32.xlu0 %v1963
      %v1965 = vpop.xlane.xlu0 %1964
      %v1966 = vsub.f32 %v1962, %v1965
      %v1967 = vmul.f32 %v1966, 1.442695
      %v1968 = vpow.pop %v1967
      %v1969 = vsel %vm865, %v1968, 0.0
      %1970 = vadd.xlane.f32.xlu0 %v1969
      %v1971 = vpop.xlane.xlu0 %1970
      %v1972 = vrcp.pop %v1971
      %v1973 = vmul.f32 %v1968, %v1972
      %v1974 = vpack.c.bf16 %v1973, %v1973
      %1975 = vrot.lane.b32.xlu0 %v1565, 72
      %v1976 = vpop.permute.xlu0 %1975
      %v1978 = vsel %vm865, %v1974, 0
      %v1981 = vsel %vm931, %v1976, 0
      %1983 = vmatprep.subr.bf16.mxu0 0
      %1984 = vmatpush1.bf16.msra.mxu0 0
      %1985 = vmatprep.subr.bf16.mxu0 0
      %1986 = vmatpush1.bf16.msra.mxu0 0
      %1987 = vmatprep.subr.bf16.mxu0 0
      %1988 = vmatpush1.bf16.msra.mxu0 0
      %1989 = vmatprep.subr.bf16.mxu0 0
      %1990 = vmatpush1.bf16.msra.mxu0 0
      %1991 = vmatprep.subr.bf16.mxu0 0
      %1992 = vmatpush1.bf16.msra.mxu0 0
      %1993 = vmatprep.subr.bf16.mxu0 0
      %1994 = vmatpush1.bf16.msra.mxu0 0
      %1995 = vmatprep.subr.bf16.mxu0 0
      %1996 = vmatpush1.bf16.msra.mxu0 0
      %1997 = vmatprep.subr.bf16.mxu0 0
      %1998 = vmatpush1.bf16.msra.mxu0 %v1981
      %1999 = vmatprep.subr.bf16.mxu0 0
      %2000 = vmatpush2.bf16.msra.mxu0 0
      %2001 = vmatprep.subr.bf16.mxu0 0
      %2002 = vmatpush2.bf16.msra.mxu0 0
      %2003 = vmatprep.subr.bf16.mxu0 0
      %2004 = vmatpush2.bf16.msra.mxu0 0
      %2005 = vmatprep.subr.bf16.mxu0 0
      %2006 = vmatpush2.bf16.msra.mxu0 0
      %2007 = vmatprep.subr.bf16.mxu0 0
      %2008 = vmatpush2.bf16.msra.mxu0 0
      %2009 = vmatprep.subr.bf16.mxu0 0
      %2010 = vmatpush2.bf16.msra.mxu0 0
      %2011 = vmatprep.subr.bf16.mxu0 0
      %2012 = vmatpush2.bf16.msra.mxu0 0
      %2013 = vmatprep.subr.bf16.mxu0 0
      %2014 = vmatpush2.bf16.msra.mxu0 0
      %2015 = vmatprep.mubr.bf16.mxu0 0
      %2016 = vmatmul.mubr.bf16.gmra.mxu0 %v1978
      %v2017 = vpop.f32.mrf.mxu0
      %v2018 = vadd.f32 0.0, %v2017
      %v2019 = vpop.f32.mrf.mxu0
      %v2020 = vpop.f32.mrf.mxu0
      %v2021 = vpop.f32.mrf.mxu0
      %2022 = vdwg.mxu0
      %2024 = vrot.lane.b32.xlu0 %v2018, 24
      %v2025 = vpop.permute.xlu0 %2024
      %2027 = vst.msk [vmem:[#allocation2] sm:$0xff] %vm1328, %v2025
      %v2028 = vld [vmem:[#allocation2] sm:$0xff]
      %v2029 = vpack.c.bf16 %v2028, %v2028
      %v2030 = vld [vmem:[%s13] sm:$0xf]
      %v2031 = vld [vmem:[%s13 + $0x4] sm:$0xf]
      %v2032 = vld [vmem:[%s13 + $0x8] sm:$0xf]
      %v2033 = vld [vmem:[%s13 + $0xc] sm:$0xf]
      %v2034 = vld [vmem:[%s14] sm:$0x1]
      %v2036 = vlaneseq
      %v2037 = vshrl.u32 %v2036, 7
      %v2038 = vsub.s32 0, %v2037
      %v2039 = vrot.slane %v2034, %v2038
      %v2045 = vunpack.c.l.b16 %v2030
      %v2046 = vunpack.c.l.b16 %v2031
      %v2047 = vunpack.c.l.b16 %v2032
      %v2048 = vunpack.c.l.b16 %v2033
      %v2049 = vpack.c.b16 %v2046, %v2045
      %v2050 = vpack.c.b16 %v2048, %v2047
      %v2054 = vsel %vm817, %v2029, 0
      %2056 = vmatprep.subr.bf16.mxu0 0
      %2057 = vmatpush1.bf16.msra.mxu0 0
      %2058 = vmatprep.subr.bf16.mxu0 0
      %2059 = vmatpush1.bf16.msra.mxu0 0
      %2060 = vmatprep.subr.bf16.mxu0 0
      %2061 = vmatpush1.bf16.msra.mxu0 0
      %2062 = vmatprep.subr.bf16.mxu0 0
      %2063 = vmatpush1.bf16.msra.mxu0 0
      %2064 = vmatprep.subr.bf16.mxu0 0
      %2065 = vmatpush1.bf16.msra.mxu0 0
      %2066 = vmatprep.subr.bf16.mxu0 0
      %2067 = vmatpush1.bf16.msra.mxu0 0
      %2068 = vmatprep.subr.bf16.mxu0 0
      %2069 = vmatpush1.bf16.msra.mxu0 %v2050
      %2070 = vmatprep.subr.bf16.mxu0 0
      %2071 = vmatpush1.bf16.msra.mxu0 %v2049
      %2072 = vmatprep.subr.bf16.mxu0 0
      %2073 = vmatpush2.bf16.msra.mxu0 0
      %2074 = vmatprep.subr.bf16.mxu0 0
      %2075 = vmatpush2.bf16.msra.mxu0 0
      %2076 = vmatprep.subr.bf16.mxu0 0
      %2077 = vmatpush2.bf16.msra.mxu0 0
      %2078 = vmatprep.subr.bf16.mxu0 0
      %2079 = vmatpush2.bf16.msra.mxu0 0
      %2080 = vmatprep.subr.bf16.mxu0 0
      %2081 = vmatpush2.bf16.msra.mxu0 0
      %2082 = vmatprep.subr.bf16.mxu0 0
      %2083 = vmatpush2.bf16.msra.mxu0 0
      %2084 = vmatprep.subr.bf16.mxu0 0
      %2085 = vmatpush2.bf16.msra.mxu0 0
      %2086 = vmatprep.subr.bf16.mxu0 0
      %2087 = vmatpush2.bf16.msra.mxu0 0
      %2088 = vmatprep.mubr.bf16.mxu0 0
      %2089 = vmatmul.mubr.bf16.gmra.mxu0 %v2054
      %v2090 = vpop.f32.mrf.mxu0
      %v2091 = vadd.f32 %v2039, %v2090
      %v2092 = vpop.f32.mrf.mxu0
      %v2093 = vpop.f32.mrf.mxu0
      %v2094 = vpop.f32.mrf.mxu0
      %2095 = vdwg.mxu0
      %v2096 = vadd.f32 %v1428, %v2091
      %v2097 = vld [vmem:[%s15] sm:$0x1]
      %v2098 = vld [vmem:[%s16] sm:$0x1]
      %v2099 = vsel %vm817, %v2096, 0.0
      %2100 = vadd.xlane.f32.xlu0 %v2099
      %v2101 = vpop.xlane.xlu0 %2100
      %v2102 = vmul.f32 %v2101, %v1404
      %v2103 = vsub.f32 %v2096, %v2102
      %v2104 = vmul.f32 %v2103, %v2103
      %v2105 = vsel %vm817, %v2104, 0.0
      %2106 = vadd.xlane.f32.xlu0 %v2105
      %v2107 = vpop.xlane.xlu0 %2106
      %v2108 = vmul.f32 %v2107, %v1404
      %v2109 = vadd.f32 %v2108, 1e-05
      %v2110 = vrsqrt.pop %v2109
      %v2111 = vmul.f32 %v2103, %v2110
      %v2113 = vlaneseq
      %v2114 = vshrl.u32 %v2113, 7
      %v2115 = vsub.s32 0, %v2114
      %v2116 = vrot.slane %v2097, %v2115
      %v2118 = vmul.f32 %v2111, %v2116
      %v2120 = vlaneseq
      %v2121 = vshrl.u32 %v2120, 7
      %v2122 = vsub.s32 0, %v2121
      %v2123 = vrot.slane %v2098, %v2122
      %v2125 = vadd.f32 %v2118, %v2123
      %v2126 = vpack.c.bf16 %v2125, %v2125
      %v2127 = vld [vmem:[%s17] sm:$0xf]
      %v2128 = vld [vmem:[%s17 + $0x4] sm:$0xf]
      %v2129 = vld [vmem:[%s17 + $0x8] sm:$0xf]
      %v2130 = vld [vmem:[%s17 + $0xc] sm:$0xf]
      %v2131 = vld [vmem:[%s18] sm:$0x1]
      %v2133 = vlaneseq
      %v2134 = vshrl.u32 %v2133, 7
      %v2135 = vsub.s32 0, %v2134
      %v2136 = vrot.slane %v2131, %v2135
      %v2142 = vunpack.c.l.b16 %v2127
      %v2143 = vunpack.c.l.b16 %v2128
      %v2144 = vunpack.c.l.b16 %v2129
      %v2145 = vunpack.c.l.b16 %v2130
      %v2146 = vpack.c.b16 %v2143, %v2142
      %v2147 = vpack.c.b16 %v2145, %v2144
      %v2151 = vsel %vm817, %v2126, 0
      %2153 = vmatprep.subr.bf16.mxu0 0
      %2154 = vmatpush1.bf16.msra.mxu0 0
      %2155 = vmatprep.subr.bf16.mxu0 0
      %2156 = vmatpush1.bf16.msra.mxu0 0
      %2157 = vmatprep.subr.bf16.mxu0 0
      %2158 = vmatpush1.bf16.msra.mxu0 0
      %2159 = vmatprep.subr.bf16.mxu0 0
      %2160 = vmatpush1.bf16.msra.mxu0 0
      %2161 = vmatprep.subr.bf16.mxu0 0
      %2162 = vmatpush1.bf16.msra.mxu0 0
      %2163 = vmatprep.subr.bf16.mxu0 0
      %2164 = vmatpush1.bf16.msra.mxu0 0
      %2165 = vmatprep.subr.bf16.mxu0 0
      %2166 = vmatpush1.bf16.msra.mxu0 %v2147
      %2167 = vmatprep.subr.bf16.mxu0 0
      %2168 = vmatpush1.bf16.msra.mxu0 %v2146
      %2169 = vmatprep.subr.bf16.mxu0 0
      %2170 = vmatpush2.bf16.msra.mxu0 0
      %2171 = vmatprep.subr.bf16.mxu0 0
      %2172 = vmatpush2.bf16.msra.mxu0 0
      %2173 = vmatprep.subr.bf16.mxu0 0
      %2174 = vmatpush2.bf16.msra.mxu0 0
      %2175 = vmatprep.subr.bf16.mxu0 0
      %2176 = vmatpush2.bf16.msra.mxu0 0
      %2177 = vmatprep.subr.bf16.mxu0 0
      %2178 = vmatpush2.bf16.msra.mxu0 0
      %2179 = vmatprep.subr.bf16.mxu0 0
      %2180 = vmatpush2.bf16.msra.mxu0 0
      %2181 = vmatprep.subr.bf16.mxu0 0
      %2182 = vmatpush2.bf16.msra.mxu0 0
      %2183 = vmatprep.subr.bf16.mxu0 0
      %2184 = vmatpush2.bf16.msra.mxu0 0
      %2185 = vmatprep.mubr.bf16.mxu0 0
      %2186 = vmatmul.mubr.bf16.gmra.mxu0 %v2151
      %v2187 = vpop.f32.mrf.mxu0
      %v2188 = vadd.f32 %v2136, %v2187
      %v2189 = vpop.f32.mrf.mxu0
      %v2190 = vpop.f32.mrf.mxu0
      %v2191 = vpop.f32.mrf.mxu0
      %2192 = vdwg.mxu0
      %v2193 = vmax.f32 %v2188, 0.0
      %v2194 = vpack.c.bf16 %v2193, %v2193
      %v2195 = vld [vmem:[%s19] sm:$0xf]
      %v2196 = vld [vmem:[%s19 + $0x4] sm:$0xf]
      %v2197 = vld [vmem:[%s19 + $0x8] sm:$0xf]
      %v2198 = vld [vmem:[%s19 + $0xc] sm:$0xf]
      %v2199 = vld [vmem:[%s19 + $0x10] sm:$0xf]
      %v2200 = vld [vmem:[%s19 + $0x14] sm:$0xf]
      %v2201 = vld [vmem:[%s19 + $0x18] sm:$0xf]
      %v2202 = vld [vmem:[%s19 + $0x1c] sm:$0xf]
      %v2203 = vld [vmem:[%s20] sm:$0x1]
      %v2205 = vlaneseq
      %v2206 = vshrl.u32 %v2205, 7
      %v2207 = vsub.s32 0, %v2206
      %v2208 = vrot.slane %v2203, %v2207
      %v2218 = vunpack.c.l.b16 %v2195
      %v2219 = vunpack.c.l.b16 %v2196
      %v2220 = vunpack.c.l.b16 %v2197
      %v2221 = vunpack.c.l.b16 %v2198
      %v2222 = vunpack.c.l.b16 %v2199
      %v2223 = vunpack.c.l.b16 %v2200
      %v2224 = vunpack.c.l.b16 %v2201
      %v2225 = vunpack.c.l.b16 %v2202
      %v2226 = vpack.c.b16 %v2219, %v2218
      %v2227 = vpack.c.b16 %v2221, %v2220
      %v2228 = vpack.c.b16 %v2223, %v2222
      %v2229 = vpack.c.b16 %v2225, %v2224
      %vm2234 = vcmask 523264
      %v2236 = vsel %vm2234, %v2194, 0
      %2238 = vmatprep.subr.bf16.mxu0 0
      %2239 = vmatpush1.bf16.msra.mxu0 0
      %2240 = vmatprep.subr.bf16.mxu0 0
      %2241 = vmatpush1.bf16.msra.mxu0 0
      %2242 = vmatprep.subr.bf16.mxu0 0
      %2243 = vmatpush1.bf16.msra.mxu0 0
      %2244 = vmatprep.subr.bf16.mxu0 0
      %2245 = vmatpush1.bf16.msra.mxu0 0
      %2246 = vmatprep.subr.bf16.mxu0 0
      %2247 = vmatpush1.bf16.msra.mxu0 %v2229
      %2248 = vmatprep.subr.bf16.mxu0 0
      %2249 = vmatpush1.bf16.msra.mxu0 %v2228
      %2250 = vmatprep.subr.bf16.mxu0 0
      %2251 = vmatpush1.bf16.msra.mxu0 %v2227
      %2252 = vmatprep.subr.bf16.mxu0 0
      %2253 = vmatpush1.bf16.msra.mxu0 %v2226
      %2254 = vmatprep.subr.bf16.mxu0 0
      %2255 = vmatpush2.bf16.msra.mxu0 0
      %2256 = vmatprep.subr.bf16.mxu0 0
      %2257 = vmatpush2.bf16.msra.mxu0 0
      %2258 = vmatprep.subr.bf16.mxu0 0
      %2259 = vmatpush2.bf16.msra.mxu0 0
      %2260 = vmatprep.subr.bf16.mxu0 0
      %2261 = vmatpush2.bf16.msra.mxu0 0
      %2262 = vmatprep.subr.bf16.mxu0 0
      %2263 = vmatpush2.bf16.msra.mxu0 0
      %2264 = vmatprep.subr.bf16.mxu0 0
      %2265 = vmatpush2.bf16.msra.mxu0 0
      %2266 = vmatprep.subr.bf16.mxu0 0
      %2267 = vmatpush2.bf16.msra.mxu0 0
      %2268 = vmatprep.subr.bf16.mxu0 0
      %2269 = vmatpush2.bf16.msra.mxu0 0
      %2270 = vmatprep.mubr.bf16.mxu0 0
      %2271 = vmatmul.mubr.bf16.gmra.mxu0 %v2236
      %v2272 = vpop.f32.mrf.mxu0
      %v2273 = vadd.f32 %v2208, %v2272
      %v2274 = vpop.f32.mrf.mxu0
      %v2275 = vpop.f32.mrf.mxu0
      %v2276 = vpop.f32.mrf.mxu0
      %2277 = vdwg.mxu0
      %v2278 = vadd.f32 %v2125, %v2273
      %v2279 = vld [vmem:[%s21] sm:$0x1]
      %v2280 = vld [vmem:[%s22] sm:$0x1]
      %v2281 = vsel %vm817, %v2278, 0.0
      %2282 = vadd.xlane.f32.xlu0 %v2281
      %v2283 = vpop.xlane.xlu0 %2282
      %v2284 = vmul.f32 %v2283, %v1404
      %v2285 = vsub.f32 %v2278, %v2284
      %v2286 = vmul.f32 %v2285, %v2285
      %v2287 = vsel %vm817, %v2286, 0.0
      %2288 = vadd.xlane.f32.xlu0 %v2287
      %v2289 = vpop.xlane.xlu0 %2288
      %v2290 = vmul.f32 %v2289, %v1404
      %v2291 = vadd.f32 %v2290, 1e-05
      %v2292 = vrsqrt.pop %v2291
      %v2293 = vmul.f32 %v2285, %v2292
      %v2295 = vlaneseq
      %v2296 = vshrl.u32 %v2295, 7
      %v2297 = vsub.s32 0, %v2296
      %v2298 = vrot.slane %v2279, %v2297
      %v2300 = vmul.f32 %v2293, %v2298
      %v2302 = vlaneseq
      %v2303 = vshrl.u32 %v2302, 7
      %v2304 = vsub.s32 0, %v2303
      %v2305 = vrot.slane %v2280, %v2304
      %v2307 = vadd.f32 %v2300, %v2305
      %v2308 = vpack.c.bf16 %v2307, %v2307
      %vm2309 = vcmask 257024
      %2310 = vst.msk [vmem:[%s767] sm:$0xf] %vm2309, %v2308
      %p2311 = scmp.lt.s32.totalorder %s34, 1
      %s2312 = scalar_select %p2311, %s34, 1
      %s2313 = smul.addr %s2312, 4
      %s2314 = scalar_lea.vmem %s23, %s2313
      // Predicated region
      $region113: #{transformer_forward.7} parent=111 // pred_check
        %p2315 = pneg %p560
      $region114: #{transformer_forward.7} parent=111 // pred_check_branch
        %2317 = sbr.rel (%p2315) target = $region116
      $region115: #{transformer_forward.7} parent=111 // pred_region
        _
      $region116: #{transformer_forward.7} parent=111 // pred_fallthru
        _
    $region112: #{transformer_forward.7} parent=5 // pred_fallthru
      _
    %p2318 = scmp.le.s32.totalorder 2, %s29
    // Predicated region
    $region117: #{transformer_forward.7} parent=5 // pred_check
      %p2319 = pneg %p2318
    $region118: #{transformer_forward.7} parent=5 // pred_check_branch
      %2321 = sbr.rel (%p2319) target = $region120
    $region119: #{transformer_forward.7} parent=5 // pred_region
      %s2322 = ssub.s32 %s29, 2
      // Predicated region
      $region121: #{transformer_forward.7} parent=119 // pred_check
        %p2323 = pneg %p566
      $region122: #{transformer_forward.7} parent=119 // pred_check_branch
        %2325 = sbr.rel (%p2323) target = $region124
      $region123: #{transformer_forward.7} parent=119 // pred_region
        %p2326 = scmp.lt.s32.totalorder %s35, 1
        %s2327 = scalar_select %p2326, %s35, 1
        %s2328 = smul.addr %s2327, 4
        %s2329 = scalar_lea.vmem %s23, %s2328
      $region124: #{transformer_forward.7} parent=119 // pred_fallthru
        _
    $region120: #{transformer_forward.7} parent=5 // pred_fallthru
      _
  $region6: #{transformer_forward.7} parent=0 // loop_footer
    %s33 = sadd.s32 1, %s29
  $region7: #{transformer_forward.7} parent=0 // loop_footer_branch
    %28 = sbr.rel target = $region3
  $region8: #{transformer_forward.7} parent=0 // loop_exit
    _

</llo_original>
